<compile_context>
chip_gen: v6e
topology: v6e:2x2x1
jax: 0.10.0
libtpu: 0.0.40
codegen_flags: <defaults>
</compile_context>

<pallas_src>
import jax
import jax.numpy as jnp
from jax.experimental import pallas as pl
from jax.experimental.pallas import tpu as pltpu

# ---------------- model config (defaults of FlexibleFCNN) ----------------
INPUT_DIM = 32
HIDDEN_DIMS = [512, 256, 128, 64]
OUTPUT_DIM = 1
OUT_PAD = 128          # lane-dense padded width of the final layer
BN_EPS = 1e-5
NUM_HIDDEN = len(HIDDEN_DIMS)


# ------------------------------- kernel ----------------------------------
def _mlp_kernel(x_ref, *refs):
    """Fused forward for one (batch_tile, INPUT_DIM) tile.

    refs layout: (w_0, b_0), ..., (w_{L-1}, b_{L-1}), (w_out_pad, b_out_pad), o_ref
    Weights are bf16 with BN folded in; biases are f32.
    """
    o_ref = refs[-1]
    out = x_ref[...].astype(jnp.float32)
    for i in range(NUM_HIDDEN + 1):
        w = refs[2 * i][...]          # bf16 (in, out)
        b = refs[2 * i + 1][...]      # f32  (1, out)
        out = jnp.dot(out.astype(jnp.bfloat16), w,
                      preferred_element_type=jnp.float32) + b
        if i < NUM_HIDDEN:
            out = jnp.maximum(out, 0.0)   # ReLU; dropout = identity in eval
    o_ref[...] = out                      # lane-dense (batch_tile, OUT_PAD) f32


# ------------------------------ wrapper -----------------------------------
def fold_params(params):
    """Fold BN(eval)+bias into each hidden layer, cast weights to bf16 and
    pad the output layer to OUT_PAD lanes. Returns the flat kernel param list."""
    folded = []
    for i in range(NUM_HIDDEN):
        w, b, s, t = params[4 * i: 4 * i + 4]
        w_f = (w * s).astype(jnp.bfloat16)            # s broadcasts over rows
        b_f = (b * s + t).astype(jnp.float32)
        folded += [w_f, b_f]
    w_out, b_out = params[-2], params[-1]
    w_pad = jnp.zeros((w_out.shape[0], OUT_PAD), jnp.float32)
    w_pad = w_pad.at[:, :OUTPUT_DIM].set(w_out)
    b_pad = jnp.zeros((1, OUT_PAD), jnp.float32)
    b_pad = b_pad.at[:, :OUTPUT_DIM].set(b_out)
    folded += [w_pad.astype(jnp.bfloat16), b_pad]
    return folded


def flexible_fcnn_forward(x, params, *, batch_tile=512):
    """x: (B, INPUT_DIM) float32.  params: raw f32 params from init_params."""
    B = x.shape[0]
    kparams = fold_params(params)

    # Pad batch to a multiple of the tile (instead of asserting).
    B_pad = ((B + batch_tile - 1) // batch_tile) * batch_tile
    if B_pad != B:
        x = jnp.pad(x, ((0, B_pad - B), (0, 0)))
    grid = (B_pad // batch_tile,)

    x_spec = pl.BlockSpec((batch_tile, INPUT_DIM), lambda i: (i, 0))
    out_spec = pl.BlockSpec((batch_tile, OUT_PAD), lambda i: (i, 0))
    # Parameters: full-array blocks, constant index_map -> VMEM-resident
    # across the batch grid. Total ~0.5 MiB, comfortably fits every gen.
    param_specs = [
        pl.BlockSpec(p.shape, lambda i, nd=p.ndim: (0,) * nd) for p in kparams
    ]

    y = pl.pallas_call(
        _mlp_kernel,
        out_shape=jax.ShapeDtypeStruct((B_pad, OUT_PAD), jnp.float32),
        grid_spec=pltpu.PrefetchScalarGridSpec(
            num_scalar_prefetch=0,
            grid=grid,
            in_specs=[x_spec] + param_specs,
            out_specs=out_spec,
        ),
        compiler_params=pltpu.CompilerParams(
            dimension_semantics=("parallel",),
        ),
    )(x, *kparams)
    return y[:B, :OUTPUT_DIM]


# --------------------------- init & reference -----------------------------
def init_params(key):
    """Deterministic init matching FlexibleFCNN._initialize_weights('kaiming')."""
    dims = [INPUT_DIM] + HIDDEN_DIMS
    params = []
    keys = jax.random.split(key, NUM_HIDDEN + 1)
    for i in range(NUM_HIDDEN):
        fan_in, fan_out = dims[i], dims[i + 1]
        std = (2.0 / fan_in) ** 0.5                      # kaiming_normal_, relu
        # PyTorch weight is (out, in); store pre-transposed as (in, out).
        w = jax.random.normal(keys[i], (fan_in, fan_out), jnp.float32) * std
        b = jnp.zeros((1, fan_out), jnp.float32)
        # BatchNorm1d eval: gamma=1, beta=0, running_mean=0, running_var=1
        bn_scale = jnp.full((1, fan_out), 1.0 / jnp.sqrt(1.0 + BN_EPS), jnp.float32)
        bn_shift = jnp.zeros((1, fan_out), jnp.float32)
        params += [w, b, bn_scale, bn_shift]
    fan_in = HIDDEN_DIMS[-1]
    std = (2.0 / fan_in) ** 0.5
    w_out = jax.random.normal(keys[-1], (fan_in, OUTPUT_DIM), jnp.float32) * std
    b_out = jnp.zeros((1, OUTPUT_DIM), jnp.float32)
    params += [w_out, b_out]
    return params


def reference_forward(x, params):
    """Pure-JAX f32 reference with the original (unfolded) semantics."""
    out = x
    for i in range(NUM_HIDDEN):
        w, b, s, t = params[4 * i: 4 * i + 4]
        out = out @ w + b
        out = out * s + t
        out = jnp.maximum(out, 0.0)
    return out @ params[-2] + params[-1]


if __name__ == "__main__":
    key = jax.random.PRNGKey(0)
    pkey, xkey = jax.random.split(key)
    params = init_params(pkey)

    B = 8   # small example batch; wrapper pads to the batch tile internally
    x = jax.random.normal(xkey, (B, INPUT_DIM), jnp.float32)

    y = flexible_fcnn_forward(x, params)
    y = jax.block_until_ready(y)

    y_ref = reference_forward(x, params)
    assert y.shape == (B, OUTPUT_DIM)
    # bf16 weights/activations on the MXU -> relaxed tolerance vs f32 reference.
    assert jnp.allclose(y, y_ref, atol=5e-2, rtol=5e-2), (
        f"max abs err {jnp.max(jnp.abs(y - y_ref))}")

    print("KERNEL_OK")
</pallas_src>

<mosaic_0001>
module attributes {stable_mosaic.version = 11 : i64} {
  func.func @_mlp_kernel(%arg0: i32, %arg1: memref<512x32xf32, #tpu.memory_space<vmem>>, %arg2: memref<32x512xbf16, #tpu.memory_space<vmem>>, %arg3: memref<1x512xf32, #tpu.memory_space<vmem>>, %arg4: memref<512x256xbf16, #tpu.memory_space<vmem>>, %arg5: memref<1x256xf32, #tpu.memory_space<vmem>>, %arg6: memref<256x128xbf16, #tpu.memory_space<vmem>>, %arg7: memref<1x128xf32, #tpu.memory_space<vmem>>, %arg8: memref<128x64xbf16, #tpu.memory_space<vmem>>, %arg9: memref<1x64xf32, #tpu.memory_space<vmem>>, %arg10: memref<64x128xbf16, #tpu.memory_space<vmem>>, %arg11: memref<1x128xf32, #tpu.memory_space<vmem>>, %arg12: memref<512x128xf32, #tpu.memory_space<vmem>>) attributes {dimension_semantics = [#tpu.dimension_semantics<parallel>], iteration_bounds = array<i64: 1>, scalar_prefetch = 0 : i64, scratch_operands = 0 : i64, tpu.core_type = #tpu.core_type<tc>, window_params = [{transform_indices = @transform_0, window_bounds = array<i64: 512, 32>}, {pipeline_mode = #tpu.pipeline_mode<synchronous>, transform_indices = @transform_1, window_bounds = array<i64: 32, 512>}, {pipeline_mode = #tpu.pipeline_mode<synchronous>, transform_indices = @transform_2, window_bounds = array<i64: 1, 512>}, {pipeline_mode = #tpu.pipeline_mode<synchronous>, transform_indices = @transform_3, window_bounds = array<i64: 512, 256>}, {pipeline_mode = #tpu.pipeline_mode<synchronous>, transform_indices = @transform_4, window_bounds = array<i64: 1, 256>}, {pipeline_mode = #tpu.pipeline_mode<synchronous>, transform_indices = @transform_5, window_bounds = array<i64: 256, 128>}, {pipeline_mode = #tpu.pipeline_mode<synchronous>, transform_indices = @transform_6, window_bounds = array<i64: 1, 128>}, {pipeline_mode = #tpu.pipeline_mode<synchronous>, transform_indices = @transform_7, window_bounds = array<i64: 128, 64>}, {pipeline_mode = #tpu.pipeline_mode<synchronous>, transform_indices = @transform_8, window_bounds = array<i64: 1, 64>}, {pipeline_mode = #tpu.pipeline_mode<synchronous>, transform_indices = @transform_9, window_bounds = array<i64: 64, 128>}, {pipeline_mode = #tpu.pipeline_mode<synchronous>, transform_indices = @transform_10, window_bounds = array<i64: 1, 128>}, {transform_indices = @transform_11, window_bounds = array<i64: 512, 128>}]} {
    %c0 = arith.constant 0 : index
    %c0_0 = arith.constant 0 : index
    %0 = vector.load %arg1[%c0, %c0_0] : memref<512x32xf32, #tpu.memory_space<vmem>>, vector<512x32xf32>
    %c0_1 = arith.constant 0 : index
    %c0_2 = arith.constant 0 : index
    %1 = vector.load %arg2[%c0_1, %c0_2] : memref<32x512xbf16, #tpu.memory_space<vmem>>, vector<32x512xbf16>
    %c0_3 = arith.constant 0 : index
    %c0_4 = arith.constant 0 : index
    %2 = vector.load %arg3[%c0_3, %c0_4] : memref<1x512xf32, #tpu.memory_space<vmem>>, vector<1x512xf32>
    %3 = arith.truncf %0 : vector<512x32xf32> to vector<512x32xbf16>
    %cst = arith.constant dense<0.000000e+00> : vector<512x512xf32>
    %4 = tpu.matmul %3, %1, %cst {dimension_numbers = #tpu.dot_dimension_numbers<[1], [0], [0], [1], [0, 0, 1, 1], [], []>} : vector<512x32xbf16>, vector<32x512xbf16>, vector<512x512xf32> -> vector<512x512xf32>
    %5 = vector.broadcast %2 : vector<1x512xf32> to vector<512x512xf32>
    %6 = arith.addf %4, %5 : vector<512x512xf32>
    %cst_5 = arith.constant 0.000000e+00 : f32
    %7 = vector.broadcast %cst_5 : f32 to vector<512x512xf32>
    %8 = arith.maximumf %6, %7 : vector<512x512xf32>
    %c0_6 = arith.constant 0 : index
    %c0_7 = arith.constant 0 : index
    %9 = vector.load %arg4[%c0_6, %c0_7] : memref<512x256xbf16, #tpu.memory_space<vmem>>, vector<512x256xbf16>
    %c0_8 = arith.constant 0 : index
    %c0_9 = arith.constant 0 : index
    %10 = vector.load %arg5[%c0_8, %c0_9] : memref<1x256xf32, #tpu.memory_space<vmem>>, vector<1x256xf32>
    %11 = arith.truncf %8 : vector<512x512xf32> to vector<512x512xbf16>
    %cst_10 = arith.constant dense<0.000000e+00> : vector<512x256xf32>
    %12 = tpu.matmul %11, %9, %cst_10 {dimension_numbers = #tpu.dot_dimension_numbers<[1], [0], [0], [1], [0, 0, 1, 1], [], []>} : vector<512x512xbf16>, vector<512x256xbf16>, vector<512x256xf32> -> vector<512x256xf32>
    %13 = vector.broadcast %10 : vector<1x256xf32> to vector<512x256xf32>
    %14 = arith.addf %12, %13 : vector<512x256xf32>
    %cst_11 = arith.constant 0.000000e+00 : f32
    %15 = vector.broadcast %cst_11 : f32 to vector<512x256xf32>
    %16 = arith.maximumf %14, %15 : vector<512x256xf32>
    %c0_12 = arith.constant 0 : index
    %c0_13 = arith.constant 0 : index
    %17 = vector.load %arg6[%c0_12, %c0_13] : memref<256x128xbf16, #tpu.memory_space<vmem>>, vector<256x128xbf16>
    %c0_14 = arith.constant 0 : index
    %c0_15 = arith.constant 0 : index
    %18 = vector.load %arg7[%c0_14, %c0_15] : memref<1x128xf32, #tpu.memory_space<vmem>>, vector<1x128xf32>
    %19 = arith.truncf %16 : vector<512x256xf32> to vector<512x256xbf16>
    %cst_16 = arith.constant dense<0.000000e+00> : vector<512x128xf32>
    %20 = tpu.matmul %19, %17, %cst_16 {dimension_numbers = #tpu.dot_dimension_numbers<[1], [0], [0], [1], [0, 0, 1, 1], [], []>} : vector<512x256xbf16>, vector<256x128xbf16>, vector<512x128xf32> -> vector<512x128xf32>
    %21 = vector.broadcast %18 : vector<1x128xf32> to vector<512x128xf32>
    %22 = arith.addf %20, %21 : vector<512x128xf32>
    %cst_17 = arith.constant 0.000000e+00 : f32
    %23 = vector.broadcast %cst_17 : f32 to vector<512x128xf32>
    %24 = arith.maximumf %22, %23 : vector<512x128xf32>
    %c0_18 = arith.constant 0 : index
    %c0_19 = arith.constant 0 : index
    %25 = vector.load %arg8[%c0_18, %c0_19] : memref<128x64xbf16, #tpu.memory_space<vmem>>, vector<128x64xbf16>
    %c0_20 = arith.constant 0 : index
    %c0_21 = arith.constant 0 : index
    %26 = vector.load %arg9[%c0_20, %c0_21] : memref<1x64xf32, #tpu.memory_space<vmem>>, vector<1x64xf32>
    %27 = arith.truncf %24 : vector<512x128xf32> to vector<512x128xbf16>
    %cst_22 = arith.constant dense<0.000000e+00> : vector<512x64xf32>
    %28 = tpu.matmul %27, %25, %cst_22 {dimension_numbers = #tpu.dot_dimension_numbers<[1], [0], [0], [1], [0, 0, 1, 1], [], []>} : vector<512x128xbf16>, vector<128x64xbf16>, vector<512x64xf32> -> vector<512x64xf32>
    %29 = vector.broadcast %26 : vector<1x64xf32> to vector<512x64xf32>
    %30 = arith.addf %28, %29 : vector<512x64xf32>
    %cst_23 = arith.constant 0.000000e+00 : f32
    %31 = vector.broadcast %cst_23 : f32 to vector<512x64xf32>
    %32 = arith.maximumf %30, %31 : vector<512x64xf32>
    %c0_24 = arith.constant 0 : index
    %c0_25 = arith.constant 0 : index
    %33 = vector.load %arg10[%c0_24, %c0_25] : memref<64x128xbf16, #tpu.memory_space<vmem>>, vector<64x128xbf16>
    %c0_26 = arith.constant 0 : index
    %c0_27 = arith.constant 0 : index
    %34 = vector.load %arg11[%c0_26, %c0_27] : memref<1x128xf32, #tpu.memory_space<vmem>>, vector<1x128xf32>
    %35 = arith.truncf %32 : vector<512x64xf32> to vector<512x64xbf16>
    %cst_28 = arith.constant dense<0.000000e+00> : vector<512x128xf32>
    %36 = tpu.matmul %35, %33, %cst_28 {dimension_numbers = #tpu.dot_dimension_numbers<[1], [0], [0], [1], [0, 0, 1, 1], [], []>} : vector<512x64xbf16>, vector<64x128xbf16>, vector<512x128xf32> -> vector<512x128xf32>
    %37 = vector.broadcast %34 : vector<1x128xf32> to vector<512x128xf32>
    %38 = arith.addf %36, %37 : vector<512x128xf32>
    %c0_29 = arith.constant 0 : index
    %c0_30 = arith.constant 0 : index
    %39 = vector.load %arg12[%c0_29, %c0_30] : memref<512x128xf32, #tpu.memory_space<vmem>>, vector<512x128xf32>
    tpu.vector_store %arg12[%c0_29, %c0_30], %38 {strides = array<i32>} : memref<512x128xf32, #tpu.memory_space<vmem>>, vector<512x128xf32>,
    return
  }
  func.func @transform_0(%arg0: i32) -> (i32, i32) {
    %c0_i32 = arith.constant 0 : i32
    %c0_i32_0 = arith.constant 0 : i32
    return %arg0, %c0_i32 : i32, i32
  }
  func.func @transform_1(%arg0: i32) -> (i32, i32) {
    %c0_i32 = arith.constant 0 : i32
    %c0_i32_0 = arith.constant 0 : i32
    %c0_i32_1 = arith.constant 0 : i32
    return %c0_i32, %c0_i32_0 : i32, i32
  }
  func.func @transform_2(%arg0: i32) -> (i32, i32) {
    %c0_i32 = arith.constant 0 : i32
    %c0_i32_0 = arith.constant 0 : i32
    %c0_i32_1 = arith.constant 0 : i32
    return %c0_i32, %c0_i32_0 : i32, i32
  }
  func.func @transform_3(%arg0: i32) -> (i32, i32) {
    %c0_i32 = arith.constant 0 : i32
    %c0_i32_0 = arith.constant 0 : i32
    %c0_i32_1 = arith.constant 0 : i32
    return %c0_i32, %c0_i32_0 : i32, i32
  }
  func.func @transform_4(%arg0: i32) -> (i32, i32) {
    %c0_i32 = arith.constant 0 : i32
    %c0_i32_0 = arith.constant 0 : i32
    %c0_i32_1 = arith.constant 0 : i32
    return %c0_i32, %c0_i32_0 : i32, i32
  }
  func.func @transform_5(%arg0: i32) -> (i32, i32) {
    %c0_i32 = arith.constant 0 : i32
    %c0_i32_0 = arith.constant 0 : i32
    %c0_i32_1 = arith.constant 0 : i32
    return %c0_i32, %c0_i32_0 : i32, i32
  }
  func.func @transform_6(%arg0: i32) -> (i32, i32) {
    %c0_i32 = arith.constant 0 : i32
    %c0_i32_0 = arith.constant 0 : i32
    %c0_i32_1 = arith.constant 0 : i32
    return %c0_i32, %c0_i32_0 : i32, i32
  }
  func.func @transform_7(%arg0: i32) -> (i32, i32) {
    %c0_i32 = arith.constant 0 : i32
    %c0_i32_0 = arith.constant 0 : i32
    %c0_i32_1 = arith.constant 0 : i32
    return %c0_i32, %c0_i32_0 : i32, i32
  }
  func.func @transform_8(%arg0: i32) -> (i32, i32) {
    %c0_i32 = arith.constant 0 : i32
    %c0_i32_0 = arith.constant 0 : i32
    %c0_i32_1 = arith.constant 0 : i32
    return %c0_i32, %c0_i32_0 : i32, i32
  }
  func.func @transform_9(%arg0: i32) -> (i32, i32) {
    %c0_i32 = arith.constant 0 : i32
    %c0_i32_0 = arith.constant 0 : i32
    %c0_i32_1 = arith.constant 0 : i32
    return %c0_i32, %c0_i32_0 : i32, i32
  }
  func.func @transform_10(%arg0: i32) -> (i32, i32) {
    %c0_i32 = arith.constant 0 : i32
    %c0_i32_0 = arith.constant 0 : i32
    %c0_i32_1 = arith.constant 0 : i32
    return %c0_i32, %c0_i32_0 : i32, i32
  }
  func.func @transform_11(%arg0: i32) -> (i32, i32) {
    %c0_i32 = arith.constant 0 : i32
    %c0_i32_0 = arith.constant 0 : i32
    return %arg0, %c0_i32 : i32, i32
  }
}

</mosaic_0001>

<llo_original>
// kernel: tpu_custom_call.1
$region0: #{tpu_custom_call.1}
  #allocation0 [shape = 'u32[]', space=smem, size = 0x4, offset = 0x4, fixed_abs, tag = 'smem constant byte address 0x4 - core index']
  #allocation1 [shape = 'u32[144,128]{1,0:T(1,128)}', space=vmem, size = 0x12000, scoped, tag = 'internal scratch']
  %s0 = inlined_call_operand.vmem [shape: f32[512,32], index: 0, kind: input, shape index: {}]
  %s1 = inlined_call_operand.vmem [shape: bf16[32,512], index: 1, kind: input, shape index: {}]
  %s2 = inlined_call_operand.vmem [shape: f32[1,512], index: 2, kind: input, shape index: {}]
  %s3 = inlined_call_operand.vmem [shape: bf16[512,256], index: 3, kind: input, shape index: {}]
  %s4 = inlined_call_operand.hbm [shape: f32[1,256], index: 4, kind: input, shape index: {}]
  %s5 = inlined_call_operand.vmem [shape: bf16[256,128], index: 5, kind: input, shape index: {}]
  %s6 = inlined_call_operand.vmem [shape: f32[1,128], index: 6, kind: input, shape index: {}]
  %s7 = inlined_call_operand.vmem [shape: bf16[128,64], index: 7, kind: input, shape index: {}]
  %s8 = inlined_call_operand.vmem [shape: f32[1,64], index: 8, kind: input, shape index: {}]
  %s9 = inlined_call_operand.vmem [shape: bf16[64,128], index: 9, kind: input, shape index: {}]
  %s10 = inlined_call_operand.vmem [shape: f32[1,128], index: 10, kind: input, shape index: {}]
  %s11 = inlined_call_operand.hbm [shape: f32[512,128], index: 11, kind: output, shape index: {}]
  %s12 = sld [smem:[#allocation0]]
  $region58: #{tpu_custom_call.1} parent=0
    _
  %s14 = ssub.s32 1, %s12
  %s15 = scalar_select 0, %s14, %s12
  $region1: #{tpu_custom_call.1} parent=0
    #allocation2 [shape = 'u8[1024]{0}', space=vmem, size = 0x400, scoped, tag = 'input window, operand 4, single buffered']
    #allocation3 [shape = 's32[1]{0}', space=sflag, size = 0x4, scoped, tag = 'scoped memory for tpu_custom_call.1']
    #allocation4 [shape = 's32[1]{0}', space=sflag, size = 0x4, scoped, tag = 'scoped memory for tpu_custom_call.1']
    #allocation5 [shape = 'u8[262144]{0}', space=vmem, size = 0x40000, scoped, tag = 'output window, operand 0, single buffered']
    %16 = vsyncpa [#allocation3], 0
    %17 = vsyncpa [#allocation4], 0
    // Predicated region
    $region2: #{tpu_custom_call.1} parent=1 // pred_check
      _
    $region3: #{tpu_custom_call.1} parent=1 // pred_check_branch
      %19 = sbr.rel (0) target = $region5
    $region4: #{tpu_custom_call.1} parent=1 // pred_region
      _
    $region5: #{tpu_custom_call.1} parent=1 // pred_fallthru
      _
    // Predicated region
    $region6: #{tpu_custom_call.1} parent=1 // pred_check
      _
    $region7: #{tpu_custom_call.1} parent=1 // pred_check_branch
      %21 = sbr.rel (0) target = $region9
    $region8: #{tpu_custom_call.1} parent=1 // pred_region
      _
    $region9: #{tpu_custom_call.1} parent=1 // pred_fallthru
      _
    // Predicated region
    $region10: #{tpu_custom_call.1} parent=1 // pred_check
      _
    $region11: #{tpu_custom_call.1} parent=1 // pred_check_branch
      %23 = sbr.rel (0) target = $region13
    $region12: #{tpu_custom_call.1} parent=1 // pred_region
      _
    $region13: #{tpu_custom_call.1} parent=1 // pred_fallthru
      _
    // Predicated region
    $region14: #{tpu_custom_call.1} parent=1 // pred_check
      _
    $region15: #{tpu_custom_call.1} parent=1 // pred_check_branch
      %25 = sbr.rel (0) target = $region17
    $region16: #{tpu_custom_call.1} parent=1 // pred_region
      _
    $region17: #{tpu_custom_call.1} parent=1 // pred_fallthru
      _
    // Predicated region
    $region18: #{tpu_custom_call.1} parent=1 // pred_check
      _
    $region19: #{tpu_custom_call.1} parent=1 // pred_check_branch
      %27 = sbr.rel (0) target = $region21
    $region20: #{tpu_custom_call.1} parent=1 // pred_region
      %s29 = ssub.s32 32, 32
      %30 = vsyncadd [#allocation3], %s29
      %s32 = sshll.u32 [#allocation2], 4
      %s33 = int_to_ptr.vmem [resolvable:$true] %s32
      %35 = dma.hbm_to_vmem [thread:$0]  %s4, 32, %s33, [#allocation3]
    $region21: #{tpu_custom_call.1} parent=1 // pred_fallthru
      _
    // Predicated region
    $region22: #{tpu_custom_call.1} parent=1 // pred_check
      _
    $region23: #{tpu_custom_call.1} parent=1 // pred_check_branch
      %37 = sbr.rel (0) target = $region25
    $region24: #{tpu_custom_call.1} parent=1 // pred_region
      _
    $region25: #{tpu_custom_call.1} parent=1 // pred_fallthru
      _
    // Predicated region
    $region26: #{tpu_custom_call.1} parent=1 // pred_check
      _
    $region27: #{tpu_custom_call.1} parent=1 // pred_check_branch
      %39 = sbr.rel (0) target = $region29
    $region28: #{tpu_custom_call.1} parent=1 // pred_region
      _
    $region29: #{tpu_custom_call.1} parent=1 // pred_fallthru
      _
    // Predicated region
    $region30: #{tpu_custom_call.1} parent=1 // pred_check
      _
    $region31: #{tpu_custom_call.1} parent=1 // pred_check_branch
      %41 = sbr.rel (0) target = $region33
    $region32: #{tpu_custom_call.1} parent=1 // pred_region
      _
    $region33: #{tpu_custom_call.1} parent=1 // pred_fallthru
      _
    // Predicated region
    $region34: #{tpu_custom_call.1} parent=1 // pred_check
      _
    $region35: #{tpu_custom_call.1} parent=1 // pred_check_branch
      %43 = sbr.rel (0) target = $region37
    $region36: #{tpu_custom_call.1} parent=1 // pred_region
      _
    $region37: #{tpu_custom_call.1} parent=1 // pred_fallthru
      _
    // Predicated region
    $region38: #{tpu_custom_call.1} parent=1 // pred_check
      _
    $region39: #{tpu_custom_call.1} parent=1 // pred_check_branch
      %45 = sbr.rel (0) target = $region41
    $region40: #{tpu_custom_call.1} parent=1 // pred_region
      _
    $region41: #{tpu_custom_call.1} parent=1 // pred_fallthru
      _
    // Predicated region
    $region42: #{tpu_custom_call.1} parent=1 // pred_check
      _
    $region43: #{tpu_custom_call.1} parent=1 // pred_check_branch
      %47 = sbr.rel (0) target = $region45
    $region44: #{tpu_custom_call.1} parent=1 // pred_region
      _
    $region45: #{tpu_custom_call.1} parent=1 // pred_fallthru
      _
    // Predicated region
    $region46: #{tpu_custom_call.1} parent=1 // pred_check
      _
    $region47: #{tpu_custom_call.1} parent=1 // pred_check_branch
      %49 = sbr.rel (0) target = $region49
    $region48: #{tpu_custom_call.1} parent=1 // pred_region
      %50 = dma.done [#allocation3], 32
    $region49: #{tpu_custom_call.1} parent=1 // pred_fallthru
      _
    %v52 = vld [vmem:[%s0] sm:$0xff]
    %v53 = vld [vmem:[%s0 + $0x8] sm:$0xff]
    %v54 = vld [vmem:[%s0 + $0x10] sm:$0xff]
    %v55 = vld [vmem:[%s0 + $0x18] sm:$0xff]
    %v56 = vld [vmem:[%s0 + $0x20] sm:$0xff]
    %v57 = vld [vmem:[%s0 + $0x28] sm:$0xff]
    %v58 = vld [vmem:[%s0 + $0x30] sm:$0xff]
    %v59 = vld [vmem:[%s0 + $0x38] sm:$0xff]
    %v60 = vld [vmem:[%s0 + $0x40] sm:$0xff]
    %v61 = vld [vmem:[%s0 + $0x48] sm:$0xff]
    %v62 = vld [vmem:[%s0 + $0x50] sm:$0xff]
    %v63 = vld [vmem:[%s0 + $0x58] sm:$0xff]
    %v64 = vld [vmem:[%s0 + $0x60] sm:$0xff]
    %v65 = vld [vmem:[%s0 + $0x68] sm:$0xff]
    %v66 = vld [vmem:[%s0 + $0x70] sm:$0xff]
    %v67 = vld [vmem:[%s0 + $0x78] sm:$0xff]
    %v68 = vld [vmem:[%s0 + $0x80] sm:$0xff]
    %v69 = vld [vmem:[%s0 + $0x88] sm:$0xff]
    %v70 = vld [vmem:[%s0 + $0x90] sm:$0xff]
    %v71 = vld [vmem:[%s0 + $0x98] sm:$0xff]
    %v72 = vld [vmem:[%s0 + $0xa0] sm:$0xff]
    %v73 = vld [vmem:[%s0 + $0xa8] sm:$0xff]
    %v74 = vld [vmem:[%s0 + $0xb0] sm:$0xff]
    %v75 = vld [vmem:[%s0 + $0xb8] sm:$0xff]
    %v76 = vld [vmem:[%s0 + $0xc0] sm:$0xff]
    %v77 = vld [vmem:[%s0 + $0xc8] sm:$0xff]
    %v78 = vld [vmem:[%s0 + $0xd0] sm:$0xff]
    %v79 = vld [vmem:[%s0 + $0xd8] sm:$0xff]
    %v80 = vld [vmem:[%s0 + $0xe0] sm:$0xff]
    %v81 = vld [vmem:[%s0 + $0xe8] sm:$0xff]
    %v82 = vld [vmem:[%s0 + $0xf0] sm:$0xff]
    %v83 = vld [vmem:[%s0 + $0xf8] sm:$0xff]
    %v84 = vld [vmem:[%s0 + $0x100] sm:$0xff]
    %v85 = vld [vmem:[%s0 + $0x108] sm:$0xff]
    %v86 = vld [vmem:[%s0 + $0x110] sm:$0xff]
    %v87 = vld [vmem:[%s0 + $0x118] sm:$0xff]
    %v88 = vld [vmem:[%s0 + $0x120] sm:$0xff]
    %v89 = vld [vmem:[%s0 + $0x128] sm:$0xff]
    %v90 = vld [vmem:[%s0 + $0x130] sm:$0xff]
    %v91 = vld [vmem:[%s0 + $0x138] sm:$0xff]
    %v92 = vld [vmem:[%s0 + $0x140] sm:$0xff]
    %v93 = vld [vmem:[%s0 + $0x148] sm:$0xff]
    %v94 = vld [vmem:[%s0 + $0x150] sm:$0xff]
    %v95 = vld [vmem:[%s0 + $0x158] sm:$0xff]
    %v96 = vld [vmem:[%s0 + $0x160] sm:$0xff]
    %v97 = vld [vmem:[%s0 + $0x168] sm:$0xff]
    %v98 = vld [vmem:[%s0 + $0x170] sm:$0xff]
    %v99 = vld [vmem:[%s0 + $0x178] sm:$0xff]
    %v100 = vld [vmem:[%s0 + $0x180] sm:$0xff]
    %v101 = vld [vmem:[%s0 + $0x188] sm:$0xff]
    %v102 = vld [vmem:[%s0 + $0x190] sm:$0xff]
    %v103 = vld [vmem:[%s0 + $0x198] sm:$0xff]
    %v104 = vld [vmem:[%s0 + $0x1a0] sm:$0xff]
    %v105 = vld [vmem:[%s0 + $0x1a8] sm:$0xff]
    %v106 = vld [vmem:[%s0 + $0x1b0] sm:$0xff]
    %v107 = vld [vmem:[%s0 + $0x1b8] sm:$0xff]
    %v108 = vld [vmem:[%s0 + $0x1c0] sm:$0xff]
    %v109 = vld [vmem:[%s0 + $0x1c8] sm:$0xff]
    %v110 = vld [vmem:[%s0 + $0x1d0] sm:$0xff]
    %v111 = vld [vmem:[%s0 + $0x1d8] sm:$0xff]
    %v112 = vld [vmem:[%s0 + $0x1e0] sm:$0xff]
    %v113 = vld [vmem:[%s0 + $0x1e8] sm:$0xff]
    %v114 = vld [vmem:[%s0 + $0x1f0] sm:$0xff]
    %v115 = vld [vmem:[%s0 + $0x1f8] sm:$0xff]
    %v116 = vld [vmem:[%s1] sm:$0xff]
    %v117 = vld [vmem:[%s1 + $0x8] sm:$0xff]
    %v118 = vld [vmem:[%s1 + $0x10] sm:$0xff]
    %v119 = vld [vmem:[%s1 + $0x18] sm:$0xff]
    %v120 = vld [vmem:[%s1 + $0x20] sm:$0xff]
    %v121 = vld [vmem:[%s1 + $0x28] sm:$0xff]
    %v122 = vld [vmem:[%s1 + $0x30] sm:$0xff]
    %v123 = vld [vmem:[%s1 + $0x38] sm:$0xff]
    %v124 = vld [vmem:[%s2] sm:$0xf]
    %v125 = vpack.c.bf16 %v53, %v52
    %v126 = vpack.c.bf16 %v55, %v54
    %v127 = vpack.c.bf16 %v57, %v56
    %v128 = vpack.c.bf16 %v59, %v58
    %v129 = vpack.c.bf16 %v61, %v60
    %v130 = vpack.c.bf16 %v63, %v62
    %v131 = vpack.c.bf16 %v65, %v64
    %v132 = vpack.c.bf16 %v67, %v66
    %v133 = vpack.c.bf16 %v69, %v68
    %v134 = vpack.c.bf16 %v71, %v70
    %v135 = vpack.c.bf16 %v73, %v72
    %v136 = vpack.c.bf16 %v75, %v74
    %v137 = vpack.c.bf16 %v77, %v76
    %v138 = vpack.c.bf16 %v79, %v78
    %v139 = vpack.c.bf16 %v81, %v80
    %v140 = vpack.c.bf16 %v83, %v82
    %v141 = vpack.c.bf16 %v85, %v84
    %v142 = vpack.c.bf16 %v87, %v86
    %v143 = vpack.c.bf16 %v89, %v88
    %v144 = vpack.c.bf16 %v91, %v90
    %v145 = vpack.c.bf16 %v93, %v92
    %v146 = vpack.c.bf16 %v95, %v94
    %v147 = vpack.c.bf16 %v97, %v96
    %v148 = vpack.c.bf16 %v99, %v98
    %v149 = vpack.c.bf16 %v101, %v100
    %v150 = vpack.c.bf16 %v103, %v102
    %v151 = vpack.c.bf16 %v105, %v104
    %v152 = vpack.c.bf16 %v107, %v106
    %v153 = vpack.c.bf16 %v109, %v108
    %v154 = vpack.c.bf16 %v111, %v110
    %v155 = vpack.c.bf16 %v113, %v112
    %v156 = vpack.c.bf16 %v115, %v114
    %v158 = vlaneseq
    %v159 = vshrl.u32 %v158, 7
    %v160 = vsub.s32 0, %v159
    %v161 = vrot.slane %v124, %v160
    %v162 = vlaneseq
    %v163 = vshrl.u32 %v162, 7
    %v164 = vsub.s32 1, %v163
    %v165 = vrot.slane %v124, %v164
    %v166 = vlaneseq
    %v167 = vshrl.u32 %v166, 7
    %v168 = vsub.s32 2, %v167
    %v169 = vrot.slane %v124, %v168
    %v170 = vlaneseq
    %v171 = vshrl.u32 %v170, 7
    %v172 = vsub.s32 3, %v171
    %v173 = vrot.slane %v124, %v172
    %v186 = vunpack.c.l.b16 %v116
    %v187 = vunpack.c.h.b16 %v116
    %v188 = vunpack.c.l.b16 %v117
    %v189 = vunpack.c.h.b16 %v117
    %v190 = vunpack.c.l.b16 %v118
    %v191 = vunpack.c.h.b16 %v118
    %v192 = vunpack.c.l.b16 %v119
    %v193 = vunpack.c.h.b16 %v119
    %v194 = vunpack.c.l.b16 %v120
    %v195 = vunpack.c.h.b16 %v120
    %v196 = vunpack.c.l.b16 %v121
    %v197 = vunpack.c.h.b16 %v121
    %v198 = vunpack.c.l.b16 %v122
    %v199 = vunpack.c.h.b16 %v122
    %v200 = vunpack.c.l.b16 %v123
    %v201 = vunpack.c.h.b16 %v123
    %v202 = vpack.c.b16 %v190, %v186
    %v203 = vpack.c.b16 %v191, %v187
    %v204 = vpack.c.b16 %v192, %v188
    %v205 = vpack.c.b16 %v193, %v189
    %v206 = vpack.c.b16 %v198, %v194
    %v207 = vpack.c.b16 %v199, %v195
    %v208 = vpack.c.b16 %v200, %v196
    %v209 = vpack.c.b16 %v201, %v197
    %vm218 = vcmask 261120
    %v220 = vsel %vm218, %v125, 0
    %v223 = vsel %vm218, %v126, 0
    %v226 = vsel %vm218, %v127, 0
    %v229 = vsel %vm218, %v128, 0
    %v232 = vsel %vm218, %v129, 0
    %v235 = vsel %vm218, %v130, 0
    %v238 = vsel %vm218, %v131, 0
    %v241 = vsel %vm218, %v132, 0
    %v244 = vsel %vm218, %v133, 0
    %v247 = vsel %vm218, %v134, 0
    %v250 = vsel %vm218, %v135, 0
    %v253 = vsel %vm218, %v136, 0
    %v256 = vsel %vm218, %v137, 0
    %v259 = vsel %vm218, %v138, 0
    %v262 = vsel %vm218, %v139, 0
    %v265 = vsel %vm218, %v140, 0
    %v268 = vsel %vm218, %v141, 0
    %v271 = vsel %vm218, %v142, 0
    %v274 = vsel %vm218, %v143, 0
    %v277 = vsel %vm218, %v144, 0
    %v280 = vsel %vm218, %v145, 0
    %v283 = vsel %vm218, %v146, 0
    %v286 = vsel %vm218, %v147, 0
    %v289 = vsel %vm218, %v148, 0
    %v292 = vsel %vm218, %v149, 0
    %v295 = vsel %vm218, %v150, 0
    %v298 = vsel %vm218, %v151, 0
    %v301 = vsel %vm218, %v152, 0
    %v304 = vsel %vm218, %v153, 0
    %v307 = vsel %vm218, %v154, 0
    %v310 = vsel %vm218, %v155, 0
    %v313 = vsel %vm218, %v156, 0
    %315 = vmatprep.subr.bf16.mxu0 0
    %316 = vmatpush1.bf16.msra.mxu0 0
    %317 = vmatprep.subr.bf16.mxu0 0
    %318 = vmatpush1.bf16.msra.mxu0 0
    %319 = vmatprep.subr.bf16.mxu0 0
    %320 = vmatpush1.bf16.msra.mxu0 0
    %321 = vmatprep.subr.bf16.mxu0 0
    %322 = vmatpush1.bf16.msra.mxu0 0
    %323 = vmatprep.subr.bf16.mxu0 0
    %324 = vmatpush1.bf16.msra.mxu0 0
    %325 = vmatprep.subr.bf16.mxu0 0
    %326 = vmatpush1.bf16.msra.mxu0 0
    %327 = vmatprep.subr.bf16.mxu0 %v207
    %328 = vmatpush1.bf16.msra.mxu0 %v206
    %329 = vmatprep.subr.bf16.mxu0 %v203
    %330 = vmatpush1.bf16.msra.mxu0 %v202
    %331 = vmatprep.subr.bf16.mxu0 0
    %332 = vmatpush2.bf16.msra.mxu0 0
    %333 = vmatprep.subr.bf16.mxu0 0
    %334 = vmatpush2.bf16.msra.mxu0 0
    %335 = vmatprep.subr.bf16.mxu0 0
    %336 = vmatpush2.bf16.msra.mxu0 0
    %337 = vmatprep.subr.bf16.mxu0 0
    %338 = vmatpush2.bf16.msra.mxu0 0
    %339 = vmatprep.subr.bf16.mxu0 0
    %340 = vmatpush2.bf16.msra.mxu0 0
    %341 = vmatprep.subr.bf16.mxu0 0
    %342 = vmatpush2.bf16.msra.mxu0 0
    %343 = vmatprep.subr.bf16.mxu0 0
    %344 = vmatpush2.bf16.msra.mxu0 0
    %345 = vmatprep.subr.bf16.mxu0 0
    %346 = vmatpush2.bf16.msra.mxu0 0
    %347 = vmatprep.mubr.bf16.mxu0 0
    %348 = vmatmul.mubr.bf16.gmra.mxu0 %v220
    %v349 = vpop.f32.mrf.mxu0
    %v350 = vadd.f32 %v161, %v349
    %v351 = vpop.f32.mrf.mxu0
    %v352 = vadd.f32 %v165, %v351
    %v353 = vpop.f32.mrf.mxu0
    %v354 = vadd.f32 %v161, %v353
    %v355 = vpop.f32.mrf.mxu0
    %v356 = vadd.f32 %v165, %v355
    %357 = vmatprep.mubr.bf16.mxu0 0
    %358 = vmatmul.mubr.bf16.gmra.mxu0 %v223
    %v359 = vpop.f32.mrf.mxu0
    %v360 = vadd.f32 %v161, %v359
    %v361 = vpop.f32.mrf.mxu0
    %v362 = vadd.f32 %v165, %v361
    %v363 = vpop.f32.mrf.mxu0
    %v364 = vadd.f32 %v161, %v363
    %v365 = vpop.f32.mrf.mxu0
    %v366 = vadd.f32 %v165, %v365
    %367 = vmatprep.mubr.bf16.mxu0 0
    %368 = vmatmul.mubr.bf16.gmra.mxu0 %v226
    %v369 = vpop.f32.mrf.mxu0
    %v370 = vadd.f32 %v161, %v369
    %v371 = vpop.f32.mrf.mxu0
    %v372 = vadd.f32 %v165, %v371
    %v373 = vpop.f32.mrf.mxu0
    %v374 = vadd.f32 %v161, %v373
    %v375 = vpop.f32.mrf.mxu0
    %v376 = vadd.f32 %v165, %v375
    %377 = vmatprep.mubr.bf16.mxu0 0
    %378 = vmatmul.mubr.bf16.gmra.mxu0 %v229
    %v379 = vpop.f32.mrf.mxu0
    %v380 = vadd.f32 %v161, %v379
    %v381 = vpop.f32.mrf.mxu0
    %v382 = vadd.f32 %v165, %v381
    %v383 = vpop.f32.mrf.mxu0
    %v384 = vadd.f32 %v161, %v383
    %v385 = vpop.f32.mrf.mxu0
    %v386 = vadd.f32 %v165, %v385
    %387 = vmatprep.mubr.bf16.mxu0 0
    %388 = vmatmul.mubr.bf16.gmra.mxu0 %v232
    %v389 = vpop.f32.mrf.mxu0
    %v390 = vadd.f32 %v161, %v389
    %v391 = vpop.f32.mrf.mxu0
    %v392 = vadd.f32 %v165, %v391
    %v393 = vpop.f32.mrf.mxu0
    %v394 = vadd.f32 %v161, %v393
    %v395 = vpop.f32.mrf.mxu0
    %v396 = vadd.f32 %v165, %v395
    %397 = vmatprep.mubr.bf16.mxu0 0
    %398 = vmatmul.mubr.bf16.gmra.mxu0 %v235
    %v399 = vpop.f32.mrf.mxu0
    %v400 = vadd.f32 %v161, %v399
    %v401 = vpop.f32.mrf.mxu0
    %v402 = vadd.f32 %v165, %v401
    %v403 = vpop.f32.mrf.mxu0
    %v404 = vadd.f32 %v161, %v403
    %v405 = vpop.f32.mrf.mxu0
    %v406 = vadd.f32 %v165, %v405
    %407 = vmatprep.mubr.bf16.mxu0 0
    %408 = vmatmul.mubr.bf16.gmra.mxu0 %v238
    %v409 = vpop.f32.mrf.mxu0
    %v410 = vadd.f32 %v161, %v409
    %v411 = vpop.f32.mrf.mxu0
    %v412 = vadd.f32 %v165, %v411
    %v413 = vpop.f32.mrf.mxu0
    %v414 = vadd.f32 %v161, %v413
    %v415 = vpop.f32.mrf.mxu0
    %v416 = vadd.f32 %v165, %v415
    %417 = vmatprep.mubr.bf16.mxu0 0
    %418 = vmatmul.mubr.bf16.gmra.mxu0 %v241
    %v419 = vpop.f32.mrf.mxu0
    %v420 = vadd.f32 %v161, %v419
    %v421 = vpop.f32.mrf.mxu0
    %v422 = vadd.f32 %v165, %v421
    %v423 = vpop.f32.mrf.mxu0
    %v424 = vadd.f32 %v161, %v423
    %v425 = vpop.f32.mrf.mxu0
    %v426 = vadd.f32 %v165, %v425
    %427 = vmatprep.mubr.bf16.mxu0 0
    %428 = vmatmul.mubr.bf16.gmra.mxu0 %v244
    %v429 = vpop.f32.mrf.mxu0
    %v430 = vadd.f32 %v161, %v429
    %v431 = vpop.f32.mrf.mxu0
    %v432 = vadd.f32 %v165, %v431
    %v433 = vpop.f32.mrf.mxu0
    %v434 = vadd.f32 %v161, %v433
    %v435 = vpop.f32.mrf.mxu0
    %v436 = vadd.f32 %v165, %v435
    %437 = vmatprep.mubr.bf16.mxu0 0
    %438 = vmatmul.mubr.bf16.gmra.mxu0 %v247
    %v439 = vpop.f32.mrf.mxu0
    %v440 = vadd.f32 %v161, %v439
    %v441 = vpop.f32.mrf.mxu0
    %v442 = vadd.f32 %v165, %v441
    %v443 = vpop.f32.mrf.mxu0
    %v444 = vadd.f32 %v161, %v443
    %v445 = vpop.f32.mrf.mxu0
    %v446 = vadd.f32 %v165, %v445
    %447 = vmatprep.mubr.bf16.mxu0 0
    %448 = vmatmul.mubr.bf16.gmra.mxu0 %v250
    %v449 = vpop.f32.mrf.mxu0
    %v450 = vadd.f32 %v161, %v449
    %v451 = vpop.f32.mrf.mxu0
    %v452 = vadd.f32 %v165, %v451
    %v453 = vpop.f32.mrf.mxu0
    %v454 = vadd.f32 %v161, %v453
    %v455 = vpop.f32.mrf.mxu0
    %v456 = vadd.f32 %v165, %v455
    %457 = vmatprep.mubr.bf16.mxu0 0
    %458 = vmatmul.mubr.bf16.gmra.mxu0 %v253
    %v459 = vpop.f32.mrf.mxu0
    %v460 = vadd.f32 %v161, %v459
    %v461 = vpop.f32.mrf.mxu0
    %v462 = vadd.f32 %v165, %v461
    %v463 = vpop.f32.mrf.mxu0
    %v464 = vadd.f32 %v161, %v463
    %v465 = vpop.f32.mrf.mxu0
    %v466 = vadd.f32 %v165, %v465
    %467 = vmatprep.mubr.bf16.mxu0 0
    %468 = vmatmul.mubr.bf16.gmra.mxu0 %v256
    %v469 = vpop.f32.mrf.mxu0
    %v470 = vadd.f32 %v161, %v469
    %v471 = vpop.f32.mrf.mxu0
    %v472 = vadd.f32 %v165, %v471
    %v473 = vpop.f32.mrf.mxu0
    %v474 = vadd.f32 %v161, %v473
    %v475 = vpop.f32.mrf.mxu0
    %v476 = vadd.f32 %v165, %v475
    %477 = vmatprep.mubr.bf16.mxu0 0
    %478 = vmatmul.mubr.bf16.gmra.mxu0 %v259
    %v479 = vpop.f32.mrf.mxu0
    %v480 = vadd.f32 %v161, %v479
    %v481 = vpop.f32.mrf.mxu0
    %v482 = vadd.f32 %v165, %v481
    %v483 = vpop.f32.mrf.mxu0
    %v484 = vadd.f32 %v161, %v483
    %v485 = vpop.f32.mrf.mxu0
    %v486 = vadd.f32 %v165, %v485
    %487 = vmatprep.mubr.bf16.mxu0 0
    %488 = vmatmul.mubr.bf16.gmra.mxu0 %v262
    %v489 = vpop.f32.mrf.mxu0
    %v490 = vadd.f32 %v161, %v489
    %v491 = vpop.f32.mrf.mxu0
    %v492 = vadd.f32 %v165, %v491
    %v493 = vpop.f32.mrf.mxu0
    %v494 = vadd.f32 %v161, %v493
    %v495 = vpop.f32.mrf.mxu0
    %v496 = vadd.f32 %v165, %v495
    %497 = vmatprep.mubr.bf16.mxu0 0
    %498 = vmatmul.mubr.bf16.gmra.mxu0 %v265
    %v499 = vpop.f32.mrf.mxu0
    %v500 = vadd.f32 %v161, %v499
    %v501 = vpop.f32.mrf.mxu0
    %v502 = vadd.f32 %v165, %v501
    %v503 = vpop.f32.mrf.mxu0
    %v504 = vadd.f32 %v161, %v503
    %v505 = vpop.f32.mrf.mxu0
    %v506 = vadd.f32 %v165, %v505
    %507 = vmatprep.mubr.bf16.mxu0 0
    %508 = vmatmul.mubr.bf16.gmra.mxu0 %v268
    %v509 = vpop.f32.mrf.mxu0
    %v510 = vadd.f32 %v161, %v509
    %v511 = vpop.f32.mrf.mxu0
    %v512 = vadd.f32 %v165, %v511
    %v513 = vpop.f32.mrf.mxu0
    %v514 = vadd.f32 %v161, %v513
    %v515 = vpop.f32.mrf.mxu0
    %v516 = vadd.f32 %v165, %v515
    %517 = vmatprep.mubr.bf16.mxu0 0
    %518 = vmatmul.mubr.bf16.gmra.mxu0 %v271
    %v519 = vpop.f32.mrf.mxu0
    %v520 = vadd.f32 %v161, %v519
    %v521 = vpop.f32.mrf.mxu0
    %v522 = vadd.f32 %v165, %v521
    %v523 = vpop.f32.mrf.mxu0
    %v524 = vadd.f32 %v161, %v523
    %v525 = vpop.f32.mrf.mxu0
    %v526 = vadd.f32 %v165, %v525
    %527 = vmatprep.mubr.bf16.mxu0 0
    %528 = vmatmul.mubr.bf16.gmra.mxu0 %v274
    %v529 = vpop.f32.mrf.mxu0
    %v530 = vadd.f32 %v161, %v529
    %v531 = vpop.f32.mrf.mxu0
    %v532 = vadd.f32 %v165, %v531
    %v533 = vpop.f32.mrf.mxu0
    %v534 = vadd.f32 %v161, %v533
    %v535 = vpop.f32.mrf.mxu0
    %v536 = vadd.f32 %v165, %v535
    %537 = vmatprep.mubr.bf16.mxu0 0
    %538 = vmatmul.mubr.bf16.gmra.mxu0 %v277
    %v539 = vpop.f32.mrf.mxu0
    %v540 = vadd.f32 %v161, %v539
    %v541 = vpop.f32.mrf.mxu0
    %v542 = vadd.f32 %v165, %v541
    %v543 = vpop.f32.mrf.mxu0
    %v544 = vadd.f32 %v161, %v543
    %v545 = vpop.f32.mrf.mxu0
    %v546 = vadd.f32 %v165, %v545
    %547 = vmatprep.mubr.bf16.mxu0 0
    %548 = vmatmul.mubr.bf16.gmra.mxu0 %v280
    %v549 = vpop.f32.mrf.mxu0
    %v550 = vadd.f32 %v161, %v549
    %v551 = vpop.f32.mrf.mxu0
    %v552 = vadd.f32 %v165, %v551
    %v553 = vpop.f32.mrf.mxu0
    %v554 = vadd.f32 %v161, %v553
    %v555 = vpop.f32.mrf.mxu0
    %v556 = vadd.f32 %v165, %v555
    %557 = vmatprep.mubr.bf16.mxu0 0
    %558 = vmatmul.mubr.bf16.gmra.mxu0 %v283
    %v559 = vpop.f32.mrf.mxu0
    %v560 = vadd.f32 %v161, %v559
    %v561 = vpop.f32.mrf.mxu0
    %v562 = vadd.f32 %v165, %v561
    %v563 = vpop.f32.mrf.mxu0
    %v564 = vadd.f32 %v161, %v563
    %v565 = vpop.f32.mrf.mxu0
    %v566 = vadd.f32 %v165, %v565
    %567 = vmatprep.mubr.bf16.mxu0 0
    %568 = vmatmul.mubr.bf16.gmra.mxu0 %v286
    %v569 = vpop.f32.mrf.mxu0
    %v570 = vadd.f32 %v161, %v569
    %v571 = vpop.f32.mrf.mxu0
    %v572 = vadd.f32 %v165, %v571
    %v573 = vpop.f32.mrf.mxu0
    %v574 = vadd.f32 %v161, %v573
    %v575 = vpop.f32.mrf.mxu0
    %v576 = vadd.f32 %v165, %v575
    %577 = vmatprep.mubr.bf16.mxu0 0
    %578 = vmatmul.mubr.bf16.gmra.mxu0 %v289
    %v579 = vpop.f32.mrf.mxu0
    %v580 = vadd.f32 %v161, %v579
    %v581 = vpop.f32.mrf.mxu0
    %v582 = vadd.f32 %v165, %v581
    %v583 = vpop.f32.mrf.mxu0
    %v584 = vadd.f32 %v161, %v583
    %v585 = vpop.f32.mrf.mxu0
    %v586 = vadd.f32 %v165, %v585
    %587 = vmatprep.mubr.bf16.mxu0 0
    %588 = vmatmul.mubr.bf16.gmra.mxu0 %v292
    %v589 = vpop.f32.mrf.mxu0
    %v590 = vadd.f32 %v161, %v589
    %v591 = vpop.f32.mrf.mxu0
    %v592 = vadd.f32 %v165, %v591
    %v593 = vpop.f32.mrf.mxu0
    %v594 = vadd.f32 %v161, %v593
    %v595 = vpop.f32.mrf.mxu0
    %v596 = vadd.f32 %v165, %v595
    %597 = vmatprep.mubr.bf16.mxu0 0
    %598 = vmatmul.mubr.bf16.gmra.mxu0 %v295
    %v599 = vpop.f32.mrf.mxu0
    %v600 = vadd.f32 %v161, %v599
    %v601 = vpop.f32.mrf.mxu0
    %v602 = vadd.f32 %v165, %v601
    %v603 = vpop.f32.mrf.mxu0
    %v604 = vadd.f32 %v161, %v603
    %v605 = vpop.f32.mrf.mxu0
    %v606 = vadd.f32 %v165, %v605
    %607 = vmatprep.mubr.bf16.mxu0 0
    %608 = vmatmul.mubr.bf16.gmra.mxu0 %v298
    %v609 = vpop.f32.mrf.mxu0
    %v610 = vadd.f32 %v161, %v609
    %v611 = vpop.f32.mrf.mxu0
    %v612 = vadd.f32 %v165, %v611
    %v613 = vpop.f32.mrf.mxu0
    %v614 = vadd.f32 %v161, %v613
    %v615 = vpop.f32.mrf.mxu0
    %v616 = vadd.f32 %v165, %v615
    %617 = vmatprep.mubr.bf16.mxu0 0
    %618 = vmatmul.mubr.bf16.gmra.mxu0 %v301
    %v619 = vpop.f32.mrf.mxu0
    %v620 = vadd.f32 %v161, %v619
    %v621 = vpop.f32.mrf.mxu0
    %v622 = vadd.f32 %v165, %v621
    %v623 = vpop.f32.mrf.mxu0
    %v624 = vadd.f32 %v161, %v623
    %v625 = vpop.f32.mrf.mxu0
    %v626 = vadd.f32 %v165, %v625
    %627 = vmatprep.mubr.bf16.mxu0 0
    %628 = vmatmul.mubr.bf16.gmra.mxu0 %v304
    %v629 = vpop.f32.mrf.mxu0
    %v630 = vadd.f32 %v161, %v629
    %v631 = vpop.f32.mrf.mxu0
    %v632 = vadd.f32 %v165, %v631
    %v633 = vpop.f32.mrf.mxu0
    %v634 = vadd.f32 %v161, %v633
    %v635 = vpop.f32.mrf.mxu0
    %v636 = vadd.f32 %v165, %v635
    %637 = vmatprep.mubr.bf16.mxu0 0
    %638 = vmatmul.mubr.bf16.gmra.mxu0 %v307
    %v639 = vpop.f32.mrf.mxu0
    %v640 = vadd.f32 %v161, %v639
    %v641 = vpop.f32.mrf.mxu0
    %v642 = vadd.f32 %v165, %v641
    %v643 = vpop.f32.mrf.mxu0
    %v644 = vadd.f32 %v161, %v643
    %v645 = vpop.f32.mrf.mxu0
    %v646 = vadd.f32 %v165, %v645
    %647 = vmatprep.mubr.bf16.mxu0 0
    %648 = vmatmul.mubr.bf16.gmra.mxu0 %v310
    %v649 = vpop.f32.mrf.mxu0
    %v650 = vadd.f32 %v161, %v649
    %v651 = vpop.f32.mrf.mxu0
    %v652 = vadd.f32 %v165, %v651
    %v653 = vpop.f32.mrf.mxu0
    %v654 = vadd.f32 %v161, %v653
    %v655 = vpop.f32.mrf.mxu0
    %v656 = vadd.f32 %v165, %v655
    %657 = vmatprep.mubr.bf16.mxu0 0
    %658 = vmatmul.mubr.bf16.gmra.mxu0 %v313
    %v659 = vpop.f32.mrf.mxu0
    %v660 = vadd.f32 %v161, %v659
    %v661 = vpop.f32.mrf.mxu0
    %v662 = vadd.f32 %v165, %v661
    %v663 = vpop.f32.mrf.mxu0
    %v664 = vadd.f32 %v161, %v663
    %v665 = vpop.f32.mrf.mxu0
    %v666 = vadd.f32 %v165, %v665
    %667 = vdwg.mxu0
    %668 = vmatprep.subr.bf16.mxu0 0
    %669 = vmatpush1.bf16.msra.mxu0 0
    %670 = vmatprep.subr.bf16.mxu0 0
    %671 = vmatpush1.bf16.msra.mxu0 0
    %672 = vmatprep.subr.bf16.mxu0 0
    %673 = vmatpush1.bf16.msra.mxu0 0
    %674 = vmatprep.subr.bf16.mxu0 0
    %675 = vmatpush1.bf16.msra.mxu0 0
    %676 = vmatprep.subr.bf16.mxu0 0
    %677 = vmatpush1.bf16.msra.mxu0 0
    %678 = vmatprep.subr.bf16.mxu0 0
    %679 = vmatpush1.bf16.msra.mxu0 0
    %680 = vmatprep.subr.bf16.mxu0 %v209
    %681 = vmatpush1.bf16.msra.mxu0 %v208
    %682 = vmatprep.subr.bf16.mxu0 %v205
    %683 = vmatpush1.bf16.msra.mxu0 %v204
    %684 = vmatprep.subr.bf16.mxu0 0
    %685 = vmatpush2.bf16.msra.mxu0 0
    %686 = vmatprep.subr.bf16.mxu0 0
    %687 = vmatpush2.bf16.msra.mxu0 0
    %688 = vmatprep.subr.bf16.mxu0 0
    %689 = vmatpush2.bf16.msra.mxu0 0
    %690 = vmatprep.subr.bf16.mxu0 0
    %691 = vmatpush2.bf16.msra.mxu0 0
    %692 = vmatprep.subr.bf16.mxu0 0
    %693 = vmatpush2.bf16.msra.mxu0 0
    %694 = vmatprep.subr.bf16.mxu0 0
    %695 = vmatpush2.bf16.msra.mxu0 0
    %696 = vmatprep.subr.bf16.mxu0 0
    %697 = vmatpush2.bf16.msra.mxu0 0
    %698 = vmatprep.subr.bf16.mxu0 0
    %699 = vmatpush2.bf16.msra.mxu0 0
    %700 = vmatprep.mubr.bf16.mxu0 0
    %701 = vmatmul.mubr.bf16.gmra.mxu0 %v220
    %v702 = vpop.f32.mrf.mxu0
    %v703 = vadd.f32 %v169, %v702
    %v704 = vpop.f32.mrf.mxu0
    %v705 = vadd.f32 %v173, %v704
    %v706 = vpop.f32.mrf.mxu0
    %v707 = vadd.f32 %v169, %v706
    %v708 = vpop.f32.mrf.mxu0
    %v709 = vadd.f32 %v173, %v708
    %710 = vmatprep.mubr.bf16.mxu0 0
    %711 = vmatmul.mubr.bf16.gmra.mxu0 %v223
    %v712 = vpop.f32.mrf.mxu0
    %v713 = vadd.f32 %v169, %v712
    %v714 = vpop.f32.mrf.mxu0
    %v715 = vadd.f32 %v173, %v714
    %v716 = vpop.f32.mrf.mxu0
    %v717 = vadd.f32 %v169, %v716
    %v718 = vpop.f32.mrf.mxu0
    %v719 = vadd.f32 %v173, %v718
    %720 = vmatprep.mubr.bf16.mxu0 0
    %721 = vmatmul.mubr.bf16.gmra.mxu0 %v226
    %v722 = vpop.f32.mrf.mxu0
    %v723 = vadd.f32 %v169, %v722
    %v724 = vpop.f32.mrf.mxu0
    %v725 = vadd.f32 %v173, %v724
    %v726 = vpop.f32.mrf.mxu0
    %v727 = vadd.f32 %v169, %v726
    %v728 = vpop.f32.mrf.mxu0
    %v729 = vadd.f32 %v173, %v728
    %730 = vmatprep.mubr.bf16.mxu0 0
    %731 = vmatmul.mubr.bf16.gmra.mxu0 %v229
    %v732 = vpop.f32.mrf.mxu0
    %v733 = vadd.f32 %v169, %v732
    %v734 = vpop.f32.mrf.mxu0
    %v735 = vadd.f32 %v173, %v734
    %v736 = vpop.f32.mrf.mxu0
    %v737 = vadd.f32 %v169, %v736
    %v738 = vpop.f32.mrf.mxu0
    %v739 = vadd.f32 %v173, %v738
    %740 = vmatprep.mubr.bf16.mxu0 0
    %741 = vmatmul.mubr.bf16.gmra.mxu0 %v232
    %v742 = vpop.f32.mrf.mxu0
    %v743 = vadd.f32 %v169, %v742
    %v744 = vpop.f32.mrf.mxu0
    %v745 = vadd.f32 %v173, %v744
    %v746 = vpop.f32.mrf.mxu0
    %v747 = vadd.f32 %v169, %v746
    %v748 = vpop.f32.mrf.mxu0
    %v749 = vadd.f32 %v173, %v748
    %750 = vmatprep.mubr.bf16.mxu0 0
    %751 = vmatmul.mubr.bf16.gmra.mxu0 %v235
    %v752 = vpop.f32.mrf.mxu0
    %v753 = vadd.f32 %v169, %v752
    %v754 = vpop.f32.mrf.mxu0
    %v755 = vadd.f32 %v173, %v754
    %v756 = vpop.f32.mrf.mxu0
    %v757 = vadd.f32 %v169, %v756
    %v758 = vpop.f32.mrf.mxu0
    %v759 = vadd.f32 %v173, %v758
    %760 = vmatprep.mubr.bf16.mxu0 0
    %761 = vmatmul.mubr.bf16.gmra.mxu0 %v238
    %v762 = vpop.f32.mrf.mxu0
    %v763 = vadd.f32 %v169, %v762
    %v764 = vpop.f32.mrf.mxu0
    %v765 = vadd.f32 %v173, %v764
    %v766 = vpop.f32.mrf.mxu0
    %v767 = vadd.f32 %v169, %v766
    %v768 = vpop.f32.mrf.mxu0
    %v769 = vadd.f32 %v173, %v768
    %770 = vmatprep.mubr.bf16.mxu0 0
    %771 = vmatmul.mubr.bf16.gmra.mxu0 %v241
    %v772 = vpop.f32.mrf.mxu0
    %v773 = vadd.f32 %v169, %v772
    %v774 = vpop.f32.mrf.mxu0
    %v775 = vadd.f32 %v173, %v774
    %v776 = vpop.f32.mrf.mxu0
    %v777 = vadd.f32 %v169, %v776
    %v778 = vpop.f32.mrf.mxu0
    %v779 = vadd.f32 %v173, %v778
    %780 = vmatprep.mubr.bf16.mxu0 0
    %781 = vmatmul.mubr.bf16.gmra.mxu0 %v244
    %v782 = vpop.f32.mrf.mxu0
    %v783 = vadd.f32 %v169, %v782
    %v784 = vpop.f32.mrf.mxu0
    %v785 = vadd.f32 %v173, %v784
    %v786 = vpop.f32.mrf.mxu0
    %v787 = vadd.f32 %v169, %v786
    %v788 = vpop.f32.mrf.mxu0
    %v789 = vadd.f32 %v173, %v788
    %790 = vmatprep.mubr.bf16.mxu0 0
    %791 = vmatmul.mubr.bf16.gmra.mxu0 %v247
    %v792 = vpop.f32.mrf.mxu0
    %v793 = vadd.f32 %v169, %v792
    %v794 = vpop.f32.mrf.mxu0
    %v795 = vadd.f32 %v173, %v794
    %v796 = vpop.f32.mrf.mxu0
    %v797 = vadd.f32 %v169, %v796
    %v798 = vpop.f32.mrf.mxu0
    %v799 = vadd.f32 %v173, %v798
    %800 = vmatprep.mubr.bf16.mxu0 0
    %801 = vmatmul.mubr.bf16.gmra.mxu0 %v250
    %v802 = vpop.f32.mrf.mxu0
    %v803 = vadd.f32 %v169, %v802
    %v804 = vpop.f32.mrf.mxu0
    %v805 = vadd.f32 %v173, %v804
    %v806 = vpop.f32.mrf.mxu0
    %v807 = vadd.f32 %v169, %v806
    %v808 = vpop.f32.mrf.mxu0
    %v809 = vadd.f32 %v173, %v808
    %810 = vmatprep.mubr.bf16.mxu0 0
    %811 = vmatmul.mubr.bf16.gmra.mxu0 %v253
    %v812 = vpop.f32.mrf.mxu0
    %v813 = vadd.f32 %v169, %v812
    %v814 = vpop.f32.mrf.mxu0
    %v815 = vadd.f32 %v173, %v814
    %v816 = vpop.f32.mrf.mxu0
    %v817 = vadd.f32 %v169, %v816
    %v818 = vpop.f32.mrf.mxu0
    %v819 = vadd.f32 %v173, %v818
    %820 = vmatprep.mubr.bf16.mxu0 0
    %821 = vmatmul.mubr.bf16.gmra.mxu0 %v256
    %v822 = vpop.f32.mrf.mxu0
    %v823 = vadd.f32 %v169, %v822
    %v824 = vpop.f32.mrf.mxu0
    %v825 = vadd.f32 %v173, %v824
    %v826 = vpop.f32.mrf.mxu0
    %v827 = vadd.f32 %v169, %v826
    %v828 = vpop.f32.mrf.mxu0
    %v829 = vadd.f32 %v173, %v828
    %830 = vmatprep.mubr.bf16.mxu0 0
    %831 = vmatmul.mubr.bf16.gmra.mxu0 %v259
    %v832 = vpop.f32.mrf.mxu0
    %v833 = vadd.f32 %v169, %v832
    %v834 = vpop.f32.mrf.mxu0
    %v835 = vadd.f32 %v173, %v834
    %v836 = vpop.f32.mrf.mxu0
    %v837 = vadd.f32 %v169, %v836
    %v838 = vpop.f32.mrf.mxu0
    %v839 = vadd.f32 %v173, %v838
    %840 = vmatprep.mubr.bf16.mxu0 0
    %841 = vmatmul.mubr.bf16.gmra.mxu0 %v262
    %v842 = vpop.f32.mrf.mxu0
    %v843 = vadd.f32 %v169, %v842
    %v844 = vpop.f32.mrf.mxu0
    %v845 = vadd.f32 %v173, %v844
    %v846 = vpop.f32.mrf.mxu0
    %v847 = vadd.f32 %v169, %v846
    %v848 = vpop.f32.mrf.mxu0
    %v849 = vadd.f32 %v173, %v848
    %850 = vmatprep.mubr.bf16.mxu0 0
    %851 = vmatmul.mubr.bf16.gmra.mxu0 %v265
    %v852 = vpop.f32.mrf.mxu0
    %v853 = vadd.f32 %v169, %v852
    %v854 = vpop.f32.mrf.mxu0
    %v855 = vadd.f32 %v173, %v854
    %v856 = vpop.f32.mrf.mxu0
    %v857 = vadd.f32 %v169, %v856
    %v858 = vpop.f32.mrf.mxu0
    %v859 = vadd.f32 %v173, %v858
    %860 = vmatprep.mubr.bf16.mxu0 0
    %861 = vmatmul.mubr.bf16.gmra.mxu0 %v268
    %v862 = vpop.f32.mrf.mxu0
    %v863 = vadd.f32 %v169, %v862
    %v864 = vpop.f32.mrf.mxu0
    %v865 = vadd.f32 %v173, %v864
    %v866 = vpop.f32.mrf.mxu0
    %v867 = vadd.f32 %v169, %v866
    %v868 = vpop.f32.mrf.mxu0
    %v869 = vadd.f32 %v173, %v868
    %870 = vmatprep.mubr.bf16.mxu0 0
    %871 = vmatmul.mubr.bf16.gmra.mxu0 %v271
    %v872 = vpop.f32.mrf.mxu0
    %v873 = vadd.f32 %v169, %v872
    %v874 = vpop.f32.mrf.mxu0
    %v875 = vadd.f32 %v173, %v874
    %v876 = vpop.f32.mrf.mxu0
    %v877 = vadd.f32 %v169, %v876
    %v878 = vpop.f32.mrf.mxu0
    %v879 = vadd.f32 %v173, %v878
    %880 = vmatprep.mubr.bf16.mxu0 0
    %881 = vmatmul.mubr.bf16.gmra.mxu0 %v274
    %v882 = vpop.f32.mrf.mxu0
    %v883 = vadd.f32 %v169, %v882
    %v884 = vpop.f32.mrf.mxu0
    %v885 = vadd.f32 %v173, %v884
    %v886 = vpop.f32.mrf.mxu0
    %v887 = vadd.f32 %v169, %v886
    %v888 = vpop.f32.mrf.mxu0
    %v889 = vadd.f32 %v173, %v888
    %890 = vmatprep.mubr.bf16.mxu0 0
    %891 = vmatmul.mubr.bf16.gmra.mxu0 %v277
    %v892 = vpop.f32.mrf.mxu0
    %v893 = vadd.f32 %v169, %v892
    %v894 = vpop.f32.mrf.mxu0
    %v895 = vadd.f32 %v173, %v894
    %v896 = vpop.f32.mrf.mxu0
    %v897 = vadd.f32 %v169, %v896
    %v898 = vpop.f32.mrf.mxu0
    %v899 = vadd.f32 %v173, %v898
    %900 = vmatprep.mubr.bf16.mxu0 0
    %901 = vmatmul.mubr.bf16.gmra.mxu0 %v280
    %v902 = vpop.f32.mrf.mxu0
    %v903 = vadd.f32 %v169, %v902
    %v904 = vpop.f32.mrf.mxu0
    %v905 = vadd.f32 %v173, %v904
    %v906 = vpop.f32.mrf.mxu0
    %v907 = vadd.f32 %v169, %v906
    %v908 = vpop.f32.mrf.mxu0
    %v909 = vadd.f32 %v173, %v908
    %910 = vmatprep.mubr.bf16.mxu0 0
    %911 = vmatmul.mubr.bf16.gmra.mxu0 %v283
    %v912 = vpop.f32.mrf.mxu0
    %v913 = vadd.f32 %v169, %v912
    %v914 = vpop.f32.mrf.mxu0
    %v915 = vadd.f32 %v173, %v914
    %v916 = vpop.f32.mrf.mxu0
    %v917 = vadd.f32 %v169, %v916
    %v918 = vpop.f32.mrf.mxu0
    %v919 = vadd.f32 %v173, %v918
    %920 = vmatprep.mubr.bf16.mxu0 0
    %921 = vmatmul.mubr.bf16.gmra.mxu0 %v286
    %v922 = vpop.f32.mrf.mxu0
    %v923 = vadd.f32 %v169, %v922
    %v924 = vpop.f32.mrf.mxu0
    %v925 = vadd.f32 %v173, %v924
    %v926 = vpop.f32.mrf.mxu0
    %v927 = vadd.f32 %v169, %v926
    %v928 = vpop.f32.mrf.mxu0
    %v929 = vadd.f32 %v173, %v928
    %930 = vmatprep.mubr.bf16.mxu0 0
    %931 = vmatmul.mubr.bf16.gmra.mxu0 %v289
    %v932 = vpop.f32.mrf.mxu0
    %v933 = vadd.f32 %v169, %v932
    %v934 = vpop.f32.mrf.mxu0
    %v935 = vadd.f32 %v173, %v934
    %v936 = vpop.f32.mrf.mxu0
    %v937 = vadd.f32 %v169, %v936
    %v938 = vpop.f32.mrf.mxu0
    %v939 = vadd.f32 %v173, %v938
    %940 = vmatprep.mubr.bf16.mxu0 0
    %941 = vmatmul.mubr.bf16.gmra.mxu0 %v292
    %v942 = vpop.f32.mrf.mxu0
    %v943 = vadd.f32 %v169, %v942
    %v944 = vpop.f32.mrf.mxu0
    %v945 = vadd.f32 %v173, %v944
    %v946 = vpop.f32.mrf.mxu0
    %v947 = vadd.f32 %v169, %v946
    %v948 = vpop.f32.mrf.mxu0
    %v949 = vadd.f32 %v173, %v948
    %950 = vmatprep.mubr.bf16.mxu0 0
    %951 = vmatmul.mubr.bf16.gmra.mxu0 %v295
    %v952 = vpop.f32.mrf.mxu0
    %v953 = vadd.f32 %v169, %v952
    %v954 = vpop.f32.mrf.mxu0
    %v955 = vadd.f32 %v173, %v954
    %v956 = vpop.f32.mrf.mxu0
    %v957 = vadd.f32 %v169, %v956
    %v958 = vpop.f32.mrf.mxu0
    %v959 = vadd.f32 %v173, %v958
    %960 = vmatprep.mubr.bf16.mxu0 0
    %961 = vmatmul.mubr.bf16.gmra.mxu0 %v298
    %v962 = vpop.f32.mrf.mxu0
    %v963 = vadd.f32 %v169, %v962
    %v964 = vpop.f32.mrf.mxu0
    %v965 = vadd.f32 %v173, %v964
    %v966 = vpop.f32.mrf.mxu0
    %v967 = vadd.f32 %v169, %v966
    %v968 = vpop.f32.mrf.mxu0
    %v969 = vadd.f32 %v173, %v968
    %970 = vmatprep.mubr.bf16.mxu0 0
    %971 = vmatmul.mubr.bf16.gmra.mxu0 %v301
    %v972 = vpop.f32.mrf.mxu0
    %v973 = vadd.f32 %v169, %v972
    %v974 = vpop.f32.mrf.mxu0
    %v975 = vadd.f32 %v173, %v974
    %v976 = vpop.f32.mrf.mxu0
    %v977 = vadd.f32 %v169, %v976
    %v978 = vpop.f32.mrf.mxu0
    %v979 = vadd.f32 %v173, %v978
    %980 = vmatprep.mubr.bf16.mxu0 0
    %981 = vmatmul.mubr.bf16.gmra.mxu0 %v304
    %v982 = vpop.f32.mrf.mxu0
    %v983 = vadd.f32 %v169, %v982
    %v984 = vpop.f32.mrf.mxu0
    %v985 = vadd.f32 %v173, %v984
    %v986 = vpop.f32.mrf.mxu0
    %v987 = vadd.f32 %v169, %v986
    %v988 = vpop.f32.mrf.mxu0
    %v989 = vadd.f32 %v173, %v988
    %990 = vmatprep.mubr.bf16.mxu0 0
    %991 = vmatmul.mubr.bf16.gmra.mxu0 %v307
    %v992 = vpop.f32.mrf.mxu0
    %v993 = vadd.f32 %v169, %v992
    %v994 = vpop.f32.mrf.mxu0
    %v995 = vadd.f32 %v173, %v994
    %v996 = vpop.f32.mrf.mxu0
    %v997 = vadd.f32 %v169, %v996
    %v998 = vpop.f32.mrf.mxu0
    %v999 = vadd.f32 %v173, %v998
    %1000 = vmatprep.mubr.bf16.mxu0 0
    %1001 = vmatmul.mubr.bf16.gmra.mxu0 %v310
    %v1002 = vpop.f32.mrf.mxu0
    %v1003 = vadd.f32 %v169, %v1002
    %v1004 = vpop.f32.mrf.mxu0
    %v1005 = vadd.f32 %v173, %v1004
    %v1006 = vpop.f32.mrf.mxu0
    %v1007 = vadd.f32 %v169, %v1006
    %v1008 = vpop.f32.mrf.mxu0
    %v1009 = vadd.f32 %v173, %v1008
    %1010 = vmatprep.mubr.bf16.mxu0 0
    %1011 = vmatmul.mubr.bf16.gmra.mxu0 %v313
    %v1012 = vpop.f32.mrf.mxu0
    %v1013 = vadd.f32 %v169, %v1012
    %v1014 = vpop.f32.mrf.mxu0
    %v1015 = vadd.f32 %v173, %v1014
    %v1016 = vpop.f32.mrf.mxu0
    %v1017 = vadd.f32 %v169, %v1016
    %v1018 = vpop.f32.mrf.mxu0
    %v1019 = vadd.f32 %v173, %v1018
    %1020 = vdwg.mxu0
    %v1021 = vmax.f32 %v350, 0.0
    %v1022 = vmax.f32 %v352, 0.0
    %v1023 = vmax.f32 %v703, 0.0
    %v1024 = vmax.f32 %v705, 0.0
    %v1025 = vmax.f32 %v354, 0.0
    %v1026 = vmax.f32 %v356, 0.0
    %v1027 = vmax.f32 %v707, 0.0
    %v1028 = vmax.f32 %v709, 0.0
    %v1029 = vmax.f32 %v360, 0.0
    %v1030 = vmax.f32 %v362, 0.0
    %v1031 = vmax.f32 %v713, 0.0
    %v1032 = vmax.f32 %v715, 0.0
    %v1033 = vmax.f32 %v364, 0.0
    %v1034 = vmax.f32 %v366, 0.0
    %v1035 = vmax.f32 %v717, 0.0
    %v1036 = vmax.f32 %v719, 0.0
    %v1037 = vmax.f32 %v370, 0.0
    %v1038 = vmax.f32 %v372, 0.0
    %v1039 = vmax.f32 %v723, 0.0
    %v1040 = vmax.f32 %v725, 0.0
    %v1041 = vmax.f32 %v374, 0.0
    %v1042 = vmax.f32 %v376, 0.0
    %v1043 = vmax.f32 %v727, 0.0
    %v1044 = vmax.f32 %v729, 0.0
    %v1045 = vmax.f32 %v380, 0.0
    %v1046 = vmax.f32 %v382, 0.0
    %v1047 = vmax.f32 %v733, 0.0
    %v1048 = vmax.f32 %v735, 0.0
    %v1049 = vmax.f32 %v384, 0.0
    %v1050 = vmax.f32 %v386, 0.0
    %v1051 = vmax.f32 %v737, 0.0
    %v1052 = vmax.f32 %v739, 0.0
    %v1053 = vmax.f32 %v390, 0.0
    %v1054 = vmax.f32 %v392, 0.0
    %v1055 = vmax.f32 %v743, 0.0
    %v1056 = vmax.f32 %v745, 0.0
    %v1057 = vmax.f32 %v394, 0.0
    %v1058 = vmax.f32 %v396, 0.0
    %v1059 = vmax.f32 %v747, 0.0
    %v1060 = vmax.f32 %v749, 0.0
    %v1061 = vmax.f32 %v400, 0.0
    %v1062 = vmax.f32 %v402, 0.0
    %v1063 = vmax.f32 %v753, 0.0
    %v1064 = vmax.f32 %v755, 0.0
    %v1065 = vmax.f32 %v404, 0.0
    %v1066 = vmax.f32 %v406, 0.0
    %v1067 = vmax.f32 %v757, 0.0
    %v1068 = vmax.f32 %v759, 0.0
    %v1069 = vmax.f32 %v410, 0.0
    %v1070 = vmax.f32 %v412, 0.0
    %v1071 = vmax.f32 %v763, 0.0
    %v1072 = vmax.f32 %v765, 0.0
    %v1073 = vmax.f32 %v414, 0.0
    %v1074 = vmax.f32 %v416, 0.0
    %v1075 = vmax.f32 %v767, 0.0
    %v1076 = vmax.f32 %v769, 0.0
    %v1077 = vmax.f32 %v420, 0.0
    %v1078 = vmax.f32 %v422, 0.0
    %v1079 = vmax.f32 %v773, 0.0
    %v1080 = vmax.f32 %v775, 0.0
    %v1081 = vmax.f32 %v424, 0.0
    %v1082 = vmax.f32 %v426, 0.0
    %v1083 = vmax.f32 %v777, 0.0
    %v1084 = vmax.f32 %v779, 0.0
    %v1085 = vmax.f32 %v430, 0.0
    %v1086 = vmax.f32 %v432, 0.0
    %v1087 = vmax.f32 %v783, 0.0
    %v1088 = vmax.f32 %v785, 0.0
    %v1089 = vmax.f32 %v434, 0.0
    %v1090 = vmax.f32 %v436, 0.0
    %v1091 = vmax.f32 %v787, 0.0
    %v1092 = vmax.f32 %v789, 0.0
    %v1093 = vmax.f32 %v440, 0.0
    %v1094 = vmax.f32 %v442, 0.0
    %v1095 = vmax.f32 %v793, 0.0
    %v1096 = vmax.f32 %v795, 0.0
    %v1097 = vmax.f32 %v444, 0.0
    %v1098 = vmax.f32 %v446, 0.0
    %v1099 = vmax.f32 %v797, 0.0
    %v1100 = vmax.f32 %v799, 0.0
    %v1101 = vmax.f32 %v450, 0.0
    %v1102 = vmax.f32 %v452, 0.0
    %v1103 = vmax.f32 %v803, 0.0
    %v1104 = vmax.f32 %v805, 0.0
    %v1105 = vmax.f32 %v454, 0.0
    %v1106 = vmax.f32 %v456, 0.0
    %v1107 = vmax.f32 %v807, 0.0
    %v1108 = vmax.f32 %v809, 0.0
    %v1109 = vmax.f32 %v460, 0.0
    %v1110 = vmax.f32 %v462, 0.0
    %v1111 = vmax.f32 %v813, 0.0
    %v1112 = vmax.f32 %v815, 0.0
    %v1113 = vmax.f32 %v464, 0.0
    %v1114 = vmax.f32 %v466, 0.0
    %v1115 = vmax.f32 %v817, 0.0
    %v1116 = vmax.f32 %v819, 0.0
    %v1117 = vmax.f32 %v470, 0.0
    %v1118 = vmax.f32 %v472, 0.0
    %v1119 = vmax.f32 %v823, 0.0
    %v1120 = vmax.f32 %v825, 0.0
    %v1121 = vmax.f32 %v474, 0.0
    %v1122 = vmax.f32 %v476, 0.0
    %v1123 = vmax.f32 %v827, 0.0
    %v1124 = vmax.f32 %v829, 0.0
    %v1125 = vmax.f32 %v480, 0.0
    %v1126 = vmax.f32 %v482, 0.0
    %v1127 = vmax.f32 %v833, 0.0
    %v1128 = vmax.f32 %v835, 0.0
    %v1129 = vmax.f32 %v484, 0.0
    %v1130 = vmax.f32 %v486, 0.0
    %v1131 = vmax.f32 %v837, 0.0
    %v1132 = vmax.f32 %v839, 0.0
    %v1133 = vmax.f32 %v490, 0.0
    %v1134 = vmax.f32 %v492, 0.0
    %v1135 = vmax.f32 %v843, 0.0
    %v1136 = vmax.f32 %v845, 0.0
    %v1137 = vmax.f32 %v494, 0.0
    %v1138 = vmax.f32 %v496, 0.0
    %v1139 = vmax.f32 %v847, 0.0
    %v1140 = vmax.f32 %v849, 0.0
    %v1141 = vmax.f32 %v500, 0.0
    %v1142 = vmax.f32 %v502, 0.0
    %v1143 = vmax.f32 %v853, 0.0
    %v1144 = vmax.f32 %v855, 0.0
    %v1145 = vmax.f32 %v504, 0.0
    %v1146 = vmax.f32 %v506, 0.0
    %v1147 = vmax.f32 %v857, 0.0
    %v1148 = vmax.f32 %v859, 0.0
    %v1149 = vmax.f32 %v510, 0.0
    %v1150 = vmax.f32 %v512, 0.0
    %v1151 = vmax.f32 %v863, 0.0
    %v1152 = vmax.f32 %v865, 0.0
    %v1153 = vmax.f32 %v514, 0.0
    %v1154 = vmax.f32 %v516, 0.0
    %v1155 = vmax.f32 %v867, 0.0
    %v1156 = vmax.f32 %v869, 0.0
    %v1157 = vmax.f32 %v520, 0.0
    %v1158 = vmax.f32 %v522, 0.0
    %v1159 = vmax.f32 %v873, 0.0
    %v1160 = vmax.f32 %v875, 0.0
    %v1161 = vmax.f32 %v524, 0.0
    %v1162 = vmax.f32 %v526, 0.0
    %v1163 = vmax.f32 %v877, 0.0
    %v1164 = vmax.f32 %v879, 0.0
    %v1165 = vmax.f32 %v530, 0.0
    %v1166 = vmax.f32 %v532, 0.0
    %v1167 = vmax.f32 %v883, 0.0
    %v1168 = vmax.f32 %v885, 0.0
    %v1169 = vmax.f32 %v534, 0.0
    %v1170 = vmax.f32 %v536, 0.0
    %v1171 = vmax.f32 %v887, 0.0
    %v1172 = vmax.f32 %v889, 0.0
    %v1173 = vmax.f32 %v540, 0.0
    %v1174 = vmax.f32 %v542, 0.0
    %v1175 = vmax.f32 %v893, 0.0
    %v1176 = vmax.f32 %v895, 0.0
    %v1177 = vmax.f32 %v544, 0.0
    %v1178 = vmax.f32 %v546, 0.0
    %v1179 = vmax.f32 %v897, 0.0
    %v1180 = vmax.f32 %v899, 0.0
    %v1181 = vmax.f32 %v550, 0.0
    %v1182 = vmax.f32 %v552, 0.0
    %v1183 = vmax.f32 %v903, 0.0
    %v1184 = vmax.f32 %v905, 0.0
    %v1185 = vmax.f32 %v554, 0.0
    %v1186 = vmax.f32 %v556, 0.0
    %v1187 = vmax.f32 %v907, 0.0
    %v1188 = vmax.f32 %v909, 0.0
    %v1189 = vmax.f32 %v560, 0.0
    %v1190 = vmax.f32 %v562, 0.0
    %v1191 = vmax.f32 %v913, 0.0
    %v1192 = vmax.f32 %v915, 0.0
    %v1193 = vmax.f32 %v564, 0.0
    %v1194 = vmax.f32 %v566, 0.0
    %v1195 = vmax.f32 %v917, 0.0
    %v1196 = vmax.f32 %v919, 0.0
    %v1197 = vmax.f32 %v570, 0.0
    %v1198 = vmax.f32 %v572, 0.0
    %v1199 = vmax.f32 %v923, 0.0
    %v1200 = vmax.f32 %v925, 0.0
    %v1201 = vmax.f32 %v574, 0.0
    %v1202 = vmax.f32 %v576, 0.0
    %v1203 = vmax.f32 %v927, 0.0
    %v1204 = vmax.f32 %v929, 0.0
    %v1205 = vmax.f32 %v580, 0.0
    %v1206 = vmax.f32 %v582, 0.0
    %v1207 = vmax.f32 %v933, 0.0
    %v1208 = vmax.f32 %v935, 0.0
    %v1209 = vmax.f32 %v584, 0.0
    %v1210 = vmax.f32 %v586, 0.0
    %v1211 = vmax.f32 %v937, 0.0
    %v1212 = vmax.f32 %v939, 0.0
    %v1213 = vmax.f32 %v590, 0.0
    %v1214 = vmax.f32 %v592, 0.0
    %v1215 = vmax.f32 %v943, 0.0
    %v1216 = vmax.f32 %v945, 0.0
    %v1217 = vmax.f32 %v594, 0.0
    %v1218 = vmax.f32 %v596, 0.0
    %v1219 = vmax.f32 %v947, 0.0
    %v1220 = vmax.f32 %v949, 0.0
    %v1221 = vmax.f32 %v600, 0.0
    %v1222 = vmax.f32 %v602, 0.0
    %v1223 = vmax.f32 %v953, 0.0
    %v1224 = vmax.f32 %v955, 0.0
    %v1225 = vmax.f32 %v604, 0.0
    %v1226 = vmax.f32 %v606, 0.0
    %v1227 = vmax.f32 %v957, 0.0
    %v1228 = vmax.f32 %v959, 0.0
    %v1229 = vmax.f32 %v610, 0.0
    %v1230 = vmax.f32 %v612, 0.0
    %v1231 = vmax.f32 %v963, 0.0
    %v1232 = vmax.f32 %v965, 0.0
    %v1233 = vmax.f32 %v614, 0.0
    %v1234 = vmax.f32 %v616, 0.0
    %v1235 = vmax.f32 %v967, 0.0
    %v1236 = vmax.f32 %v969, 0.0
    %v1237 = vmax.f32 %v620, 0.0
    %v1238 = vmax.f32 %v622, 0.0
    %v1239 = vmax.f32 %v973, 0.0
    %v1240 = vmax.f32 %v975, 0.0
    %v1241 = vmax.f32 %v624, 0.0
    %v1242 = vmax.f32 %v626, 0.0
    %v1243 = vmax.f32 %v977, 0.0
    %v1244 = vmax.f32 %v979, 0.0
    %v1245 = vmax.f32 %v630, 0.0
    %v1246 = vmax.f32 %v632, 0.0
    %v1247 = vmax.f32 %v983, 0.0
    %v1248 = vmax.f32 %v985, 0.0
    %v1249 = vmax.f32 %v634, 0.0
    %v1250 = vmax.f32 %v636, 0.0
    %v1251 = vmax.f32 %v987, 0.0
    %v1252 = vmax.f32 %v989, 0.0
    %v1253 = vmax.f32 %v640, 0.0
    %v1254 = vmax.f32 %v642, 0.0
    %v1255 = vmax.f32 %v993, 0.0
    %v1256 = vmax.f32 %v995, 0.0
    %v1257 = vmax.f32 %v644, 0.0
    %v1258 = vmax.f32 %v646, 0.0
    %v1259 = vmax.f32 %v997, 0.0
    %v1260 = vmax.f32 %v999, 0.0
    %v1261 = vmax.f32 %v650, 0.0
    %v1262 = vmax.f32 %v652, 0.0
    %v1263 = vmax.f32 %v1003, 0.0
    %v1264 = vmax.f32 %v1005, 0.0
    %v1265 = vmax.f32 %v654, 0.0
    %v1266 = vmax.f32 %v656, 0.0
    %v1267 = vmax.f32 %v1007, 0.0
    %v1268 = vmax.f32 %v1009, 0.0
    %v1269 = vmax.f32 %v660, 0.0
    %v1270 = vmax.f32 %v662, 0.0
    %v1271 = vmax.f32 %v1013, 0.0
    %v1272 = vmax.f32 %v1015, 0.0
    %v1273 = vmax.f32 %v664, 0.0
    %v1274 = vmax.f32 %v666, 0.0
    %v1275 = vmax.f32 %v1017, 0.0
    %v1276 = vmax.f32 %v1019, 0.0
    %v1277 = vld [vmem:[%s3] sm:$0xff]
    %v1278 = vld [vmem:[%s3 + $0x8] sm:$0xff]
    %v1279 = vld [vmem:[%s3 + $0x10] sm:$0xff]
    %v1280 = vld [vmem:[%s3 + $0x18] sm:$0xff]
    %v1281 = vld [vmem:[%s3 + $0x20] sm:$0xff]
    %v1282 = vld [vmem:[%s3 + $0x28] sm:$0xff]
    %v1283 = vld [vmem:[%s3 + $0x30] sm:$0xff]
    %v1284 = vld [vmem:[%s3 + $0x38] sm:$0xff]
    %v1285 = vld [vmem:[%s3 + $0x40] sm:$0xff]
    %v1286 = vld [vmem:[%s3 + $0x48] sm:$0xff]
    %v1287 = vld [vmem:[%s3 + $0x50] sm:$0xff]
    %v1288 = vld [vmem:[%s3 + $0x58] sm:$0xff]
    %v1289 = vld [vmem:[%s3 + $0x60] sm:$0xff]
    %v1290 = vld [vmem:[%s3 + $0x68] sm:$0xff]
    %v1291 = vld [vmem:[%s3 + $0x70] sm:$0xff]
    %v1292 = vld [vmem:[%s3 + $0x78] sm:$0xff]
    %v1293 = vld [vmem:[%s3 + $0x80] sm:$0xff]
    %v1294 = vld [vmem:[%s3 + $0x88] sm:$0xff]
    %v1295 = vld [vmem:[%s3 + $0x90] sm:$0xff]
    %v1296 = vld [vmem:[%s3 + $0x98] sm:$0xff]
    %v1297 = vld [vmem:[%s3 + $0xa0] sm:$0xff]
    %v1298 = vld [vmem:[%s3 + $0xa8] sm:$0xff]
    %v1299 = vld [vmem:[%s3 + $0xb0] sm:$0xff]
    %v1300 = vld [vmem:[%s3 + $0xb8] sm:$0xff]
    %v1301 = vld [vmem:[%s3 + $0xc0] sm:$0xff]
    %v1302 = vld [vmem:[%s3 + $0xc8] sm:$0xff]
    %v1303 = vld [vmem:[%s3 + $0xd0] sm:$0xff]
    %v1304 = vld [vmem:[%s3 + $0xd8] sm:$0xff]
    %v1305 = vld [vmem:[%s3 + $0xe0] sm:$0xff]
    %v1306 = vld [vmem:[%s3 + $0xe8] sm:$0xff]
    %v1307 = vld [vmem:[%s3 + $0xf0] sm:$0xff]
    %v1308 = vld [vmem:[%s3 + $0xf8] sm:$0xff]
    %v1309 = vld [vmem:[%s3 + $0x100] sm:$0xff]
    %v1310 = vld [vmem:[%s3 + $0x108] sm:$0xff]
    %v1311 = vld [vmem:[%s3 + $0x110] sm:$0xff]
    %v1312 = vld [vmem:[%s3 + $0x118] sm:$0xff]
    %v1313 = vld [vmem:[%s3 + $0x120] sm:$0xff]
    %v1314 = vld [vmem:[%s3 + $0x128] sm:$0xff]
    %v1315 = vld [vmem:[%s3 + $0x130] sm:$0xff]
    %v1316 = vld [vmem:[%s3 + $0x138] sm:$0xff]
    %v1317 = vld [vmem:[%s3 + $0x140] sm:$0xff]
    %v1318 = vld [vmem:[%s3 + $0x148] sm:$0xff]
    %v1319 = vld [vmem:[%s3 + $0x150] sm:$0xff]
    %v1320 = vld [vmem:[%s3 + $0x158] sm:$0xff]
    %v1321 = vld [vmem:[%s3 + $0x160] sm:$0xff]
    %v1322 = vld [vmem:[%s3 + $0x168] sm:$0xff]
    %v1323 = vld [vmem:[%s3 + $0x170] sm:$0xff]
    %v1324 = vld [vmem:[%s3 + $0x178] sm:$0xff]
    %v1325 = vld [vmem:[%s3 + $0x180] sm:$0xff]
    %v1326 = vld [vmem:[%s3 + $0x188] sm:$0xff]
    %v1327 = vld [vmem:[%s3 + $0x190] sm:$0xff]
    %v1328 = vld [vmem:[%s3 + $0x198] sm:$0xff]
    %v1329 = vld [vmem:[%s3 + $0x1a0] sm:$0xff]
    %v1330 = vld [vmem:[%s3 + $0x1a8] sm:$0xff]
    %v1331 = vld [vmem:[%s3 + $0x1b0] sm:$0xff]
    %v1332 = vld [vmem:[%s3 + $0x1b8] sm:$0xff]
    %v1333 = vld [vmem:[%s3 + $0x1c0] sm:$0xff]
    %v1334 = vld [vmem:[%s3 + $0x1c8] sm:$0xff]
    %v1335 = vld [vmem:[%s3 + $0x1d0] sm:$0xff]
    %v1336 = vld [vmem:[%s3 + $0x1d8] sm:$0xff]
    %v1337 = vld [vmem:[%s3 + $0x1e0] sm:$0xff]
    %v1338 = vld [vmem:[%s3 + $0x1e8] sm:$0xff]
    %v1339 = vld [vmem:[%s3 + $0x1f0] sm:$0xff]
    %v1340 = vld [vmem:[%s3 + $0x1f8] sm:$0xff]
    %v1341 = vld [vmem:[#allocation2] sm:$0x3]
    %v1342 = vpack.c.bf16 %v1025, %v1021
    %v1343 = vpack.c.bf16 %v1026, %v1022
    %v1344 = vpack.c.bf16 %v1027, %v1023
    %v1345 = vpack.c.bf16 %v1028, %v1024
    %v1346 = vpack.c.bf16 %v1033, %v1029
    %v1347 = vpack.c.bf16 %v1034, %v1030
    %v1348 = vpack.c.bf16 %v1035, %v1031
    %v1349 = vpack.c.bf16 %v1036, %v1032
    %v1350 = vpack.c.bf16 %v1041, %v1037
    %v1351 = vpack.c.bf16 %v1042, %v1038
    %v1352 = vpack.c.bf16 %v1043, %v1039
    %v1353 = vpack.c.bf16 %v1044, %v1040
    %v1354 = vpack.c.bf16 %v1049, %v1045
    %v1355 = vpack.c.bf16 %v1050, %v1046
    %v1356 = vpack.c.bf16 %v1051, %v1047
    %v1357 = vpack.c.bf16 %v1052, %v1048
    %v1358 = vpack.c.bf16 %v1057, %v1053
    %v1359 = vpack.c.bf16 %v1058, %v1054
    %v1360 = vpack.c.bf16 %v1059, %v1055
    %v1361 = vpack.c.bf16 %v1060, %v1056
    %v1362 = vpack.c.bf16 %v1065, %v1061
    %v1363 = vpack.c.bf16 %v1066, %v1062
    %v1364 = vpack.c.bf16 %v1067, %v1063
    %v1365 = vpack.c.bf16 %v1068, %v1064
    %v1366 = vpack.c.bf16 %v1073, %v1069
    %v1367 = vpack.c.bf16 %v1074, %v1070
    %v1368 = vpack.c.bf16 %v1075, %v1071
    %v1369 = vpack.c.bf16 %v1076, %v1072
    %v1370 = vpack.c.bf16 %v1081, %v1077
    %v1371 = vpack.c.bf16 %v1082, %v1078
    %v1372 = vpack.c.bf16 %v1083, %v1079
    %v1373 = vpack.c.bf16 %v1084, %v1080
    %v1374 = vpack.c.bf16 %v1089, %v1085
    %v1375 = vpack.c.bf16 %v1090, %v1086
    %v1376 = vpack.c.bf16 %v1091, %v1087
    %v1377 = vpack.c.bf16 %v1092, %v1088
    %v1378 = vpack.c.bf16 %v1097, %v1093
    %v1379 = vpack.c.bf16 %v1098, %v1094
    %v1380 = vpack.c.bf16 %v1099, %v1095
    %v1381 = vpack.c.bf16 %v1100, %v1096
    %v1382 = vpack.c.bf16 %v1105, %v1101
    %v1383 = vpack.c.bf16 %v1106, %v1102
    %v1384 = vpack.c.bf16 %v1107, %v1103
    %v1385 = vpack.c.bf16 %v1108, %v1104
    %v1386 = vpack.c.bf16 %v1113, %v1109
    %v1387 = vpack.c.bf16 %v1114, %v1110
    %v1388 = vpack.c.bf16 %v1115, %v1111
    %v1389 = vpack.c.bf16 %v1116, %v1112
    %v1390 = vpack.c.bf16 %v1121, %v1117
    %v1391 = vpack.c.bf16 %v1122, %v1118
    %v1392 = vpack.c.bf16 %v1123, %v1119
    %v1393 = vpack.c.bf16 %v1124, %v1120
    %v1394 = vpack.c.bf16 %v1129, %v1125
    %v1395 = vpack.c.bf16 %v1130, %v1126
    %v1396 = vpack.c.bf16 %v1131, %v1127
    %v1397 = vpack.c.bf16 %v1132, %v1128
    %v1398 = vpack.c.bf16 %v1137, %v1133
    %v1399 = vpack.c.bf16 %v1138, %v1134
    %v1400 = vpack.c.bf16 %v1139, %v1135
    %v1401 = vpack.c.bf16 %v1140, %v1136
    %v1402 = vpack.c.bf16 %v1145, %v1141
    %v1403 = vpack.c.bf16 %v1146, %v1142
    %v1404 = vpack.c.bf16 %v1147, %v1143
    %v1405 = vpack.c.bf16 %v1148, %v1144
    %v1406 = vpack.c.bf16 %v1153, %v1149
    %v1407 = vpack.c.bf16 %v1154, %v1150
    %v1408 = vpack.c.bf16 %v1155, %v1151
    %v1409 = vpack.c.bf16 %v1156, %v1152
    %v1410 = vpack.c.bf16 %v1161, %v1157
    %v1411 = vpack.c.bf16 %v1162, %v1158
    %v1412 = vpack.c.bf16 %v1163, %v1159
    %v1413 = vpack.c.bf16 %v1164, %v1160
    %v1414 = vpack.c.bf16 %v1169, %v1165
    %v1415 = vpack.c.bf16 %v1170, %v1166
    %v1416 = vpack.c.bf16 %v1171, %v1167
    %v1417 = vpack.c.bf16 %v1172, %v1168
    %v1418 = vpack.c.bf16 %v1177, %v1173
    %v1419 = vpack.c.bf16 %v1178, %v1174
    %v1420 = vpack.c.bf16 %v1179, %v1175
    %v1421 = vpack.c.bf16 %v1180, %v1176
    %v1422 = vpack.c.bf16 %v1185, %v1181
    %v1423 = vpack.c.bf16 %v1186, %v1182
    %v1424 = vpack.c.bf16 %v1187, %v1183
    %v1425 = vpack.c.bf16 %v1188, %v1184
    %v1426 = vpack.c.bf16 %v1193, %v1189
    %v1427 = vpack.c.bf16 %v1194, %v1190
    %v1428 = vpack.c.bf16 %v1195, %v1191
    %v1429 = vpack.c.bf16 %v1196, %v1192
    %v1430 = vpack.c.bf16 %v1201, %v1197
    %v1431 = vpack.c.bf16 %v1202, %v1198
    %v1432 = vpack.c.bf16 %v1203, %v1199
    %v1433 = vpack.c.bf16 %v1204, %v1200
    %v1434 = vpack.c.bf16 %v1209, %v1205
    %v1435 = vpack.c.bf16 %v1210, %v1206
    %v1436 = vpack.c.bf16 %v1211, %v1207
    %v1437 = vpack.c.bf16 %v1212, %v1208
    %v1438 = vpack.c.bf16 %v1217, %v1213
    %v1439 = vpack.c.bf16 %v1218, %v1214
    %v1440 = vpack.c.bf16 %v1219, %v1215
    %v1441 = vpack.c.bf16 %v1220, %v1216
    %v1442 = vpack.c.bf16 %v1225, %v1221
    %v1443 = vpack.c.bf16 %v1226, %v1222
    %v1444 = vpack.c.bf16 %v1227, %v1223
    %v1445 = vpack.c.bf16 %v1228, %v1224
    %v1446 = vpack.c.bf16 %v1233, %v1229
    %v1447 = vpack.c.bf16 %v1234, %v1230
    %v1448 = vpack.c.bf16 %v1235, %v1231
    %v1449 = vpack.c.bf16 %v1236, %v1232
    %v1450 = vpack.c.bf16 %v1241, %v1237
    %v1451 = vpack.c.bf16 %v1242, %v1238
    %v1452 = vpack.c.bf16 %v1243, %v1239
    %v1453 = vpack.c.bf16 %v1244, %v1240
    %v1454 = vpack.c.bf16 %v1249, %v1245
    %v1455 = vpack.c.bf16 %v1250, %v1246
    %v1456 = vpack.c.bf16 %v1251, %v1247
    %v1457 = vpack.c.bf16 %v1252, %v1248
    %v1458 = vpack.c.bf16 %v1257, %v1253
    %v1459 = vpack.c.bf16 %v1258, %v1254
    %v1460 = vpack.c.bf16 %v1259, %v1255
    %v1461 = vpack.c.bf16 %v1260, %v1256
    %v1462 = vpack.c.bf16 %v1265, %v1261
    %v1463 = vpack.c.bf16 %v1266, %v1262
    %v1464 = vpack.c.bf16 %v1267, %v1263
    %v1465 = vpack.c.bf16 %v1268, %v1264
    %v1466 = vpack.c.bf16 %v1273, %v1269
    %v1467 = vpack.c.bf16 %v1274, %v1270
    %v1468 = vpack.c.bf16 %v1275, %v1271
    %v1469 = vpack.c.bf16 %v1276, %v1272
    %v1471 = vlaneseq
    %v1472 = vshrl.u32 %v1471, 7
    %v1473 = vsub.s32 0, %v1472
    %v1474 = vrot.slane %v1341, %v1473
    %v1475 = vlaneseq
    %v1476 = vshrl.u32 %v1475, 7
    %v1477 = vsub.s32 1, %v1476
    %v1478 = vrot.slane %v1341, %v1477
    %v1545 = vunpack.c.l.b16 %v1277
    %v1546 = vunpack.c.h.b16 %v1277
    %v1547 = vunpack.c.l.b16 %v1278
    %v1548 = vunpack.c.h.b16 %v1278
    %v1549 = vunpack.c.l.b16 %v1279
    %v1550 = vunpack.c.h.b16 %v1279
    %v1551 = vunpack.c.l.b16 %v1280
    %v1552 = vunpack.c.h.b16 %v1280
    %v1553 = vunpack.c.l.b16 %v1281
    %v1554 = vunpack.c.h.b16 %v1281
    %v1555 = vunpack.c.l.b16 %v1282
    %v1556 = vunpack.c.h.b16 %v1282
    %v1557 = vunpack.c.l.b16 %v1283
    %v1558 = vunpack.c.h.b16 %v1283
    %v1559 = vunpack.c.l.b16 %v1284
    %v1560 = vunpack.c.h.b16 %v1284
    %v1561 = vunpack.c.l.b16 %v1285
    %v1562 = vunpack.c.h.b16 %v1285
    %v1563 = vunpack.c.l.b16 %v1286
    %v1564 = vunpack.c.h.b16 %v1286
    %v1565 = vunpack.c.l.b16 %v1287
    %v1566 = vunpack.c.h.b16 %v1287
    %v1567 = vunpack.c.l.b16 %v1288
    %v1568 = vunpack.c.h.b16 %v1288
    %v1569 = vunpack.c.l.b16 %v1289
    %v1570 = vunpack.c.h.b16 %v1289
    %v1571 = vunpack.c.l.b16 %v1290
    %v1572 = vunpack.c.h.b16 %v1290
    %v1573 = vunpack.c.l.b16 %v1291
    %v1574 = vunpack.c.h.b16 %v1291
    %v1575 = vunpack.c.l.b16 %v1292
    %v1576 = vunpack.c.h.b16 %v1292
    %v1577 = vunpack.c.l.b16 %v1293
    %v1578 = vunpack.c.h.b16 %v1293
    %v1579 = vunpack.c.l.b16 %v1294
    %v1580 = vunpack.c.h.b16 %v1294
    %v1581 = vunpack.c.l.b16 %v1295
    %v1582 = vunpack.c.h.b16 %v1295
    %v1583 = vunpack.c.l.b16 %v1296
    %v1584 = vunpack.c.h.b16 %v1296
    %v1585 = vunpack.c.l.b16 %v1297
    %v1586 = vunpack.c.h.b16 %v1297
    %v1587 = vunpack.c.l.b16 %v1298
    %v1588 = vunpack.c.h.b16 %v1298
    %v1589 = vunpack.c.l.b16 %v1299
    %v1590 = vunpack.c.h.b16 %v1299
    %v1591 = vunpack.c.l.b16 %v1300
    %v1592 = vunpack.c.h.b16 %v1300
    %v1593 = vunpack.c.l.b16 %v1301
    %v1594 = vunpack.c.h.b16 %v1301
    %v1595 = vunpack.c.l.b16 %v1302
    %v1596 = vunpack.c.h.b16 %v1302
    %v1597 = vunpack.c.l.b16 %v1303
    %v1598 = vunpack.c.h.b16 %v1303
    %v1599 = vunpack.c.l.b16 %v1304
    %v1600 = vunpack.c.h.b16 %v1304
    %v1601 = vunpack.c.l.b16 %v1305
    %v1602 = vunpack.c.h.b16 %v1305
    %v1603 = vunpack.c.l.b16 %v1306
    %v1604 = vunpack.c.h.b16 %v1306
    %v1605 = vunpack.c.l.b16 %v1307
    %v1606 = vunpack.c.h.b16 %v1307
    %v1607 = vunpack.c.l.b16 %v1308
    %v1608 = vunpack.c.h.b16 %v1308
    %v1609 = vunpack.c.l.b16 %v1309
    %v1610 = vunpack.c.h.b16 %v1309
    %v1611 = vunpack.c.l.b16 %v1310
    %v1612 = vunpack.c.h.b16 %v1310
    %v1613 = vunpack.c.l.b16 %v1311
    %v1614 = vunpack.c.h.b16 %v1311
    %v1615 = vunpack.c.l.b16 %v1312
    %v1616 = vunpack.c.h.b16 %v1312
    %v1617 = vunpack.c.l.b16 %v1313
    %v1618 = vunpack.c.h.b16 %v1313
    %v1619 = vunpack.c.l.b16 %v1314
    %v1620 = vunpack.c.h.b16 %v1314
    %v1621 = vunpack.c.l.b16 %v1315
    %v1622 = vunpack.c.h.b16 %v1315
    %v1623 = vunpack.c.l.b16 %v1316
    %v1624 = vunpack.c.h.b16 %v1316
    %v1625 = vunpack.c.l.b16 %v1317
    %v1626 = vunpack.c.h.b16 %v1317
    %v1627 = vunpack.c.l.b16 %v1318
    %v1628 = vunpack.c.h.b16 %v1318
    %v1629 = vunpack.c.l.b16 %v1319
    %v1630 = vunpack.c.h.b16 %v1319
    %v1631 = vunpack.c.l.b16 %v1320
    %v1632 = vunpack.c.h.b16 %v1320
    %v1633 = vunpack.c.l.b16 %v1321
    %v1634 = vunpack.c.h.b16 %v1321
    %v1635 = vunpack.c.l.b16 %v1322
    %v1636 = vunpack.c.h.b16 %v1322
    %v1637 = vunpack.c.l.b16 %v1323
    %v1638 = vunpack.c.h.b16 %v1323
    %v1639 = vunpack.c.l.b16 %v1324
    %v1640 = vunpack.c.h.b16 %v1324
    %v1641 = vunpack.c.l.b16 %v1325
    %v1642 = vunpack.c.h.b16 %v1325
    %v1643 = vunpack.c.l.b16 %v1326
    %v1644 = vunpack.c.h.b16 %v1326
    %v1645 = vunpack.c.l.b16 %v1327
    %v1646 = vunpack.c.h.b16 %v1327
    %v1647 = vunpack.c.l.b16 %v1328
    %v1648 = vunpack.c.h.b16 %v1328
    %v1649 = vunpack.c.l.b16 %v1329
    %v1650 = vunpack.c.h.b16 %v1329
    %v1651 = vunpack.c.l.b16 %v1330
    %v1652 = vunpack.c.h.b16 %v1330
    %v1653 = vunpack.c.l.b16 %v1331
    %v1654 = vunpack.c.h.b16 %v1331
    %v1655 = vunpack.c.l.b16 %v1332
    %v1656 = vunpack.c.h.b16 %v1332
    %v1657 = vunpack.c.l.b16 %v1333
    %v1658 = vunpack.c.h.b16 %v1333
    %v1659 = vunpack.c.l.b16 %v1334
    %v1660 = vunpack.c.h.b16 %v1334
    %v1661 = vunpack.c.l.b16 %v1335
    %v1662 = vunpack.c.h.b16 %v1335
    %v1663 = vunpack.c.l.b16 %v1336
    %v1664 = vunpack.c.h.b16 %v1336
    %v1665 = vunpack.c.l.b16 %v1337
    %v1666 = vunpack.c.h.b16 %v1337
    %v1667 = vunpack.c.l.b16 %v1338
    %v1668 = vunpack.c.h.b16 %v1338
    %v1669 = vunpack.c.l.b16 %v1339
    %v1670 = vunpack.c.h.b16 %v1339
    %v1671 = vunpack.c.l.b16 %v1340
    %v1672 = vunpack.c.h.b16 %v1340
    %v1673 = vpack.c.b16 %v1547, %v1545
    %v1674 = vpack.c.b16 %v1548, %v1546
    %v1675 = vpack.c.b16 %v1551, %v1549
    %v1676 = vpack.c.b16 %v1552, %v1550
    %v1677 = vpack.c.b16 %v1555, %v1553
    %v1678 = vpack.c.b16 %v1556, %v1554
    %v1679 = vpack.c.b16 %v1559, %v1557
    %v1680 = vpack.c.b16 %v1560, %v1558
    %v1681 = vpack.c.b16 %v1563, %v1561
    %v1682 = vpack.c.b16 %v1564, %v1562
    %v1683 = vpack.c.b16 %v1567, %v1565
    %v1684 = vpack.c.b16 %v1568, %v1566
    %v1685 = vpack.c.b16 %v1571, %v1569
    %v1686 = vpack.c.b16 %v1572, %v1570
    %v1687 = vpack.c.b16 %v1575, %v1573
    %v1688 = vpack.c.b16 %v1576, %v1574
    %v1689 = vpack.c.b16 %v1579, %v1577
    %v1690 = vpack.c.b16 %v1580, %v1578
    %v1691 = vpack.c.b16 %v1583, %v1581
    %v1692 = vpack.c.b16 %v1584, %v1582
    %v1693 = vpack.c.b16 %v1587, %v1585
    %v1694 = vpack.c.b16 %v1588, %v1586
    %v1695 = vpack.c.b16 %v1591, %v1589
    %v1696 = vpack.c.b16 %v1592, %v1590
    %v1697 = vpack.c.b16 %v1595, %v1593
    %v1698 = vpack.c.b16 %v1596, %v1594
    %v1699 = vpack.c.b16 %v1599, %v1597
    %v1700 = vpack.c.b16 %v1600, %v1598
    %v1701 = vpack.c.b16 %v1603, %v1601
    %v1702 = vpack.c.b16 %v1604, %v1602
    %v1703 = vpack.c.b16 %v1607, %v1605
    %v1704 = vpack.c.b16 %v1608, %v1606
    %v1705 = vpack.c.b16 %v1611, %v1609
    %v1706 = vpack.c.b16 %v1612, %v1610
    %v1707 = vpack.c.b16 %v1615, %v1613
    %v1708 = vpack.c.b16 %v1616, %v1614
    %v1709 = vpack.c.b16 %v1619, %v1617
    %v1710 = vpack.c.b16 %v1620, %v1618
    %v1711 = vpack.c.b16 %v1623, %v1621
    %v1712 = vpack.c.b16 %v1624, %v1622
    %v1713 = vpack.c.b16 %v1627, %v1625
    %v1714 = vpack.c.b16 %v1628, %v1626
    %v1715 = vpack.c.b16 %v1631, %v1629
    %v1716 = vpack.c.b16 %v1632, %v1630
    %v1717 = vpack.c.b16 %v1635, %v1633
    %v1718 = vpack.c.b16 %v1636, %v1634
    %v1719 = vpack.c.b16 %v1639, %v1637
    %v1720 = vpack.c.b16 %v1640, %v1638
    %v1721 = vpack.c.b16 %v1643, %v1641
    %v1722 = vpack.c.b16 %v1644, %v1642
    %v1723 = vpack.c.b16 %v1647, %v1645
    %v1724 = vpack.c.b16 %v1648, %v1646
    %v1725 = vpack.c.b16 %v1651, %v1649
    %v1726 = vpack.c.b16 %v1652, %v1650
    %v1727 = vpack.c.b16 %v1655, %v1653
    %v1728 = vpack.c.b16 %v1656, %v1654
    %v1729 = vpack.c.b16 %v1659, %v1657
    %v1730 = vpack.c.b16 %v1660, %v1658
    %v1731 = vpack.c.b16 %v1663, %v1661
    %v1732 = vpack.c.b16 %v1664, %v1662
    %v1733 = vpack.c.b16 %v1667, %v1665
    %v1734 = vpack.c.b16 %v1668, %v1666
    %v1735 = vpack.c.b16 %v1671, %v1669
    %v1736 = vpack.c.b16 %v1672, %v1670
    %1801 = vmatprep.subr.bf16.mxu0 %v1688
    %1802 = vmatpush1.bf16.msra.mxu0 %v1687
    %1803 = vmatprep.subr.bf16.mxu0 %v1686
    %1804 = vmatpush1.bf16.msra.mxu0 %v1685
    %1805 = vmatprep.subr.bf16.mxu0 %v1684
    %1806 = vmatpush1.bf16.msra.mxu0 %v1683
    %1807 = vmatprep.subr.bf16.mxu0 %v1682
    %1808 = vmatpush1.bf16.msra.mxu0 %v1681
    %1809 = vmatprep.subr.bf16.mxu0 %v1680
    %1810 = vmatpush1.bf16.msra.mxu0 %v1679
    %1811 = vmatprep.subr.bf16.mxu0 %v1678
    %1812 = vmatpush1.bf16.msra.mxu0 %v1677
    %1813 = vmatprep.subr.bf16.mxu0 %v1676
    %1814 = vmatpush1.bf16.msra.mxu0 %v1675
    %1815 = vmatprep.subr.bf16.mxu0 %v1674
    %1816 = vmatpush1.bf16.msra.mxu0 %v1673
    %1817 = vmatprep.subr.bf16.mxu0 %v1704
    %1818 = vmatpush2.bf16.msra.mxu0 %v1703
    %1819 = vmatprep.subr.bf16.mxu0 %v1702
    %1820 = vmatpush2.bf16.msra.mxu0 %v1701
    %1821 = vmatprep.subr.bf16.mxu0 %v1700
    %1822 = vmatpush2.bf16.msra.mxu0 %v1699
    %1823 = vmatprep.subr.bf16.mxu0 %v1698
    %1824 = vmatpush2.bf16.msra.mxu0 %v1697
    %1825 = vmatprep.subr.bf16.mxu0 %v1696
    %1826 = vmatpush2.bf16.msra.mxu0 %v1695
    %1827 = vmatprep.subr.bf16.mxu0 %v1694
    %1828 = vmatpush2.bf16.msra.mxu0 %v1693
    %1829 = vmatprep.subr.bf16.mxu0 %v1692
    %1830 = vmatpush2.bf16.msra.mxu0 %v1691
    %1831 = vmatprep.subr.bf16.mxu0 %v1690
    %1832 = vmatpush2.bf16.msra.mxu0 %v1689
    %1833 = vmatprep.mubr.bf16.mxu0 %v1343
    %1834 = vmatmul.mubr.bf16.gmra.mxu0 %v1342
    %v1835 = vpop.f32.mrf.mxu0
    %v1836 = vadd.f32 %v1474, %v1835
    %v1837 = vpop.f32.mrf.mxu0
    %v1838 = vadd.f32 %v1478, %v1837
    %v1839 = vpop.f32.mrf.mxu0
    %v1840 = vadd.f32 %v1474, %v1839
    %v1841 = vpop.f32.mrf.mxu0
    %v1842 = vadd.f32 %v1478, %v1841
    %1843 = vmatprep.mubr.bf16.mxu0 %v1347
    %1844 = vmatmul.mubr.bf16.gmra.mxu0 %v1346
    %v1845 = vpop.f32.mrf.mxu0
    %v1846 = vadd.f32 %v1474, %v1845
    %v1847 = vpop.f32.mrf.mxu0
    %v1848 = vadd.f32 %v1478, %v1847
    %v1849 = vpop.f32.mrf.mxu0
    %v1850 = vadd.f32 %v1474, %v1849
    %v1851 = vpop.f32.mrf.mxu0
    %v1852 = vadd.f32 %v1478, %v1851
    %1853 = vmatprep.mubr.bf16.mxu0 %v1351
    %1854 = vmatmul.mubr.bf16.gmra.mxu0 %v1350
    %v1855 = vpop.f32.mrf.mxu0
    %v1856 = vadd.f32 %v1474, %v1855
    %v1857 = vpop.f32.mrf.mxu0
    %v1858 = vadd.f32 %v1478, %v1857
    %v1859 = vpop.f32.mrf.mxu0
    %v1860 = vadd.f32 %v1474, %v1859
    %v1861 = vpop.f32.mrf.mxu0
    %v1862 = vadd.f32 %v1478, %v1861
    %1863 = vmatprep.mubr.bf16.mxu0 %v1355
    %1864 = vmatmul.mubr.bf16.gmra.mxu0 %v1354
    %v1865 = vpop.f32.mrf.mxu0
    %v1866 = vadd.f32 %v1474, %v1865
    %v1867 = vpop.f32.mrf.mxu0
    %v1868 = vadd.f32 %v1478, %v1867
    %v1869 = vpop.f32.mrf.mxu0
    %v1870 = vadd.f32 %v1474, %v1869
    %v1871 = vpop.f32.mrf.mxu0
    %v1872 = vadd.f32 %v1478, %v1871
    %1873 = vmatprep.mubr.bf16.mxu0 %v1359
    %1874 = vmatmul.mubr.bf16.gmra.mxu0 %v1358
    %v1875 = vpop.f32.mrf.mxu0
    %v1876 = vadd.f32 %v1474, %v1875
    %v1877 = vpop.f32.mrf.mxu0
    %v1878 = vadd.f32 %v1478, %v1877
    %v1879 = vpop.f32.mrf.mxu0
    %v1880 = vadd.f32 %v1474, %v1879
    %v1881 = vpop.f32.mrf.mxu0
    %v1882 = vadd.f32 %v1478, %v1881
    %1883 = vmatprep.mubr.bf16.mxu0 %v1363
    %1884 = vmatmul.mubr.bf16.gmra.mxu0 %v1362
    %v1885 = vpop.f32.mrf.mxu0
    %v1886 = vadd.f32 %v1474, %v1885
    %v1887 = vpop.f32.mrf.mxu0
    %v1888 = vadd.f32 %v1478, %v1887
    %v1889 = vpop.f32.mrf.mxu0
    %v1890 = vadd.f32 %v1474, %v1889
    %v1891 = vpop.f32.mrf.mxu0
    %v1892 = vadd.f32 %v1478, %v1891
    %1893 = vmatprep.mubr.bf16.mxu0 %v1367
    %1894 = vmatmul.mubr.bf16.gmra.mxu0 %v1366
    %v1895 = vpop.f32.mrf.mxu0
    %v1896 = vadd.f32 %v1474, %v1895
    %v1897 = vpop.f32.mrf.mxu0
    %v1898 = vadd.f32 %v1478, %v1897
    %v1899 = vpop.f32.mrf.mxu0
    %v1900 = vadd.f32 %v1474, %v1899
    %v1901 = vpop.f32.mrf.mxu0
    %v1902 = vadd.f32 %v1478, %v1901
    %1903 = vmatprep.mubr.bf16.mxu0 %v1371
    %1904 = vmatmul.mubr.bf16.gmra.mxu0 %v1370
    %v1905 = vpop.f32.mrf.mxu0
    %v1906 = vadd.f32 %v1474, %v1905
    %v1907 = vpop.f32.mrf.mxu0
    %v1908 = vadd.f32 %v1478, %v1907
    %v1909 = vpop.f32.mrf.mxu0
    %v1910 = vadd.f32 %v1474, %v1909
    %v1911 = vpop.f32.mrf.mxu0
    %v1912 = vadd.f32 %v1478, %v1911
    %1913 = vmatprep.mubr.bf16.mxu0 %v1375
    %1914 = vmatmul.mubr.bf16.gmra.mxu0 %v1374
    %v1915 = vpop.f32.mrf.mxu0
    %v1916 = vadd.f32 %v1474, %v1915
    %v1917 = vpop.f32.mrf.mxu0
    %v1918 = vadd.f32 %v1478, %v1917
    %v1919 = vpop.f32.mrf.mxu0
    %v1920 = vadd.f32 %v1474, %v1919
    %v1921 = vpop.f32.mrf.mxu0
    %v1922 = vadd.f32 %v1478, %v1921
    %1923 = vmatprep.mubr.bf16.mxu0 %v1379
    %1924 = vmatmul.mubr.bf16.gmra.mxu0 %v1378
    %v1925 = vpop.f32.mrf.mxu0
    %v1926 = vadd.f32 %v1474, %v1925
    %v1927 = vpop.f32.mrf.mxu0
    %v1928 = vadd.f32 %v1478, %v1927
    %v1929 = vpop.f32.mrf.mxu0
    %v1930 = vadd.f32 %v1474, %v1929
    %v1931 = vpop.f32.mrf.mxu0
    %v1932 = vadd.f32 %v1478, %v1931
    %1933 = vmatprep.mubr.bf16.mxu0 %v1383
    %1934 = vmatmul.mubr.bf16.gmra.mxu0 %v1382
    %v1935 = vpop.f32.mrf.mxu0
    %v1936 = vadd.f32 %v1474, %v1935
    %v1937 = vpop.f32.mrf.mxu0
    %v1938 = vadd.f32 %v1478, %v1937
    %v1939 = vpop.f32.mrf.mxu0
    %v1940 = vadd.f32 %v1474, %v1939
    %v1941 = vpop.f32.mrf.mxu0
    %v1942 = vadd.f32 %v1478, %v1941
    %1943 = vmatprep.mubr.bf16.mxu0 %v1387
    %1944 = vmatmul.mubr.bf16.gmra.mxu0 %v1386
    %v1945 = vpop.f32.mrf.mxu0
    %v1946 = vadd.f32 %v1474, %v1945
    %v1947 = vpop.f32.mrf.mxu0
    %v1948 = vadd.f32 %v1478, %v1947
    %v1949 = vpop.f32.mrf.mxu0
    %v1950 = vadd.f32 %v1474, %v1949
    %v1951 = vpop.f32.mrf.mxu0
    %v1952 = vadd.f32 %v1478, %v1951
    %1953 = vmatprep.mubr.bf16.mxu0 %v1391
    %1954 = vmatmul.mubr.bf16.gmra.mxu0 %v1390
    %v1955 = vpop.f32.mrf.mxu0
    %v1956 = vadd.f32 %v1474, %v1955
    %v1957 = vpop.f32.mrf.mxu0
    %v1958 = vadd.f32 %v1478, %v1957
    %v1959 = vpop.f32.mrf.mxu0
    %v1960 = vadd.f32 %v1474, %v1959
    %v1961 = vpop.f32.mrf.mxu0
    %v1962 = vadd.f32 %v1478, %v1961
    %1963 = vmatprep.mubr.bf16.mxu0 %v1395
    %1964 = vmatmul.mubr.bf16.gmra.mxu0 %v1394
    %v1965 = vpop.f32.mrf.mxu0
    %v1966 = vadd.f32 %v1474, %v1965
    %v1967 = vpop.f32.mrf.mxu0
    %v1968 = vadd.f32 %v1478, %v1967
    %v1969 = vpop.f32.mrf.mxu0
    %v1970 = vadd.f32 %v1474, %v1969
    %v1971 = vpop.f32.mrf.mxu0
    %v1972 = vadd.f32 %v1478, %v1971
    %1973 = vmatprep.mubr.bf16.mxu0 %v1399
    %1974 = vmatmul.mubr.bf16.gmra.mxu0 %v1398
    %v1975 = vpop.f32.mrf.mxu0
    %v1976 = vadd.f32 %v1474, %v1975
    %v1977 = vpop.f32.mrf.mxu0
    %v1978 = vadd.f32 %v1478, %v1977
    %v1979 = vpop.f32.mrf.mxu0
    %v1980 = vadd.f32 %v1474, %v1979
    %v1981 = vpop.f32.mrf.mxu0
    %v1982 = vadd.f32 %v1478, %v1981
    %1983 = vmatprep.mubr.bf16.mxu0 %v1403
    %1984 = vmatmul.mubr.bf16.gmra.mxu0 %v1402
    %v1985 = vpop.f32.mrf.mxu0
    %v1986 = vadd.f32 %v1474, %v1985
    %v1987 = vpop.f32.mrf.mxu0
    %v1988 = vadd.f32 %v1478, %v1987
    %v1989 = vpop.f32.mrf.mxu0
    %v1990 = vadd.f32 %v1474, %v1989
    %v1991 = vpop.f32.mrf.mxu0
    %v1992 = vadd.f32 %v1478, %v1991
    %1993 = vmatprep.mubr.bf16.mxu0 %v1407
    %1994 = vmatmul.mubr.bf16.gmra.mxu0 %v1406
    %v1995 = vpop.f32.mrf.mxu0
    %v1996 = vadd.f32 %v1474, %v1995
    %v1997 = vpop.f32.mrf.mxu0
    %v1998 = vadd.f32 %v1478, %v1997
    %v1999 = vpop.f32.mrf.mxu0
    %v2000 = vadd.f32 %v1474, %v1999
    %v2001 = vpop.f32.mrf.mxu0
    %v2002 = vadd.f32 %v1478, %v2001
    %2003 = vmatprep.mubr.bf16.mxu0 %v1411
    %2004 = vmatmul.mubr.bf16.gmra.mxu0 %v1410
    %v2005 = vpop.f32.mrf.mxu0
    %v2006 = vadd.f32 %v1474, %v2005
    %v2007 = vpop.f32.mrf.mxu0
    %v2008 = vadd.f32 %v1478, %v2007
    %v2009 = vpop.f32.mrf.mxu0
    %v2010 = vadd.f32 %v1474, %v2009
    %v2011 = vpop.f32.mrf.mxu0
    %v2012 = vadd.f32 %v1478, %v2011
    %2013 = vmatprep.mubr.bf16.mxu0 %v1415
    %2014 = vmatmul.mubr.bf16.gmra.mxu0 %v1414
    %v2015 = vpop.f32.mrf.mxu0
    %v2016 = vadd.f32 %v1474, %v2015
    %v2017 = vpop.f32.mrf.mxu0
    %v2018 = vadd.f32 %v1478, %v2017
    %v2019 = vpop.f32.mrf.mxu0
    %v2020 = vadd.f32 %v1474, %v2019
    %v2021 = vpop.f32.mrf.mxu0
    %v2022 = vadd.f32 %v1478, %v2021
    %2023 = vmatprep.mubr.bf16.mxu0 %v1419
    %2024 = vmatmul.mubr.bf16.gmra.mxu0 %v1418
    %v2025 = vpop.f32.mrf.mxu0
    %v2026 = vadd.f32 %v1474, %v2025
    %v2027 = vpop.f32.mrf.mxu0
    %v2028 = vadd.f32 %v1478, %v2027
    %v2029 = vpop.f32.mrf.mxu0
    %v2030 = vadd.f32 %v1474, %v2029
    %v2031 = vpop.f32.mrf.mxu0
    %v2032 = vadd.f32 %v1478, %v2031
    %2033 = vmatprep.mubr.bf16.mxu0 %v1423
    %2034 = vmatmul.mubr.bf16.gmra.mxu0 %v1422
    %v2035 = vpop.f32.mrf.mxu0
    %v2036 = vadd.f32 %v1474, %v2035
    %v2037 = vpop.f32.mrf.mxu0
    %v2038 = vadd.f32 %v1478, %v2037
    %v2039 = vpop.f32.mrf.mxu0
    %v2040 = vadd.f32 %v1474, %v2039
    %v2041 = vpop.f32.mrf.mxu0
    %v2042 = vadd.f32 %v1478, %v2041
    %2043 = vmatprep.mubr.bf16.mxu0 %v1427
    %2044 = vmatmul.mubr.bf16.gmra.mxu0 %v1426
    %v2045 = vpop.f32.mrf.mxu0
    %v2046 = vadd.f32 %v1474, %v2045
    %v2047 = vpop.f32.mrf.mxu0
    %v2048 = vadd.f32 %v1478, %v2047
    %v2049 = vpop.f32.mrf.mxu0
    %v2050 = vadd.f32 %v1474, %v2049
    %v2051 = vpop.f32.mrf.mxu0
    %v2052 = vadd.f32 %v1478, %v2051
    %2053 = vmatprep.mubr.bf16.mxu0 %v1431
    %2054 = vmatmul.mubr.bf16.gmra.mxu0 %v1430
    %v2055 = vpop.f32.mrf.mxu0
    %v2056 = vadd.f32 %v1474, %v2055
    %v2057 = vpop.f32.mrf.mxu0
    %v2058 = vadd.f32 %v1478, %v2057
    %v2059 = vpop.f32.mrf.mxu0
    %v2060 = vadd.f32 %v1474, %v2059
    %v2061 = vpop.f32.mrf.mxu0
    %v2062 = vadd.f32 %v1478, %v2061
    %2063 = vmatprep.mubr.bf16.mxu0 %v1435
    %2064 = vmatmul.mubr.bf16.gmra.mxu0 %v1434
    %v2065 = vpop.f32.mrf.mxu0
    %v2066 = vadd.f32 %v1474, %v2065
    %v2067 = vpop.f32.mrf.mxu0
    %v2068 = vadd.f32 %v1478, %v2067
    %v2069 = vpop.f32.mrf.mxu0
    %v2070 = vadd.f32 %v1474, %v2069
    %v2071 = vpop.f32.mrf.mxu0
    %v2072 = vadd.f32 %v1478, %v2071
    %2073 = vmatprep.mubr.bf16.mxu0 %v1439
    %2074 = vmatmul.mubr.bf16.gmra.mxu0 %v1438
    %v2075 = vpop.f32.mrf.mxu0
    %v2076 = vadd.f32 %v1474, %v2075
    %v2077 = vpop.f32.mrf.mxu0
    %v2078 = vadd.f32 %v1478, %v2077
    %v2079 = vpop.f32.mrf.mxu0
    %v2080 = vadd.f32 %v1474, %v2079
    %v2081 = vpop.f32.mrf.mxu0
    %v2082 = vadd.f32 %v1478, %v2081
    %2083 = vmatprep.mubr.bf16.mxu0 %v1443
    %2084 = vmatmul.mubr.bf16.gmra.mxu0 %v1442
    %v2085 = vpop.f32.mrf.mxu0
    %v2086 = vadd.f32 %v1474, %v2085
    %v2087 = vpop.f32.mrf.mxu0
    %v2088 = vadd.f32 %v1478, %v2087
    %v2089 = vpop.f32.mrf.mxu0
    %v2090 = vadd.f32 %v1474, %v2089
    %v2091 = vpop.f32.mrf.mxu0
    %v2092 = vadd.f32 %v1478, %v2091
    %2093 = vmatprep.mubr.bf16.mxu0 %v1447
    %2094 = vmatmul.mubr.bf16.gmra.mxu0 %v1446
    %v2095 = vpop.f32.mrf.mxu0
    %v2096 = vadd.f32 %v1474, %v2095
    %v2097 = vpop.f32.mrf.mxu0
    %v2098 = vadd.f32 %v1478, %v2097
    %v2099 = vpop.f32.mrf.mxu0
    %v2100 = vadd.f32 %v1474, %v2099
    %v2101 = vpop.f32.mrf.mxu0
    %v2102 = vadd.f32 %v1478, %v2101
    %2103 = vmatprep.mubr.bf16.mxu0 %v1451
    %2104 = vmatmul.mubr.bf16.gmra.mxu0 %v1450
    %v2105 = vpop.f32.mrf.mxu0
    %v2106 = vadd.f32 %v1474, %v2105
    %v2107 = vpop.f32.mrf.mxu0
    %v2108 = vadd.f32 %v1478, %v2107
    %v2109 = vpop.f32.mrf.mxu0
    %v2110 = vadd.f32 %v1474, %v2109
    %v2111 = vpop.f32.mrf.mxu0
    %v2112 = vadd.f32 %v1478, %v2111
    %2113 = vmatprep.mubr.bf16.mxu0 %v1455
    %2114 = vmatmul.mubr.bf16.gmra.mxu0 %v1454
    %v2115 = vpop.f32.mrf.mxu0
    %v2116 = vadd.f32 %v1474, %v2115
    %v2117 = vpop.f32.mrf.mxu0
    %v2118 = vadd.f32 %v1478, %v2117
    %v2119 = vpop.f32.mrf.mxu0
    %v2120 = vadd.f32 %v1474, %v2119
    %v2121 = vpop.f32.mrf.mxu0
    %v2122 = vadd.f32 %v1478, %v2121
    %2123 = vmatprep.mubr.bf16.mxu0 %v1459
    %2124 = vmatmul.mubr.bf16.gmra.mxu0 %v1458
    %v2125 = vpop.f32.mrf.mxu0
    %v2126 = vadd.f32 %v1474, %v2125
    %v2127 = vpop.f32.mrf.mxu0
    %v2128 = vadd.f32 %v1478, %v2127
    %v2129 = vpop.f32.mrf.mxu0
    %v2130 = vadd.f32 %v1474, %v2129
    %v2131 = vpop.f32.mrf.mxu0
    %v2132 = vadd.f32 %v1478, %v2131
    %2133 = vmatprep.mubr.bf16.mxu0 %v1463
    %2134 = vmatmul.mubr.bf16.gmra.mxu0 %v1462
    %v2135 = vpop.f32.mrf.mxu0
    %v2136 = vadd.f32 %v1474, %v2135
    %v2137 = vpop.f32.mrf.mxu0
    %v2138 = vadd.f32 %v1478, %v2137
    %v2139 = vpop.f32.mrf.mxu0
    %v2140 = vadd.f32 %v1474, %v2139
    %v2141 = vpop.f32.mrf.mxu0
    %v2142 = vadd.f32 %v1478, %v2141
    %2143 = vmatprep.mubr.bf16.mxu0 %v1467
    %2144 = vmatmul.mubr.bf16.gmra.mxu0 %v1466
    %v2145 = vpop.f32.mrf.mxu0
    %v2146 = vadd.f32 %v1474, %v2145
    %v2147 = vpop.f32.mrf.mxu0
    %v2148 = vadd.f32 %v1478, %v2147
    %v2149 = vpop.f32.mrf.mxu0
    %v2150 = vadd.f32 %v1474, %v2149
    %v2151 = vpop.f32.mrf.mxu0
    %v2152 = vadd.f32 %v1478, %v2151
    %2153 = vdwg.mxu0
    %2154 = vmatprep.subr.bf16.mxu0 %v1720
    %2155 = vmatpush1.bf16.msra.mxu0 %v1719
    %2156 = vmatprep.subr.bf16.mxu0 %v1718
    %2157 = vmatpush1.bf16.msra.mxu0 %v1717
    %2158 = vmatprep.subr.bf16.mxu0 %v1716
    %2159 = vmatpush1.bf16.msra.mxu0 %v1715
    %2160 = vmatprep.subr.bf16.mxu0 %v1714
    %2161 = vmatpush1.bf16.msra.mxu0 %v1713
    %2162 = vmatprep.subr.bf16.mxu0 %v1712
    %2163 = vmatpush1.bf16.msra.mxu0 %v1711
    %2164 = vmatprep.subr.bf16.mxu0 %v1710
    %2165 = vmatpush1.bf16.msra.mxu0 %v1709
    %2166 = vmatprep.subr.bf16.mxu0 %v1708
    %2167 = vmatpush1.bf16.msra.mxu0 %v1707
    %2168 = vmatprep.subr.bf16.mxu0 %v1706
    %2169 = vmatpush1.bf16.msra.mxu0 %v1705
    %2170 = vmatprep.subr.bf16.mxu0 %v1736
    %2171 = vmatpush2.bf16.msra.mxu0 %v1735
    %2172 = vmatprep.subr.bf16.mxu0 %v1734
    %2173 = vmatpush2.bf16.msra.mxu0 %v1733
    %2174 = vmatprep.subr.bf16.mxu0 %v1732
    %2175 = vmatpush2.bf16.msra.mxu0 %v1731
    %2176 = vmatprep.subr.bf16.mxu0 %v1730
    %2177 = vmatpush2.bf16.msra.mxu0 %v1729
    %2178 = vmatprep.subr.bf16.mxu0 %v1728
    %2179 = vmatpush2.bf16.msra.mxu0 %v1727
    %2180 = vmatprep.subr.bf16.mxu0 %v1726
    %2181 = vmatpush2.bf16.msra.mxu0 %v1725
    %2182 = vmatprep.subr.bf16.mxu0 %v1724
    %2183 = vmatpush2.bf16.msra.mxu0 %v1723
    %2184 = vmatprep.subr.bf16.mxu0 %v1722
    %2185 = vmatpush2.bf16.msra.mxu0 %v1721
    %2186 = vmatprep.mubr.bf16.mxu0 %v1345
    %2187 = vmatmul.mubr.bf16.gmra.mxu0 %v1344
    %v2188 = vpop.f32.mrf.mxu0
    %v2189 = vadd.f32 %v1836, %v2188
    %v2190 = vpop.f32.mrf.mxu0
    %v2191 = vadd.f32 %v1838, %v2190
    %v2192 = vpop.f32.mrf.mxu0
    %v2193 = vadd.f32 %v1840, %v2192
    %v2194 = vpop.f32.mrf.mxu0
    %v2195 = vadd.f32 %v1842, %v2194
    %2196 = vmatprep.mubr.bf16.mxu0 %v1349
    %2197 = vmatmul.mubr.bf16.gmra.mxu0 %v1348
    %v2198 = vpop.f32.mrf.mxu0
    %v2199 = vadd.f32 %v1846, %v2198
    %v2200 = vpop.f32.mrf.mxu0
    %v2201 = vadd.f32 %v1848, %v2200
    %v2202 = vpop.f32.mrf.mxu0
    %v2203 = vadd.f32 %v1850, %v2202
    %v2204 = vpop.f32.mrf.mxu0
    %v2205 = vadd.f32 %v1852, %v2204
    %2206 = vmatprep.mubr.bf16.mxu0 %v1353
    %2207 = vmatmul.mubr.bf16.gmra.mxu0 %v1352
    %v2208 = vpop.f32.mrf.mxu0
    %v2209 = vadd.f32 %v1856, %v2208
    %v2210 = vpop.f32.mrf.mxu0
    %v2211 = vadd.f32 %v1858, %v2210
    %v2212 = vpop.f32.mrf.mxu0
    %v2213 = vadd.f32 %v1860, %v2212
    %v2214 = vpop.f32.mrf.mxu0
    %v2215 = vadd.f32 %v1862, %v2214
    %2216 = vmatprep.mubr.bf16.mxu0 %v1357
    %2217 = vmatmul.mubr.bf16.gmra.mxu0 %v1356
    %v2218 = vpop.f32.mrf.mxu0
    %v2219 = vadd.f32 %v1866, %v2218
    %v2220 = vpop.f32.mrf.mxu0
    %v2221 = vadd.f32 %v1868, %v2220
    %v2222 = vpop.f32.mrf.mxu0
    %v2223 = vadd.f32 %v1870, %v2222
    %v2224 = vpop.f32.mrf.mxu0
    %v2225 = vadd.f32 %v1872, %v2224
    %2226 = vmatprep.mubr.bf16.mxu0 %v1361
    %2227 = vmatmul.mubr.bf16.gmra.mxu0 %v1360
    %v2228 = vpop.f32.mrf.mxu0
    %v2229 = vadd.f32 %v1876, %v2228
    %v2230 = vpop.f32.mrf.mxu0
    %v2231 = vadd.f32 %v1878, %v2230
    %v2232 = vpop.f32.mrf.mxu0
    %v2233 = vadd.f32 %v1880, %v2232
    %v2234 = vpop.f32.mrf.mxu0
    %v2235 = vadd.f32 %v1882, %v2234
    %2236 = vmatprep.mubr.bf16.mxu0 %v1365
    %2237 = vmatmul.mubr.bf16.gmra.mxu0 %v1364
    %v2238 = vpop.f32.mrf.mxu0
    %v2239 = vadd.f32 %v1886, %v2238
    %v2240 = vpop.f32.mrf.mxu0
    %v2241 = vadd.f32 %v1888, %v2240
    %v2242 = vpop.f32.mrf.mxu0
    %v2243 = vadd.f32 %v1890, %v2242
    %v2244 = vpop.f32.mrf.mxu0
    %v2245 = vadd.f32 %v1892, %v2244
    %2246 = vmatprep.mubr.bf16.mxu0 %v1369
    %2247 = vmatmul.mubr.bf16.gmra.mxu0 %v1368
    %v2248 = vpop.f32.mrf.mxu0
    %v2249 = vadd.f32 %v1896, %v2248
    %v2250 = vpop.f32.mrf.mxu0
    %v2251 = vadd.f32 %v1898, %v2250
    %v2252 = vpop.f32.mrf.mxu0
    %v2253 = vadd.f32 %v1900, %v2252
    %v2254 = vpop.f32.mrf.mxu0
    %v2255 = vadd.f32 %v1902, %v2254
    %2256 = vmatprep.mubr.bf16.mxu0 %v1373
    %2257 = vmatmul.mubr.bf16.gmra.mxu0 %v1372
    %v2258 = vpop.f32.mrf.mxu0
    %v2259 = vadd.f32 %v1906, %v2258
    %v2260 = vpop.f32.mrf.mxu0
    %v2261 = vadd.f32 %v1908, %v2260
    %v2262 = vpop.f32.mrf.mxu0
    %v2263 = vadd.f32 %v1910, %v2262
    %v2264 = vpop.f32.mrf.mxu0
    %v2265 = vadd.f32 %v1912, %v2264
    %2266 = vmatprep.mubr.bf16.mxu0 %v1377
    %2267 = vmatmul.mubr.bf16.gmra.mxu0 %v1376
    %v2268 = vpop.f32.mrf.mxu0
    %v2269 = vadd.f32 %v1916, %v2268
    %v2270 = vpop.f32.mrf.mxu0
    %v2271 = vadd.f32 %v1918, %v2270
    %v2272 = vpop.f32.mrf.mxu0
    %v2273 = vadd.f32 %v1920, %v2272
    %v2274 = vpop.f32.mrf.mxu0
    %v2275 = vadd.f32 %v1922, %v2274
    %2276 = vmatprep.mubr.bf16.mxu0 %v1381
    %2277 = vmatmul.mubr.bf16.gmra.mxu0 %v1380
    %v2278 = vpop.f32.mrf.mxu0
    %v2279 = vadd.f32 %v1926, %v2278
    %v2280 = vpop.f32.mrf.mxu0
    %v2281 = vadd.f32 %v1928, %v2280
    %v2282 = vpop.f32.mrf.mxu0
    %v2283 = vadd.f32 %v1930, %v2282
    %v2284 = vpop.f32.mrf.mxu0
    %v2285 = vadd.f32 %v1932, %v2284
    %2286 = vmatprep.mubr.bf16.mxu0 %v1385
    %2287 = vmatmul.mubr.bf16.gmra.mxu0 %v1384
    %v2288 = vpop.f32.mrf.mxu0
    %v2289 = vadd.f32 %v1936, %v2288
    %v2290 = vpop.f32.mrf.mxu0
    %v2291 = vadd.f32 %v1938, %v2290
    %v2292 = vpop.f32.mrf.mxu0
    %v2293 = vadd.f32 %v1940, %v2292
    %v2294 = vpop.f32.mrf.mxu0
    %v2295 = vadd.f32 %v1942, %v2294
    %2296 = vmatprep.mubr.bf16.mxu0 %v1389
    %2297 = vmatmul.mubr.bf16.gmra.mxu0 %v1388
    %v2298 = vpop.f32.mrf.mxu0
    %v2299 = vadd.f32 %v1946, %v2298
    %v2300 = vpop.f32.mrf.mxu0
    %v2301 = vadd.f32 %v1948, %v2300
    %v2302 = vpop.f32.mrf.mxu0
    %v2303 = vadd.f32 %v1950, %v2302
    %v2304 = vpop.f32.mrf.mxu0
    %v2305 = vadd.f32 %v1952, %v2304
    %2306 = vmatprep.mubr.bf16.mxu0 %v1393
    %2307 = vmatmul.mubr.bf16.gmra.mxu0 %v1392
    %v2308 = vpop.f32.mrf.mxu0
    %v2309 = vadd.f32 %v1956, %v2308
    %v2310 = vpop.f32.mrf.mxu0
    %v2311 = vadd.f32 %v1958, %v2310
    %v2312 = vpop.f32.mrf.mxu0
    %v2313 = vadd.f32 %v1960, %v2312
    %v2314 = vpop.f32.mrf.mxu0
    %v2315 = vadd.f32 %v1962, %v2314
    %2316 = vmatprep.mubr.bf16.mxu0 %v1397
    %2317 = vmatmul.mubr.bf16.gmra.mxu0 %v1396
    %v2318 = vpop.f32.mrf.mxu0
    %v2319 = vadd.f32 %v1966, %v2318
    %v2320 = vpop.f32.mrf.mxu0
    %v2321 = vadd.f32 %v1968, %v2320
    %v2322 = vpop.f32.mrf.mxu0
    %v2323 = vadd.f32 %v1970, %v2322
    %v2324 = vpop.f32.mrf.mxu0
    %v2325 = vadd.f32 %v1972, %v2324
    %2326 = vmatprep.mubr.bf16.mxu0 %v1401
    %2327 = vmatmul.mubr.bf16.gmra.mxu0 %v1400
    %v2328 = vpop.f32.mrf.mxu0
    %v2329 = vadd.f32 %v1976, %v2328
    %v2330 = vpop.f32.mrf.mxu0
    %v2331 = vadd.f32 %v1978, %v2330
    %v2332 = vpop.f32.mrf.mxu0
    %v2333 = vadd.f32 %v1980, %v2332
    %v2334 = vpop.f32.mrf.mxu0
    %v2335 = vadd.f32 %v1982, %v2334
    %2336 = vmatprep.mubr.bf16.mxu0 %v1405
    %2337 = vmatmul.mubr.bf16.gmra.mxu0 %v1404
    %v2338 = vpop.f32.mrf.mxu0
    %v2339 = vadd.f32 %v1986, %v2338
    %v2340 = vpop.f32.mrf.mxu0
    %v2341 = vadd.f32 %v1988, %v2340
    %v2342 = vpop.f32.mrf.mxu0
    %v2343 = vadd.f32 %v1990, %v2342
    %v2344 = vpop.f32.mrf.mxu0
    %v2345 = vadd.f32 %v1992, %v2344
    %2346 = vmatprep.mubr.bf16.mxu0 %v1409
    %2347 = vmatmul.mubr.bf16.gmra.mxu0 %v1408
    %v2348 = vpop.f32.mrf.mxu0
    %v2349 = vadd.f32 %v1996, %v2348
    %v2350 = vpop.f32.mrf.mxu0
    %v2351 = vadd.f32 %v1998, %v2350
    %v2352 = vpop.f32.mrf.mxu0
    %v2353 = vadd.f32 %v2000, %v2352
    %v2354 = vpop.f32.mrf.mxu0
    %v2355 = vadd.f32 %v2002, %v2354
    %2356 = vmatprep.mubr.bf16.mxu0 %v1413
    %2357 = vmatmul.mubr.bf16.gmra.mxu0 %v1412
    %v2358 = vpop.f32.mrf.mxu0
    %v2359 = vadd.f32 %v2006, %v2358
    %v2360 = vpop.f32.mrf.mxu0
    %v2361 = vadd.f32 %v2008, %v2360
    %v2362 = vpop.f32.mrf.mxu0
    %v2363 = vadd.f32 %v2010, %v2362
    %v2364 = vpop.f32.mrf.mxu0
    %v2365 = vadd.f32 %v2012, %v2364
    %2366 = vmatprep.mubr.bf16.mxu0 %v1417
    %2367 = vmatmul.mubr.bf16.gmra.mxu0 %v1416
    %v2368 = vpop.f32.mrf.mxu0
    %v2369 = vadd.f32 %v2016, %v2368
    %v2370 = vpop.f32.mrf.mxu0
    %v2371 = vadd.f32 %v2018, %v2370
    %v2372 = vpop.f32.mrf.mxu0
    %v2373 = vadd.f32 %v2020, %v2372
    %v2374 = vpop.f32.mrf.mxu0
    %v2375 = vadd.f32 %v2022, %v2374
    %2376 = vmatprep.mubr.bf16.mxu0 %v1421
    %2377 = vmatmul.mubr.bf16.gmra.mxu0 %v1420
    %v2378 = vpop.f32.mrf.mxu0
    %v2379 = vadd.f32 %v2026, %v2378
    %v2380 = vpop.f32.mrf.mxu0
    %v2381 = vadd.f32 %v2028, %v2380
    %v2382 = vpop.f32.mrf.mxu0
    %v2383 = vadd.f32 %v2030, %v2382
    %v2384 = vpop.f32.mrf.mxu0
    %v2385 = vadd.f32 %v2032, %v2384
    %2386 = vmatprep.mubr.bf16.mxu0 %v1425
    %2387 = vmatmul.mubr.bf16.gmra.mxu0 %v1424
    %v2388 = vpop.f32.mrf.mxu0
    %v2389 = vadd.f32 %v2036, %v2388
    %v2390 = vpop.f32.mrf.mxu0
    %v2391 = vadd.f32 %v2038, %v2390
    %v2392 = vpop.f32.mrf.mxu0
    %v2393 = vadd.f32 %v2040, %v2392
    %v2394 = vpop.f32.mrf.mxu0
    %v2395 = vadd.f32 %v2042, %v2394
    %2396 = vmatprep.mubr.bf16.mxu0 %v1429
    %2397 = vmatmul.mubr.bf16.gmra.mxu0 %v1428
    %v2398 = vpop.f32.mrf.mxu0
    %v2399 = vadd.f32 %v2046, %v2398
    %v2400 = vpop.f32.mrf.mxu0
    %v2401 = vadd.f32 %v2048, %v2400
    %v2402 = vpop.f32.mrf.mxu0
    %v2403 = vadd.f32 %v2050, %v2402
    %v2404 = vpop.f32.mrf.mxu0
    %v2405 = vadd.f32 %v2052, %v2404
    %2406 = vmatprep.mubr.bf16.mxu0 %v1433
    %2407 = vmatmul.mubr.bf16.gmra.mxu0 %v1432
    %v2408 = vpop.f32.mrf.mxu0
    %v2409 = vadd.f32 %v2056, %v2408
    %v2410 = vpop.f32.mrf.mxu0
    %v2411 = vadd.f32 %v2058, %v2410
    %v2412 = vpop.f32.mrf.mxu0
    %v2413 = vadd.f32 %v2060, %v2412
    %v2414 = vpop.f32.mrf.mxu0
    %v2415 = vadd.f32 %v2062, %v2414
    %2416 = vmatprep.mubr.bf16.mxu0 %v1437
    %2417 = vmatmul.mubr.bf16.gmra.mxu0 %v1436
    %v2418 = vpop.f32.mrf.mxu0
    %v2419 = vadd.f32 %v2066, %v2418
    %v2420 = vpop.f32.mrf.mxu0
    %v2421 = vadd.f32 %v2068, %v2420
    %v2422 = vpop.f32.mrf.mxu0
    %v2423 = vadd.f32 %v2070, %v2422
    %v2424 = vpop.f32.mrf.mxu0
    %v2425 = vadd.f32 %v2072, %v2424
    %2426 = vmatprep.mubr.bf16.mxu0 %v1441
    %2427 = vmatmul.mubr.bf16.gmra.mxu0 %v1440
    %v2428 = vpop.f32.mrf.mxu0
    %v2429 = vadd.f32 %v2076, %v2428
    %v2430 = vpop.f32.mrf.mxu0
    %v2431 = vadd.f32 %v2078, %v2430
    %v2432 = vpop.f32.mrf.mxu0
    %v2433 = vadd.f32 %v2080, %v2432
    %v2434 = vpop.f32.mrf.mxu0
    %v2435 = vadd.f32 %v2082, %v2434
    %2436 = vmatprep.mubr.bf16.mxu0 %v1445
    %2437 = vmatmul.mubr.bf16.gmra.mxu0 %v1444
    %v2438 = vpop.f32.mrf.mxu0
    %v2439 = vadd.f32 %v2086, %v2438
    %v2440 = vpop.f32.mrf.mxu0
    %v2441 = vadd.f32 %v2088, %v2440
    %v2442 = vpop.f32.mrf.mxu0
    %v2443 = vadd.f32 %v2090, %v2442
    %v2444 = vpop.f32.mrf.mxu0
    %v2445 = vadd.f32 %v2092, %v2444
    %2446 = vmatprep.mubr.bf16.mxu0 %v1449
    %2447 = vmatmul.mubr.bf16.gmra.mxu0 %v1448
    %v2448 = vpop.f32.mrf.mxu0
    %v2449 = vadd.f32 %v2096, %v2448
    %v2450 = vpop.f32.mrf.mxu0
    %v2451 = vadd.f32 %v2098, %v2450
    %v2452 = vpop.f32.mrf.mxu0
    %v2453 = vadd.f32 %v2100, %v2452
    %v2454 = vpop.f32.mrf.mxu0
    %v2455 = vadd.f32 %v2102, %v2454
    %2456 = vmatprep.mubr.bf16.mxu0 %v1453
    %2457 = vmatmul.mubr.bf16.gmra.mxu0 %v1452
    %v2458 = vpop.f32.mrf.mxu0
    %v2459 = vadd.f32 %v2106, %v2458
    %v2460 = vpop.f32.mrf.mxu0
    %v2461 = vadd.f32 %v2108, %v2460
    %v2462 = vpop.f32.mrf.mxu0
    %v2463 = vadd.f32 %v2110, %v2462
    %v2464 = vpop.f32.mrf.mxu0
    %v2465 = vadd.f32 %v2112, %v2464
    %2466 = vmatprep.mubr.bf16.mxu0 %v1457
    %2467 = vmatmul.mubr.bf16.gmra.mxu0 %v1456
    %v2468 = vpop.f32.mrf.mxu0
    %v2469 = vadd.f32 %v2116, %v2468
    %v2470 = vpop.f32.mrf.mxu0
    %v2471 = vadd.f32 %v2118, %v2470
    %v2472 = vpop.f32.mrf.mxu0
    %v2473 = vadd.f32 %v2120, %v2472
    %v2474 = vpop.f32.mrf.mxu0
    %v2475 = vadd.f32 %v2122, %v2474
    %2476 = vmatprep.mubr.bf16.mxu0 %v1461
    %2477 = vmatmul.mubr.bf16.gmra.mxu0 %v1460
    %v2478 = vpop.f32.mrf.mxu0
    %v2479 = vadd.f32 %v2126, %v2478
    %v2480 = vpop.f32.mrf.mxu0
    %v2481 = vadd.f32 %v2128, %v2480
    %v2482 = vpop.f32.mrf.mxu0
    %v2483 = vadd.f32 %v2130, %v2482
    %v2484 = vpop.f32.mrf.mxu0
    %v2485 = vadd.f32 %v2132, %v2484
    %2486 = vmatprep.mubr.bf16.mxu0 %v1465
    %2487 = vmatmul.mubr.bf16.gmra.mxu0 %v1464
    %v2488 = vpop.f32.mrf.mxu0
    %v2489 = vadd.f32 %v2136, %v2488
    %v2490 = vpop.f32.mrf.mxu0
    %v2491 = vadd.f32 %v2138, %v2490
    %v2492 = vpop.f32.mrf.mxu0
    %v2493 = vadd.f32 %v2140, %v2492
    %v2494 = vpop.f32.mrf.mxu0
    %v2495 = vadd.f32 %v2142, %v2494
    %2496 = vmatprep.mubr.bf16.mxu0 %v1469
    %2497 = vmatmul.mubr.bf16.gmra.mxu0 %v1468
    %v2498 = vpop.f32.mrf.mxu0
    %v2499 = vadd.f32 %v2146, %v2498
    %v2500 = vpop.f32.mrf.mxu0
    %v2501 = vadd.f32 %v2148, %v2500
    %v2502 = vpop.f32.mrf.mxu0
    %v2503 = vadd.f32 %v2150, %v2502
    %v2504 = vpop.f32.mrf.mxu0
    %v2505 = vadd.f32 %v2152, %v2504
    %2506 = vdwg.mxu0
    %v2507 = vmax.f32 %v2189, 0.0
    %v2508 = vmax.f32 %v2191, 0.0
    %v2509 = vmax.f32 %v2193, 0.0
    %v2510 = vmax.f32 %v2195, 0.0
    %v2511 = vmax.f32 %v2199, 0.0
    %v2512 = vmax.f32 %v2201, 0.0
    %v2513 = vmax.f32 %v2203, 0.0
    %v2514 = vmax.f32 %v2205, 0.0
    %v2515 = vmax.f32 %v2209, 0.0
    %v2516 = vmax.f32 %v2211, 0.0
    %v2517 = vmax.f32 %v2213, 0.0
    %v2518 = vmax.f32 %v2215, 0.0
    %v2519 = vmax.f32 %v2219, 0.0
    %v2520 = vmax.f32 %v2221, 0.0
    %v2521 = vmax.f32 %v2223, 0.0
    %v2522 = vmax.f32 %v2225, 0.0
    %v2523 = vmax.f32 %v2229, 0.0
    %v2524 = vmax.f32 %v2231, 0.0
    %v2525 = vmax.f32 %v2233, 0.0
    %v2526 = vmax.f32 %v2235, 0.0
    %v2527 = vmax.f32 %v2239, 0.0
    %v2528 = vmax.f32 %v2241, 0.0
    %v2529 = vmax.f32 %v2243, 0.0
    %v2530 = vmax.f32 %v2245, 0.0
    %v2531 = vmax.f32 %v2249, 0.0
    %v2532 = vmax.f32 %v2251, 0.0
    %v2533 = vmax.f32 %v2253, 0.0
    %v2534 = vmax.f32 %v2255, 0.0
    %v2535 = vmax.f32 %v2259, 0.0
    %v2536 = vmax.f32 %v2261, 0.0
    %v2537 = vmax.f32 %v2263, 0.0
    %v2538 = vmax.f32 %v2265, 0.0
    %v2539 = vmax.f32 %v2269, 0.0
    %v2540 = vmax.f32 %v2271, 0.0
    %v2541 = vmax.f32 %v2273, 0.0
    %v2542 = vmax.f32 %v2275, 0.0
    %v2543 = vmax.f32 %v2279, 0.0
    %v2544 = vmax.f32 %v2281, 0.0
    %v2545 = vmax.f32 %v2283, 0.0
    %v2546 = vmax.f32 %v2285, 0.0
    %v2547 = vmax.f32 %v2289, 0.0
    %v2548 = vmax.f32 %v2291, 0.0
    %v2549 = vmax.f32 %v2293, 0.0
    %v2550 = vmax.f32 %v2295, 0.0
    %v2551 = vmax.f32 %v2299, 0.0
    %v2552 = vmax.f32 %v2301, 0.0
    %v2553 = vmax.f32 %v2303, 0.0
    %v2554 = vmax.f32 %v2305, 0.0
    %v2555 = vmax.f32 %v2309, 0.0
    %v2556 = vmax.f32 %v2311, 0.0
    %v2557 = vmax.f32 %v2313, 0.0
    %v2558 = vmax.f32 %v2315, 0.0
    %v2559 = vmax.f32 %v2319, 0.0
    %v2560 = vmax.f32 %v2321, 0.0
    %v2561 = vmax.f32 %v2323, 0.0
    %v2562 = vmax.f32 %v2325, 0.0
    %v2563 = vmax.f32 %v2329, 0.0
    %v2564 = vmax.f32 %v2331, 0.0
    %v2565 = vmax.f32 %v2333, 0.0
    %v2566 = vmax.f32 %v2335, 0.0
    %v2567 = vmax.f32 %v2339, 0.0
    %v2568 = vmax.f32 %v2341, 0.0
    %v2569 = vmax.f32 %v2343, 0.0
    %v2570 = vmax.f32 %v2345, 0.0
    %v2571 = vmax.f32 %v2349, 0.0
    %v2572 = vmax.f32 %v2351, 0.0
    %v2573 = vmax.f32 %v2353, 0.0
    %v2574 = vmax.f32 %v2355, 0.0
    %v2575 = vmax.f32 %v2359, 0.0
    %v2576 = vmax.f32 %v2361, 0.0
    %v2577 = vmax.f32 %v2363, 0.0
    %v2578 = vmax.f32 %v2365, 0.0
    %v2579 = vmax.f32 %v2369, 0.0
    %v2580 = vmax.f32 %v2371, 0.0
    %v2581 = vmax.f32 %v2373, 0.0
    %v2582 = vmax.f32 %v2375, 0.0
    %v2583 = vmax.f32 %v2379, 0.0
    %v2584 = vmax.f32 %v2381, 0.0
    %v2585 = vmax.f32 %v2383, 0.0
    %v2586 = vmax.f32 %v2385, 0.0
    %v2587 = vmax.f32 %v2389, 0.0
    %v2588 = vmax.f32 %v2391, 0.0
    %v2589 = vmax.f32 %v2393, 0.0
    %v2590 = vmax.f32 %v2395, 0.0
    %v2591 = vmax.f32 %v2399, 0.0
    %v2592 = vmax.f32 %v2401, 0.0
    %v2593 = vmax.f32 %v2403, 0.0
    %v2594 = vmax.f32 %v2405, 0.0
    %v2595 = vmax.f32 %v2409, 0.0
    %v2596 = vmax.f32 %v2411, 0.0
    %v2597 = vmax.f32 %v2413, 0.0
    %v2598 = vmax.f32 %v2415, 0.0
    %v2599 = vmax.f32 %v2419, 0.0
    %v2600 = vmax.f32 %v2421, 0.0
    %v2601 = vmax.f32 %v2423, 0.0
    %v2602 = vmax.f32 %v2425, 0.0
    %v2603 = vmax.f32 %v2429, 0.0
    %v2604 = vmax.f32 %v2431, 0.0
    %v2605 = vmax.f32 %v2433, 0.0
    %v2606 = vmax.f32 %v2435, 0.0
    %v2607 = vmax.f32 %v2439, 0.0
    %v2608 = vmax.f32 %v2441, 0.0
    %v2609 = vmax.f32 %v2443, 0.0
    %v2610 = vmax.f32 %v2445, 0.0
    %v2611 = vmax.f32 %v2449, 0.0
    %v2612 = vmax.f32 %v2451, 0.0
    %v2613 = vmax.f32 %v2453, 0.0
    %v2614 = vmax.f32 %v2455, 0.0
    %v2615 = vmax.f32 %v2459, 0.0
    %v2616 = vmax.f32 %v2461, 0.0
    %v2617 = vmax.f32 %v2463, 0.0
    %v2618 = vmax.f32 %v2465, 0.0
    %v2619 = vmax.f32 %v2469, 0.0
    %v2620 = vmax.f32 %v2471, 0.0
    %v2621 = vmax.f32 %v2473, 0.0
    %v2622 = vmax.f32 %v2475, 0.0
    %v2623 = vmax.f32 %v2479, 0.0
    %v2624 = vmax.f32 %v2481, 0.0
    %v2625 = vmax.f32 %v2483, 0.0
    %v2626 = vmax.f32 %v2485, 0.0
    %v2627 = vmax.f32 %v2489, 0.0
    %v2628 = vmax.f32 %v2491, 0.0
    %v2629 = vmax.f32 %v2493, 0.0
    %v2630 = vmax.f32 %v2495, 0.0
    %v2631 = vmax.f32 %v2499, 0.0
    %v2632 = vmax.f32 %v2501, 0.0
    %v2633 = vmax.f32 %v2503, 0.0
    %v2634 = vmax.f32 %v2505, 0.0
    %v2635 = vld [vmem:[%s5] sm:$0xf]
    %v2636 = vld [vmem:[%s5 + $0x4] sm:$0xf]
    %v2637 = vld [vmem:[%s5 + $0x8] sm:$0xf]
    %v2638 = vld [vmem:[%s5 + $0xc] sm:$0xf]
    %v2639 = vld [vmem:[%s5 + $0x10] sm:$0xf]
    %v2640 = vld [vmem:[%s5 + $0x14] sm:$0xf]
    %v2641 = vld [vmem:[%s5 + $0x18] sm:$0xf]
    %v2642 = vld [vmem:[%s5 + $0x1c] sm:$0xf]
    %v2643 = vld [vmem:[%s5 + $0x20] sm:$0xf]
    %v2644 = vld [vmem:[%s5 + $0x24] sm:$0xf]
    %v2645 = vld [vmem:[%s5 + $0x28] sm:$0xf]
    %v2646 = vld [vmem:[%s5 + $0x2c] sm:$0xf]
    %v2647 = vld [vmem:[%s5 + $0x30] sm:$0xf]
    %v2648 = vld [vmem:[%s5 + $0x34] sm:$0xf]
    %v2649 = vld [vmem:[%s5 + $0x38] sm:$0xf]
    %v2650 = vld [vmem:[%s5 + $0x3c] sm:$0xf]
    %v2651 = vld [vmem:[%s5 + $0x40] sm:$0xf]
    %v2652 = vld [vmem:[%s5 + $0x44] sm:$0xf]
    %v2653 = vld [vmem:[%s5 + $0x48] sm:$0xf]
    %v2654 = vld [vmem:[%s5 + $0x4c] sm:$0xf]
    %v2655 = vld [vmem:[%s5 + $0x50] sm:$0xf]
    %v2656 = vld [vmem:[%s5 + $0x54] sm:$0xf]
    %v2657 = vld [vmem:[%s5 + $0x58] sm:$0xf]
    %v2658 = vld [vmem:[%s5 + $0x5c] sm:$0xf]
    %v2659 = vld [vmem:[%s5 + $0x60] sm:$0xf]
    %v2660 = vld [vmem:[%s5 + $0x64] sm:$0xf]
    %v2661 = vld [vmem:[%s5 + $0x68] sm:$0xf]
    %v2662 = vld [vmem:[%s5 + $0x6c] sm:$0xf]
    %v2663 = vld [vmem:[%s5 + $0x70] sm:$0xf]
    %v2664 = vld [vmem:[%s5 + $0x74] sm:$0xf]
    %v2665 = vld [vmem:[%s5 + $0x78] sm:$0xf]
    %v2666 = vld [vmem:[%s5 + $0x7c] sm:$0xf]
    %v2667 = vld [vmem:[%s6] sm:$0x1]
    %v2668 = vpack.c.bf16 %v2509, %v2507
    %v2669 = vpack.c.bf16 %v2510, %v2508
    %v2670 = vpack.c.bf16 %v2513, %v2511
    %v2671 = vpack.c.bf16 %v2514, %v2512
    %v2672 = vpack.c.bf16 %v2517, %v2515
    %v2673 = vpack.c.bf16 %v2518, %v2516
    %v2674 = vpack.c.bf16 %v2521, %v2519
    %v2675 = vpack.c.bf16 %v2522, %v2520
    %v2676 = vpack.c.bf16 %v2525, %v2523
    %v2677 = vpack.c.bf16 %v2526, %v2524
    %v2678 = vpack.c.bf16 %v2529, %v2527
    %v2679 = vpack.c.bf16 %v2530, %v2528
    %v2680 = vpack.c.bf16 %v2533, %v2531
    %v2681 = vpack.c.bf16 %v2534, %v2532
    %v2682 = vpack.c.bf16 %v2537, %v2535
    %v2683 = vpack.c.bf16 %v2538, %v2536
    %v2684 = vpack.c.bf16 %v2541, %v2539
    %v2685 = vpack.c.bf16 %v2542, %v2540
    %v2686 = vpack.c.bf16 %v2545, %v2543
    %v2687 = vpack.c.bf16 %v2546, %v2544
    %v2688 = vpack.c.bf16 %v2549, %v2547
    %v2689 = vpack.c.bf16 %v2550, %v2548
    %v2690 = vpack.c.bf16 %v2553, %v2551
    %v2691 = vpack.c.bf16 %v2554, %v2552
    %v2692 = vpack.c.bf16 %v2557, %v2555
    %v2693 = vpack.c.bf16 %v2558, %v2556
    %v2694 = vpack.c.bf16 %v2561, %v2559
    %v2695 = vpack.c.bf16 %v2562, %v2560
    %v2696 = vpack.c.bf16 %v2565, %v2563
    %v2697 = vpack.c.bf16 %v2566, %v2564
    %v2698 = vpack.c.bf16 %v2569, %v2567
    %v2699 = vpack.c.bf16 %v2570, %v2568
    %v2700 = vpack.c.bf16 %v2573, %v2571
    %v2701 = vpack.c.bf16 %v2574, %v2572
    %v2702 = vpack.c.bf16 %v2577, %v2575
    %v2703 = vpack.c.bf16 %v2578, %v2576
    %v2704 = vpack.c.bf16 %v2581, %v2579
    %v2705 = vpack.c.bf16 %v2582, %v2580
    %v2706 = vpack.c.bf16 %v2585, %v2583
    %v2707 = vpack.c.bf16 %v2586, %v2584
    %v2708 = vpack.c.bf16 %v2589, %v2587
    %v2709 = vpack.c.bf16 %v2590, %v2588
    %v2710 = vpack.c.bf16 %v2593, %v2591
    %v2711 = vpack.c.bf16 %v2594, %v2592
    %v2712 = vpack.c.bf16 %v2597, %v2595
    %v2713 = vpack.c.bf16 %v2598, %v2596
    %v2714 = vpack.c.bf16 %v2601, %v2599
    %v2715 = vpack.c.bf16 %v2602, %v2600
    %v2716 = vpack.c.bf16 %v2605, %v2603
    %v2717 = vpack.c.bf16 %v2606, %v2604
    %v2718 = vpack.c.bf16 %v2609, %v2607
    %v2719 = vpack.c.bf16 %v2610, %v2608
    %v2720 = vpack.c.bf16 %v2613, %v2611
    %v2721 = vpack.c.bf16 %v2614, %v2612
    %v2722 = vpack.c.bf16 %v2617, %v2615
    %v2723 = vpack.c.bf16 %v2618, %v2616
    %v2724 = vpack.c.bf16 %v2621, %v2619
    %v2725 = vpack.c.bf16 %v2622, %v2620
    %v2726 = vpack.c.bf16 %v2625, %v2623
    %v2727 = vpack.c.bf16 %v2626, %v2624
    %v2728 = vpack.c.bf16 %v2629, %v2627
    %v2729 = vpack.c.bf16 %v2630, %v2628
    %v2730 = vpack.c.bf16 %v2633, %v2631
    %v2731 = vpack.c.bf16 %v2634, %v2632
    %v2733 = vlaneseq
    %v2734 = vshrl.u32 %v2733, 7
    %v2735 = vsub.s32 0, %v2734
    %v2736 = vrot.slane %v2667, %v2735
    %v2770 = vunpack.c.l.b16 %v2635
    %v2771 = vunpack.c.l.b16 %v2636
    %v2772 = vunpack.c.l.b16 %v2637
    %v2773 = vunpack.c.l.b16 %v2638
    %v2774 = vunpack.c.l.b16 %v2639
    %v2775 = vunpack.c.l.b16 %v2640
    %v2776 = vunpack.c.l.b16 %v2641
    %v2777 = vunpack.c.l.b16 %v2642
    %v2778 = vunpack.c.l.b16 %v2643
    %v2779 = vunpack.c.l.b16 %v2644
    %v2780 = vunpack.c.l.b16 %v2645
    %v2781 = vunpack.c.l.b16 %v2646
    %v2782 = vunpack.c.l.b16 %v2647
    %v2783 = vunpack.c.l.b16 %v2648
    %v2784 = vunpack.c.l.b16 %v2649
    %v2785 = vunpack.c.l.b16 %v2650
    %v2786 = vunpack.c.l.b16 %v2651
    %v2787 = vunpack.c.l.b16 %v2652
    %v2788 = vunpack.c.l.b16 %v2653
    %v2789 = vunpack.c.l.b16 %v2654
    %v2790 = vunpack.c.l.b16 %v2655
    %v2791 = vunpack.c.l.b16 %v2656
    %v2792 = vunpack.c.l.b16 %v2657
    %v2793 = vunpack.c.l.b16 %v2658
    %v2794 = vunpack.c.l.b16 %v2659
    %v2795 = vunpack.c.l.b16 %v2660
    %v2796 = vunpack.c.l.b16 %v2661
    %v2797 = vunpack.c.l.b16 %v2662
    %v2798 = vunpack.c.l.b16 %v2663
    %v2799 = vunpack.c.l.b16 %v2664
    %v2800 = vunpack.c.l.b16 %v2665
    %v2801 = vunpack.c.l.b16 %v2666
    %v2802 = vpack.c.b16 %v2771, %v2770
    %v2803 = vpack.c.b16 %v2773, %v2772
    %v2804 = vpack.c.b16 %v2775, %v2774
    %v2805 = vpack.c.b16 %v2777, %v2776
    %v2806 = vpack.c.b16 %v2779, %v2778
    %v2807 = vpack.c.b16 %v2781, %v2780
    %v2808 = vpack.c.b16 %v2783, %v2782
    %v2809 = vpack.c.b16 %v2785, %v2784
    %v2810 = vpack.c.b16 %v2787, %v2786
    %v2811 = vpack.c.b16 %v2789, %v2788
    %v2812 = vpack.c.b16 %v2791, %v2790
    %v2813 = vpack.c.b16 %v2793, %v2792
    %v2814 = vpack.c.b16 %v2795, %v2794
    %v2815 = vpack.c.b16 %v2797, %v2796
    %v2816 = vpack.c.b16 %v2799, %v2798
    %v2817 = vpack.c.b16 %v2801, %v2800
    %2834 = vmatprep.subr.bf16.mxu0 0
    %2835 = vmatpush1.bf16.msra.mxu0 %v2809
    %2836 = vmatprep.subr.bf16.mxu0 0
    %2837 = vmatpush1.bf16.msra.mxu0 %v2808
    %2838 = vmatprep.subr.bf16.mxu0 0
    %2839 = vmatpush1.bf16.msra.mxu0 %v2807
    %2840 = vmatprep.subr.bf16.mxu0 0
    %2841 = vmatpush1.bf16.msra.mxu0 %v2806
    %2842 = vmatprep.subr.bf16.mxu0 0
    %2843 = vmatpush1.bf16.msra.mxu0 %v2805
    %2844 = vmatprep.subr.bf16.mxu0 0
    %2845 = vmatpush1.bf16.msra.mxu0 %v2804
    %2846 = vmatprep.subr.bf16.mxu0 0
    %2847 = vmatpush1.bf16.msra.mxu0 %v2803
    %2848 = vmatprep.subr.bf16.mxu0 0
    %2849 = vmatpush1.bf16.msra.mxu0 %v2802
    %2850 = vmatprep.subr.bf16.mxu0 0
    %2851 = vmatpush2.bf16.msra.mxu0 %v2817
    %2852 = vmatprep.subr.bf16.mxu0 0
    %2853 = vmatpush2.bf16.msra.mxu0 %v2816
    %2854 = vmatprep.subr.bf16.mxu0 0
    %2855 = vmatpush2.bf16.msra.mxu0 %v2815
    %2856 = vmatprep.subr.bf16.mxu0 0
    %2857 = vmatpush2.bf16.msra.mxu0 %v2814
    %2858 = vmatprep.subr.bf16.mxu0 0
    %2859 = vmatpush2.bf16.msra.mxu0 %v2813
    %2860 = vmatprep.subr.bf16.mxu0 0
    %2861 = vmatpush2.bf16.msra.mxu0 %v2812
    %2862 = vmatprep.subr.bf16.mxu0 0
    %2863 = vmatpush2.bf16.msra.mxu0 %v2811
    %2864 = vmatprep.subr.bf16.mxu0 0
    %2865 = vmatpush2.bf16.msra.mxu0 %v2810
    %2866 = vmatprep.mubr.bf16.mxu0 %v2669
    %2867 = vmatmul.mubr.bf16.gmra.mxu0 %v2668
    %v2868 = vpop.f32.mrf.mxu0
    %v2869 = vadd.f32 %v2736, %v2868
    %v2870 = vpop.f32.mrf.mxu0
    %v2871 = vpop.f32.mrf.mxu0
    %v2872 = vadd.f32 %v2736, %v2871
    %v2873 = vpop.f32.mrf.mxu0
    %2874 = vmatprep.mubr.bf16.mxu0 %v2671
    %2875 = vmatmul.mubr.bf16.gmra.mxu0 %v2670
    %v2876 = vpop.f32.mrf.mxu0
    %v2877 = vadd.f32 %v2736, %v2876
    %v2878 = vpop.f32.mrf.mxu0
    %v2879 = vpop.f32.mrf.mxu0
    %v2880 = vadd.f32 %v2736, %v2879
    %v2881 = vpop.f32.mrf.mxu0
    %2882 = vmatprep.mubr.bf16.mxu0 %v2673
    %2883 = vmatmul.mubr.bf16.gmra.mxu0 %v2672
    %v2884 = vpop.f32.mrf.mxu0
    %v2885 = vadd.f32 %v2736, %v2884
    %v2886 = vpop.f32.mrf.mxu0
    %v2887 = vpop.f32.mrf.mxu0
    %v2888 = vadd.f32 %v2736, %v2887
    %v2889 = vpop.f32.mrf.mxu0
    %2890 = vmatprep.mubr.bf16.mxu0 %v2675
    %2891 = vmatmul.mubr.bf16.gmra.mxu0 %v2674
    %v2892 = vpop.f32.mrf.mxu0
    %v2893 = vadd.f32 %v2736, %v2892
    %v2894 = vpop.f32.mrf.mxu0
    %v2895 = vpop.f32.mrf.mxu0
    %v2896 = vadd.f32 %v2736, %v2895
    %v2897 = vpop.f32.mrf.mxu0
    %2898 = vmatprep.mubr.bf16.mxu0 %v2677
    %2899 = vmatmul.mubr.bf16.gmra.mxu0 %v2676
    %v2900 = vpop.f32.mrf.mxu0
    %v2901 = vadd.f32 %v2736, %v2900
    %v2902 = vpop.f32.mrf.mxu0
    %v2903 = vpop.f32.mrf.mxu0
    %v2904 = vadd.f32 %v2736, %v2903
    %v2905 = vpop.f32.mrf.mxu0
    %2906 = vmatprep.mubr.bf16.mxu0 %v2679
    %2907 = vmatmul.mubr.bf16.gmra.mxu0 %v2678
    %v2908 = vpop.f32.mrf.mxu0
    %v2909 = vadd.f32 %v2736, %v2908
    %v2910 = vpop.f32.mrf.mxu0
    %v2911 = vpop.f32.mrf.mxu0
    %v2912 = vadd.f32 %v2736, %v2911
    %v2913 = vpop.f32.mrf.mxu0
    %2914 = vmatprep.mubr.bf16.mxu0 %v2681
    %2915 = vmatmul.mubr.bf16.gmra.mxu0 %v2680
    %v2916 = vpop.f32.mrf.mxu0
    %v2917 = vadd.f32 %v2736, %v2916
    %v2918 = vpop.f32.mrf.mxu0
    %v2919 = vpop.f32.mrf.mxu0
    %v2920 = vadd.f32 %v2736, %v2919
    %v2921 = vpop.f32.mrf.mxu0
    %2922 = vmatprep.mubr.bf16.mxu0 %v2683
    %2923 = vmatmul.mubr.bf16.gmra.mxu0 %v2682
    %v2924 = vpop.f32.mrf.mxu0
    %v2925 = vadd.f32 %v2736, %v2924
    %v2926 = vpop.f32.mrf.mxu0
    %v2927 = vpop.f32.mrf.mxu0
    %v2928 = vadd.f32 %v2736, %v2927
    %v2929 = vpop.f32.mrf.mxu0
    %2930 = vmatprep.mubr.bf16.mxu0 %v2685
    %2931 = vmatmul.mubr.bf16.gmra.mxu0 %v2684
    %v2932 = vpop.f32.mrf.mxu0
    %v2933 = vadd.f32 %v2736, %v2932
    %v2934 = vpop.f32.mrf.mxu0
    %v2935 = vpop.f32.mrf.mxu0
    %v2936 = vadd.f32 %v2736, %v2935
    %v2937 = vpop.f32.mrf.mxu0
    %2938 = vmatprep.mubr.bf16.mxu0 %v2687
    %2939 = vmatmul.mubr.bf16.gmra.mxu0 %v2686
    %v2940 = vpop.f32.mrf.mxu0
    %v2941 = vadd.f32 %v2736, %v2940
    %v2942 = vpop.f32.mrf.mxu0
    %v2943 = vpop.f32.mrf.mxu0
    %v2944 = vadd.f32 %v2736, %v2943
    %v2945 = vpop.f32.mrf.mxu0
    %2946 = vmatprep.mubr.bf16.mxu0 %v2689
    %2947 = vmatmul.mubr.bf16.gmra.mxu0 %v2688
    %v2948 = vpop.f32.mrf.mxu0
    %v2949 = vadd.f32 %v2736, %v2948
    %v2950 = vpop.f32.mrf.mxu0
    %v2951 = vpop.f32.mrf.mxu0
    %v2952 = vadd.f32 %v2736, %v2951
    %v2953 = vpop.f32.mrf.mxu0
    %2954 = vmatprep.mubr.bf16.mxu0 %v2691
    %2955 = vmatmul.mubr.bf16.gmra.mxu0 %v2690
    %v2956 = vpop.f32.mrf.mxu0
    %v2957 = vadd.f32 %v2736, %v2956
    %v2958 = vpop.f32.mrf.mxu0
    %v2959 = vpop.f32.mrf.mxu0
    %v2960 = vadd.f32 %v2736, %v2959
    %v2961 = vpop.f32.mrf.mxu0
    %2962 = vmatprep.mubr.bf16.mxu0 %v2693
    %2963 = vmatmul.mubr.bf16.gmra.mxu0 %v2692
    %v2964 = vpop.f32.mrf.mxu0
    %v2965 = vadd.f32 %v2736, %v2964
    %v2966 = vpop.f32.mrf.mxu0
    %v2967 = vpop.f32.mrf.mxu0
    %v2968 = vadd.f32 %v2736, %v2967
    %v2969 = vpop.f32.mrf.mxu0
    %2970 = vmatprep.mubr.bf16.mxu0 %v2695
    %2971 = vmatmul.mubr.bf16.gmra.mxu0 %v2694
    %v2972 = vpop.f32.mrf.mxu0
    %v2973 = vadd.f32 %v2736, %v2972
    %v2974 = vpop.f32.mrf.mxu0
    %v2975 = vpop.f32.mrf.mxu0
    %v2976 = vadd.f32 %v2736, %v2975
    %v2977 = vpop.f32.mrf.mxu0
    %2978 = vmatprep.mubr.bf16.mxu0 %v2697
    %2979 = vmatmul.mubr.bf16.gmra.mxu0 %v2696
    %v2980 = vpop.f32.mrf.mxu0
    %v2981 = vadd.f32 %v2736, %v2980
    %v2982 = vpop.f32.mrf.mxu0
    %v2983 = vpop.f32.mrf.mxu0
    %v2984 = vadd.f32 %v2736, %v2983
    %v2985 = vpop.f32.mrf.mxu0
    %2986 = vmatprep.mubr.bf16.mxu0 %v2699
    %2987 = vmatmul.mubr.bf16.gmra.mxu0 %v2698
    %v2988 = vpop.f32.mrf.mxu0
    %v2989 = vadd.f32 %v2736, %v2988
    %v2990 = vpop.f32.mrf.mxu0
    %v2991 = vpop.f32.mrf.mxu0
    %v2992 = vadd.f32 %v2736, %v2991
    %v2993 = vpop.f32.mrf.mxu0
    %2994 = vmatprep.mubr.bf16.mxu0 %v2701
    %2995 = vmatmul.mubr.bf16.gmra.mxu0 %v2700
    %v2996 = vpop.f32.mrf.mxu0
    %v2997 = vadd.f32 %v2736, %v2996
    %v2998 = vpop.f32.mrf.mxu0
    %v2999 = vpop.f32.mrf.mxu0
    %v3000 = vadd.f32 %v2736, %v2999
    %v3001 = vpop.f32.mrf.mxu0
    %3002 = vmatprep.mubr.bf16.mxu0 %v2703
    %3003 = vmatmul.mubr.bf16.gmra.mxu0 %v2702
    %v3004 = vpop.f32.mrf.mxu0
    %v3005 = vadd.f32 %v2736, %v3004
    %v3006 = vpop.f32.mrf.mxu0
    %v3007 = vpop.f32.mrf.mxu0
    %v3008 = vadd.f32 %v2736, %v3007
    %v3009 = vpop.f32.mrf.mxu0
    %3010 = vmatprep.mubr.bf16.mxu0 %v2705
    %3011 = vmatmul.mubr.bf16.gmra.mxu0 %v2704
    %v3012 = vpop.f32.mrf.mxu0
    %v3013 = vadd.f32 %v2736, %v3012
    %v3014 = vpop.f32.mrf.mxu0
    %v3015 = vpop.f32.mrf.mxu0
    %v3016 = vadd.f32 %v2736, %v3015
    %v3017 = vpop.f32.mrf.mxu0
    %3018 = vmatprep.mubr.bf16.mxu0 %v2707
    %3019 = vmatmul.mubr.bf16.gmra.mxu0 %v2706
    %v3020 = vpop.f32.mrf.mxu0
    %v3021 = vadd.f32 %v2736, %v3020
    %v3022 = vpop.f32.mrf.mxu0
    %v3023 = vpop.f32.mrf.mxu0
    %v3024 = vadd.f32 %v2736, %v3023
    %v3025 = vpop.f32.mrf.mxu0
    %3026 = vmatprep.mubr.bf16.mxu0 %v2709
    %3027 = vmatmul.mubr.bf16.gmra.mxu0 %v2708
    %v3028 = vpop.f32.mrf.mxu0
    %v3029 = vadd.f32 %v2736, %v3028
    %v3030 = vpop.f32.mrf.mxu0
    %v3031 = vpop.f32.mrf.mxu0
    %v3032 = vadd.f32 %v2736, %v3031
    %v3033 = vpop.f32.mrf.mxu0
    %3034 = vmatprep.mubr.bf16.mxu0 %v2711
    %3035 = vmatmul.mubr.bf16.gmra.mxu0 %v2710
    %v3036 = vpop.f32.mrf.mxu0
    %v3037 = vadd.f32 %v2736, %v3036
    %v3038 = vpop.f32.mrf.mxu0
    %v3039 = vpop.f32.mrf.mxu0
    %v3040 = vadd.f32 %v2736, %v3039
    %v3041 = vpop.f32.mrf.mxu0
    %3042 = vmatprep.mubr.bf16.mxu0 %v2713
    %3043 = vmatmul.mubr.bf16.gmra.mxu0 %v2712
    %v3044 = vpop.f32.mrf.mxu0
    %v3045 = vadd.f32 %v2736, %v3044
    %v3046 = vpop.f32.mrf.mxu0
    %v3047 = vpop.f32.mrf.mxu0
    %v3048 = vadd.f32 %v2736, %v3047
    %v3049 = vpop.f32.mrf.mxu0
    %3050 = vmatprep.mubr.bf16.mxu0 %v2715
    %3051 = vmatmul.mubr.bf16.gmra.mxu0 %v2714
    %v3052 = vpop.f32.mrf.mxu0
    %v3053 = vadd.f32 %v2736, %v3052
    %v3054 = vpop.f32.mrf.mxu0
    %v3055 = vpop.f32.mrf.mxu0
    %v3056 = vadd.f32 %v2736, %v3055
    %v3057 = vpop.f32.mrf.mxu0
    %3058 = vmatprep.mubr.bf16.mxu0 %v2717
    %3059 = vmatmul.mubr.bf16.gmra.mxu0 %v2716
    %v3060 = vpop.f32.mrf.mxu0
    %v3061 = vadd.f32 %v2736, %v3060
    %v3062 = vpop.f32.mrf.mxu0
    %v3063 = vpop.f32.mrf.mxu0
    %v3064 = vadd.f32 %v2736, %v3063
    %v3065 = vpop.f32.mrf.mxu0
    %3066 = vmatprep.mubr.bf16.mxu0 %v2719
    %3067 = vmatmul.mubr.bf16.gmra.mxu0 %v2718
    %v3068 = vpop.f32.mrf.mxu0
    %v3069 = vadd.f32 %v2736, %v3068
    %v3070 = vpop.f32.mrf.mxu0
    %v3071 = vpop.f32.mrf.mxu0
    %v3072 = vadd.f32 %v2736, %v3071
    %v3073 = vpop.f32.mrf.mxu0
    %3074 = vmatprep.mubr.bf16.mxu0 %v2721
    %3075 = vmatmul.mubr.bf16.gmra.mxu0 %v2720
    %v3076 = vpop.f32.mrf.mxu0
    %v3077 = vadd.f32 %v2736, %v3076
    %v3078 = vpop.f32.mrf.mxu0
    %v3079 = vpop.f32.mrf.mxu0
    %v3080 = vadd.f32 %v2736, %v3079
    %v3081 = vpop.f32.mrf.mxu0
    %3082 = vmatprep.mubr.bf16.mxu0 %v2723
    %3083 = vmatmul.mubr.bf16.gmra.mxu0 %v2722
    %v3084 = vpop.f32.mrf.mxu0
    %v3085 = vadd.f32 %v2736, %v3084
    %v3086 = vpop.f32.mrf.mxu0
    %v3087 = vpop.f32.mrf.mxu0
    %v3088 = vadd.f32 %v2736, %v3087
    %v3089 = vpop.f32.mrf.mxu0
    %3090 = vmatprep.mubr.bf16.mxu0 %v2725
    %3091 = vmatmul.mubr.bf16.gmra.mxu0 %v2724
    %v3092 = vpop.f32.mrf.mxu0
    %v3093 = vadd.f32 %v2736, %v3092
    %v3094 = vpop.f32.mrf.mxu0
    %v3095 = vpop.f32.mrf.mxu0
    %v3096 = vadd.f32 %v2736, %v3095
    %v3097 = vpop.f32.mrf.mxu0
    %3098 = vmatprep.mubr.bf16.mxu0 %v2727
    %3099 = vmatmul.mubr.bf16.gmra.mxu0 %v2726
    %v3100 = vpop.f32.mrf.mxu0
    %v3101 = vadd.f32 %v2736, %v3100
    %v3102 = vpop.f32.mrf.mxu0
    %v3103 = vpop.f32.mrf.mxu0
    %v3104 = vadd.f32 %v2736, %v3103
    %v3105 = vpop.f32.mrf.mxu0
    %3106 = vmatprep.mubr.bf16.mxu0 %v2729
    %3107 = vmatmul.mubr.bf16.gmra.mxu0 %v2728
    %v3108 = vpop.f32.mrf.mxu0
    %v3109 = vadd.f32 %v2736, %v3108
    %v3110 = vpop.f32.mrf.mxu0
    %v3111 = vpop.f32.mrf.mxu0
    %v3112 = vadd.f32 %v2736, %v3111
    %v3113 = vpop.f32.mrf.mxu0
    %3114 = vmatprep.mubr.bf16.mxu0 %v2731
    %3115 = vmatmul.mubr.bf16.gmra.mxu0 %v2730
    %v3116 = vpop.f32.mrf.mxu0
    %v3117 = vadd.f32 %v2736, %v3116
    %v3118 = vpop.f32.mrf.mxu0
    %v3119 = vpop.f32.mrf.mxu0
    %v3120 = vadd.f32 %v2736, %v3119
    %v3121 = vpop.f32.mrf.mxu0
    %3122 = vdwg.mxu0
    %v3123 = vmax.f32 %v2869, 0.0
    %v3124 = vmax.f32 %v2872, 0.0
    %v3125 = vmax.f32 %v2877, 0.0
    %v3126 = vmax.f32 %v2880, 0.0
    %v3127 = vmax.f32 %v2885, 0.0
    %v3128 = vmax.f32 %v2888, 0.0
    %v3129 = vmax.f32 %v2893, 0.0
    %v3130 = vmax.f32 %v2896, 0.0
    %v3131 = vmax.f32 %v2901, 0.0
    %v3132 = vmax.f32 %v2904, 0.0
    %v3133 = vmax.f32 %v2909, 0.0
    %v3134 = vmax.f32 %v2912, 0.0
    %v3135 = vmax.f32 %v2917, 0.0
    %v3136 = vmax.f32 %v2920, 0.0
    %v3137 = vmax.f32 %v2925, 0.0
    %v3138 = vmax.f32 %v2928, 0.0
    %v3139 = vmax.f32 %v2933, 0.0
    %v3140 = vmax.f32 %v2936, 0.0
    %v3141 = vmax.f32 %v2941, 0.0
    %v3142 = vmax.f32 %v2944, 0.0
    %v3143 = vmax.f32 %v2949, 0.0
    %v3144 = vmax.f32 %v2952, 0.0
    %v3145 = vmax.f32 %v2957, 0.0
    %v3146 = vmax.f32 %v2960, 0.0
    %v3147 = vmax.f32 %v2965, 0.0
    %v3148 = vmax.f32 %v2968, 0.0
    %v3149 = vmax.f32 %v2973, 0.0
    %v3150 = vmax.f32 %v2976, 0.0
    %v3151 = vmax.f32 %v2981, 0.0
    %v3152 = vmax.f32 %v2984, 0.0
    %v3153 = vmax.f32 %v2989, 0.0
    %v3154 = vmax.f32 %v2992, 0.0
    %v3155 = vmax.f32 %v2997, 0.0
    %v3156 = vmax.f32 %v3000, 0.0
    %v3157 = vmax.f32 %v3005, 0.0
    %v3158 = vmax.f32 %v3008, 0.0
    %v3159 = vmax.f32 %v3013, 0.0
    %v3160 = vmax.f32 %v3016, 0.0
    %v3161 = vmax.f32 %v3021, 0.0
    %v3162 = vmax.f32 %v3024, 0.0
    %v3163 = vmax.f32 %v3029, 0.0
    %v3164 = vmax.f32 %v3032, 0.0
    %v3165 = vmax.f32 %v3037, 0.0
    %v3166 = vmax.f32 %v3040, 0.0
    %v3167 = vmax.f32 %v3045, 0.0
    %v3168 = vmax.f32 %v3048, 0.0
    %v3169 = vmax.f32 %v3053, 0.0
    %v3170 = vmax.f32 %v3056, 0.0
    %v3171 = vmax.f32 %v3061, 0.0
    %v3172 = vmax.f32 %v3064, 0.0
    %v3173 = vmax.f32 %v3069, 0.0
    %v3174 = vmax.f32 %v3072, 0.0
    %v3175 = vmax.f32 %v3077, 0.0
    %v3176 = vmax.f32 %v3080, 0.0
    %v3177 = vmax.f32 %v3085, 0.0
    %v3178 = vmax.f32 %v3088, 0.0
    %v3179 = vmax.f32 %v3093, 0.0
    %v3180 = vmax.f32 %v3096, 0.0
    %v3181 = vmax.f32 %v3101, 0.0
    %v3182 = vmax.f32 %v3104, 0.0
    %v3183 = vmax.f32 %v3109, 0.0
    %v3184 = vmax.f32 %v3112, 0.0
    %v3185 = vmax.f32 %v3117, 0.0
    %v3186 = vmax.f32 %v3120, 0.0
    %v3187 = vld [vmem:[%s7] sm:$0xf]
    %v3188 = vld [vmem:[%s7 + $0x4] sm:$0xf]
    %v3189 = vld [vmem:[%s7 + $0x8] sm:$0xf]
    %v3190 = vld [vmem:[%s7 + $0xc] sm:$0xf]
    %v3191 = vld [vmem:[%s7 + $0x10] sm:$0xf]
    %v3192 = vld [vmem:[%s7 + $0x14] sm:$0xf]
    %v3193 = vld [vmem:[%s7 + $0x18] sm:$0xf]
    %v3194 = vld [vmem:[%s7 + $0x1c] sm:$0xf]
    %v3195 = vld [vmem:[%s7 + $0x20] sm:$0xf]
    %v3196 = vld [vmem:[%s7 + $0x24] sm:$0xf]
    %v3197 = vld [vmem:[%s7 + $0x28] sm:$0xf]
    %v3198 = vld [vmem:[%s7 + $0x2c] sm:$0xf]
    %v3199 = vld [vmem:[%s7 + $0x30] sm:$0xf]
    %v3200 = vld [vmem:[%s7 + $0x34] sm:$0xf]
    %v3201 = vld [vmem:[%s7 + $0x38] sm:$0xf]
    %v3202 = vld [vmem:[%s7 + $0x3c] sm:$0xf]
    %v3203 = vld [vmem:[%s8] sm:$0x1]
    %v3204 = vpack.c.bf16 %v3124, %v3123
    %v3205 = vpack.c.bf16 %v3126, %v3125
    %v3206 = vpack.c.bf16 %v3128, %v3127
    %v3207 = vpack.c.bf16 %v3130, %v3129
    %v3208 = vpack.c.bf16 %v3132, %v3131
    %v3209 = vpack.c.bf16 %v3134, %v3133
    %v3210 = vpack.c.bf16 %v3136, %v3135
    %v3211 = vpack.c.bf16 %v3138, %v3137
    %v3212 = vpack.c.bf16 %v3140, %v3139
    %v3213 = vpack.c.bf16 %v3142, %v3141
    %v3214 = vpack.c.bf16 %v3144, %v3143
    %v3215 = vpack.c.bf16 %v3146, %v3145
    %v3216 = vpack.c.bf16 %v3148, %v3147
    %v3217 = vpack.c.bf16 %v3150, %v3149
    %v3218 = vpack.c.bf16 %v3152, %v3151
    %v3219 = vpack.c.bf16 %v3154, %v3153
    %v3220 = vpack.c.bf16 %v3156, %v3155
    %v3221 = vpack.c.bf16 %v3158, %v3157
    %v3222 = vpack.c.bf16 %v3160, %v3159
    %v3223 = vpack.c.bf16 %v3162, %v3161
    %v3224 = vpack.c.bf16 %v3164, %v3163
    %v3225 = vpack.c.bf16 %v3166, %v3165
    %v3226 = vpack.c.bf16 %v3168, %v3167
    %v3227 = vpack.c.bf16 %v3170, %v3169
    %v3228 = vpack.c.bf16 %v3172, %v3171
    %v3229 = vpack.c.bf16 %v3174, %v3173
    %v3230 = vpack.c.bf16 %v3176, %v3175
    %v3231 = vpack.c.bf16 %v3178, %v3177
    %v3232 = vpack.c.bf16 %v3180, %v3179
    %v3233 = vpack.c.bf16 %v3182, %v3181
    %v3234 = vpack.c.bf16 %v3184, %v3183
    %v3235 = vpack.c.bf16 %v3186, %v3185
    %v3237 = vlaneseq
    %v3238 = vshrl.u32 %v3237, 7
    %v3239 = vsub.s32 0, %v3238
    %v3240 = vrot.slane %v3203, %v3239
    %v3258 = vunpack.c.l.b16 %v3187
    %v3259 = vunpack.c.l.b16 %v3188
    %v3260 = vunpack.c.l.b16 %v3189
    %v3261 = vunpack.c.l.b16 %v3190
    %v3262 = vunpack.c.l.b16 %v3191
    %v3263 = vunpack.c.l.b16 %v3192
    %v3264 = vunpack.c.l.b16 %v3193
    %v3265 = vunpack.c.l.b16 %v3194
    %v3266 = vunpack.c.l.b16 %v3195
    %v3267 = vunpack.c.l.b16 %v3196
    %v3268 = vunpack.c.l.b16 %v3197
    %v3269 = vunpack.c.l.b16 %v3198
    %v3270 = vunpack.c.l.b16 %v3199
    %v3271 = vunpack.c.l.b16 %v3200
    %v3272 = vunpack.c.l.b16 %v3201
    %v3273 = vunpack.c.l.b16 %v3202
    %v3274 = vpack.c.b16 %v3259, %v3258
    %v3275 = vpack.c.b16 %v3261, %v3260
    %v3276 = vpack.c.b16 %v3263, %v3262
    %v3277 = vpack.c.b16 %v3265, %v3264
    %v3278 = vpack.c.b16 %v3267, %v3266
    %v3279 = vpack.c.b16 %v3269, %v3268
    %v3280 = vpack.c.b16 %v3271, %v3270
    %v3281 = vpack.c.b16 %v3273, %v3272
    %3290 = vmatprep.subr.bf16.mxu0 0
    %3291 = vmatpush1.bf16.msra.mxu0 %v3281
    %3292 = vmatprep.subr.bf16.mxu0 0
    %3293 = vmatpush1.bf16.msra.mxu0 %v3280
    %3294 = vmatprep.subr.bf16.mxu0 0
    %3295 = vmatpush1.bf16.msra.mxu0 %v3279
    %3296 = vmatprep.subr.bf16.mxu0 0
    %3297 = vmatpush1.bf16.msra.mxu0 %v3278
    %3298 = vmatprep.subr.bf16.mxu0 0
    %3299 = vmatpush1.bf16.msra.mxu0 %v3277
    %3300 = vmatprep.subr.bf16.mxu0 0
    %3301 = vmatpush1.bf16.msra.mxu0 %v3276
    %3302 = vmatprep.subr.bf16.mxu0 0
    %3303 = vmatpush1.bf16.msra.mxu0 %v3275
    %3304 = vmatprep.subr.bf16.mxu0 0
    %3305 = vmatpush1.bf16.msra.mxu0 %v3274
    %3306 = vmatprep.subr.bf16.mxu0 0
    %3307 = vmatpush2.bf16.msra.mxu0 0
    %3308 = vmatprep.subr.bf16.mxu0 0
    %3309 = vmatpush2.bf16.msra.mxu0 0
    %3310 = vmatprep.subr.bf16.mxu0 0
    %3311 = vmatpush2.bf16.msra.mxu0 0
    %3312 = vmatprep.subr.bf16.mxu0 0
    %3313 = vmatpush2.bf16.msra.mxu0 0
    %3314 = vmatprep.subr.bf16.mxu0 0
    %3315 = vmatpush2.bf16.msra.mxu0 0
    %3316 = vmatprep.subr.bf16.mxu0 0
    %3317 = vmatpush2.bf16.msra.mxu0 0
    %3318 = vmatprep.subr.bf16.mxu0 0
    %3319 = vmatpush2.bf16.msra.mxu0 0
    %3320 = vmatprep.subr.bf16.mxu0 0
    %3321 = vmatpush2.bf16.msra.mxu0 0
    %3322 = vmatprep.mubr.bf16.mxu0 0
    %3323 = vmatmul.mubr.bf16.gmra.mxu0 %v3204
    %v3324 = vpop.f32.mrf.mxu0
    %v3325 = vadd.f32 %v3240, %v3324
    %v3326 = vpop.f32.mrf.mxu0
    %v3327 = vpop.f32.mrf.mxu0
    %v3328 = vadd.f32 %v3240, %v3327
    %v3329 = vpop.f32.mrf.mxu0
    %3330 = vmatprep.mubr.bf16.mxu0 0
    %3331 = vmatmul.mubr.bf16.gmra.mxu0 %v3205
    %v3332 = vpop.f32.mrf.mxu0
    %v3333 = vadd.f32 %v3240, %v3332
    %v3334 = vpop.f32.mrf.mxu0
    %v3335 = vpop.f32.mrf.mxu0
    %v3336 = vadd.f32 %v3240, %v3335
    %v3337 = vpop.f32.mrf.mxu0
    %3338 = vmatprep.mubr.bf16.mxu0 0
    %3339 = vmatmul.mubr.bf16.gmra.mxu0 %v3206
    %v3340 = vpop.f32.mrf.mxu0
    %v3341 = vadd.f32 %v3240, %v3340
    %v3342 = vpop.f32.mrf.mxu0
    %v3343 = vpop.f32.mrf.mxu0
    %v3344 = vadd.f32 %v3240, %v3343
    %v3345 = vpop.f32.mrf.mxu0
    %3346 = vmatprep.mubr.bf16.mxu0 0
    %3347 = vmatmul.mubr.bf16.gmra.mxu0 %v3207
    %v3348 = vpop.f32.mrf.mxu0
    %v3349 = vadd.f32 %v3240, %v3348
    %v3350 = vpop.f32.mrf.mxu0
    %v3351 = vpop.f32.mrf.mxu0
    %v3352 = vadd.f32 %v3240, %v3351
    %v3353 = vpop.f32.mrf.mxu0
    %3354 = vmatprep.mubr.bf16.mxu0 0
    %3355 = vmatmul.mubr.bf16.gmra.mxu0 %v3208
    %v3356 = vpop.f32.mrf.mxu0
    %v3357 = vadd.f32 %v3240, %v3356
    %v3358 = vpop.f32.mrf.mxu0
    %v3359 = vpop.f32.mrf.mxu0
    %v3360 = vadd.f32 %v3240, %v3359
    %v3361 = vpop.f32.mrf.mxu0
    %3362 = vmatprep.mubr.bf16.mxu0 0
    %3363 = vmatmul.mubr.bf16.gmra.mxu0 %v3209
    %v3364 = vpop.f32.mrf.mxu0
    %v3365 = vadd.f32 %v3240, %v3364
    %v3366 = vpop.f32.mrf.mxu0
    %v3367 = vpop.f32.mrf.mxu0
    %v3368 = vadd.f32 %v3240, %v3367
    %v3369 = vpop.f32.mrf.mxu0
    %3370 = vmatprep.mubr.bf16.mxu0 0
    %3371 = vmatmul.mubr.bf16.gmra.mxu0 %v3210
    %v3372 = vpop.f32.mrf.mxu0
    %v3373 = vadd.f32 %v3240, %v3372
    %v3374 = vpop.f32.mrf.mxu0
    %v3375 = vpop.f32.mrf.mxu0
    %v3376 = vadd.f32 %v3240, %v3375
    %v3377 = vpop.f32.mrf.mxu0
    %3378 = vmatprep.mubr.bf16.mxu0 0
    %3379 = vmatmul.mubr.bf16.gmra.mxu0 %v3211
    %v3380 = vpop.f32.mrf.mxu0
    %v3381 = vadd.f32 %v3240, %v3380
    %v3382 = vpop.f32.mrf.mxu0
    %v3383 = vpop.f32.mrf.mxu0
    %v3384 = vadd.f32 %v3240, %v3383
    %v3385 = vpop.f32.mrf.mxu0
    %3386 = vmatprep.mubr.bf16.mxu0 0
    %3387 = vmatmul.mubr.bf16.gmra.mxu0 %v3212
    %v3388 = vpop.f32.mrf.mxu0
    %v3389 = vadd.f32 %v3240, %v3388
    %v3390 = vpop.f32.mrf.mxu0
    %v3391 = vpop.f32.mrf.mxu0
    %v3392 = vadd.f32 %v3240, %v3391
    %v3393 = vpop.f32.mrf.mxu0
    %3394 = vmatprep.mubr.bf16.mxu0 0
    %3395 = vmatmul.mubr.bf16.gmra.mxu0 %v3213
    %v3396 = vpop.f32.mrf.mxu0
    %v3397 = vadd.f32 %v3240, %v3396
    %v3398 = vpop.f32.mrf.mxu0
    %v3399 = vpop.f32.mrf.mxu0
    %v3400 = vadd.f32 %v3240, %v3399
    %v3401 = vpop.f32.mrf.mxu0
    %3402 = vmatprep.mubr.bf16.mxu0 0
    %3403 = vmatmul.mubr.bf16.gmra.mxu0 %v3214
    %v3404 = vpop.f32.mrf.mxu0
    %v3405 = vadd.f32 %v3240, %v3404
    %v3406 = vpop.f32.mrf.mxu0
    %v3407 = vpop.f32.mrf.mxu0
    %v3408 = vadd.f32 %v3240, %v3407
    %v3409 = vpop.f32.mrf.mxu0
    %3410 = vmatprep.mubr.bf16.mxu0 0
    %3411 = vmatmul.mubr.bf16.gmra.mxu0 %v3215
    %v3412 = vpop.f32.mrf.mxu0
    %v3413 = vadd.f32 %v3240, %v3412
    %v3414 = vpop.f32.mrf.mxu0
    %v3415 = vpop.f32.mrf.mxu0
    %v3416 = vadd.f32 %v3240, %v3415
    %v3417 = vpop.f32.mrf.mxu0
    %3418 = vmatprep.mubr.bf16.mxu0 0
    %3419 = vmatmul.mubr.bf16.gmra.mxu0 %v3216
    %v3420 = vpop.f32.mrf.mxu0
    %v3421 = vadd.f32 %v3240, %v3420
    %v3422 = vpop.f32.mrf.mxu0
    %v3423 = vpop.f32.mrf.mxu0
    %v3424 = vadd.f32 %v3240, %v3423
    %v3425 = vpop.f32.mrf.mxu0
    %3426 = vmatprep.mubr.bf16.mxu0 0
    %3427 = vmatmul.mubr.bf16.gmra.mxu0 %v3217
    %v3428 = vpop.f32.mrf.mxu0
    %v3429 = vadd.f32 %v3240, %v3428
    %v3430 = vpop.f32.mrf.mxu0
    %v3431 = vpop.f32.mrf.mxu0
    %v3432 = vadd.f32 %v3240, %v3431
    %v3433 = vpop.f32.mrf.mxu0
    %3434 = vmatprep.mubr.bf16.mxu0 0
    %3435 = vmatmul.mubr.bf16.gmra.mxu0 %v3218
    %v3436 = vpop.f32.mrf.mxu0
    %v3437 = vadd.f32 %v3240, %v3436
    %v3438 = vpop.f32.mrf.mxu0
    %v3439 = vpop.f32.mrf.mxu0
    %v3440 = vadd.f32 %v3240, %v3439
    %v3441 = vpop.f32.mrf.mxu0
    %3442 = vmatprep.mubr.bf16.mxu0 0
    %3443 = vmatmul.mubr.bf16.gmra.mxu0 %v3219
    %v3444 = vpop.f32.mrf.mxu0
    %v3445 = vadd.f32 %v3240, %v3444
    %v3446 = vpop.f32.mrf.mxu0
    %v3447 = vpop.f32.mrf.mxu0
    %v3448 = vadd.f32 %v3240, %v3447
    %v3449 = vpop.f32.mrf.mxu0
    %3450 = vmatprep.mubr.bf16.mxu0 0
    %3451 = vmatmul.mubr.bf16.gmra.mxu0 %v3220
    %v3452 = vpop.f32.mrf.mxu0
    %v3453 = vadd.f32 %v3240, %v3452
    %v3454 = vpop.f32.mrf.mxu0
    %v3455 = vpop.f32.mrf.mxu0
    %v3456 = vadd.f32 %v3240, %v3455
    %v3457 = vpop.f32.mrf.mxu0
    %3458 = vmatprep.mubr.bf16.mxu0 0
    %3459 = vmatmul.mubr.bf16.gmra.mxu0 %v3221
    %v3460 = vpop.f32.mrf.mxu0
    %v3461 = vadd.f32 %v3240, %v3460
    %v3462 = vpop.f32.mrf.mxu0
    %v3463 = vpop.f32.mrf.mxu0
    %v3464 = vadd.f32 %v3240, %v3463
    %v3465 = vpop.f32.mrf.mxu0
    %3466 = vmatprep.mubr.bf16.mxu0 0
    %3467 = vmatmul.mubr.bf16.gmra.mxu0 %v3222
    %v3468 = vpop.f32.mrf.mxu0
    %v3469 = vadd.f32 %v3240, %v3468
    %v3470 = vpop.f32.mrf.mxu0
    %v3471 = vpop.f32.mrf.mxu0
    %v3472 = vadd.f32 %v3240, %v3471
    %v3473 = vpop.f32.mrf.mxu0
    %3474 = vmatprep.mubr.bf16.mxu0 0
    %3475 = vmatmul.mubr.bf16.gmra.mxu0 %v3223
    %v3476 = vpop.f32.mrf.mxu0
    %v3477 = vadd.f32 %v3240, %v3476
    %v3478 = vpop.f32.mrf.mxu0
    %v3479 = vpop.f32.mrf.mxu0
    %v3480 = vadd.f32 %v3240, %v3479
    %v3481 = vpop.f32.mrf.mxu0
    %3482 = vmatprep.mubr.bf16.mxu0 0
    %3483 = vmatmul.mubr.bf16.gmra.mxu0 %v3224
    %v3484 = vpop.f32.mrf.mxu0
    %v3485 = vadd.f32 %v3240, %v3484
    %v3486 = vpop.f32.mrf.mxu0
    %v3487 = vpop.f32.mrf.mxu0
    %v3488 = vadd.f32 %v3240, %v3487
    %v3489 = vpop.f32.mrf.mxu0
    %3490 = vmatprep.mubr.bf16.mxu0 0
    %3491 = vmatmul.mubr.bf16.gmra.mxu0 %v3225
    %v3492 = vpop.f32.mrf.mxu0
    %v3493 = vadd.f32 %v3240, %v3492
    %v3494 = vpop.f32.mrf.mxu0
    %v3495 = vpop.f32.mrf.mxu0
    %v3496 = vadd.f32 %v3240, %v3495
    %v3497 = vpop.f32.mrf.mxu0
    %3498 = vmatprep.mubr.bf16.mxu0 0
    %3499 = vmatmul.mubr.bf16.gmra.mxu0 %v3226
    %v3500 = vpop.f32.mrf.mxu0
    %v3501 = vadd.f32 %v3240, %v3500
    %v3502 = vpop.f32.mrf.mxu0
    %v3503 = vpop.f32.mrf.mxu0
    %v3504 = vadd.f32 %v3240, %v3503
    %v3505 = vpop.f32.mrf.mxu0
    %3506 = vmatprep.mubr.bf16.mxu0 0
    %3507 = vmatmul.mubr.bf16.gmra.mxu0 %v3227
    %v3508 = vpop.f32.mrf.mxu0
    %v3509 = vadd.f32 %v3240, %v3508
    %v3510 = vpop.f32.mrf.mxu0
    %v3511 = vpop.f32.mrf.mxu0
    %v3512 = vadd.f32 %v3240, %v3511
    %v3513 = vpop.f32.mrf.mxu0
    %3514 = vmatprep.mubr.bf16.mxu0 0
    %3515 = vmatmul.mubr.bf16.gmra.mxu0 %v3228
    %v3516 = vpop.f32.mrf.mxu0
    %v3517 = vadd.f32 %v3240, %v3516
    %v3518 = vpop.f32.mrf.mxu0
    %v3519 = vpop.f32.mrf.mxu0
    %v3520 = vadd.f32 %v3240, %v3519
    %v3521 = vpop.f32.mrf.mxu0
    %3522 = vmatprep.mubr.bf16.mxu0 0
    %3523 = vmatmul.mubr.bf16.gmra.mxu0 %v3229
    %v3524 = vpop.f32.mrf.mxu0
    %v3525 = vadd.f32 %v3240, %v3524
    %v3526 = vpop.f32.mrf.mxu0
    %v3527 = vpop.f32.mrf.mxu0
    %v3528 = vadd.f32 %v3240, %v3527
    %v3529 = vpop.f32.mrf.mxu0
    %3530 = vmatprep.mubr.bf16.mxu0 0
    %3531 = vmatmul.mubr.bf16.gmra.mxu0 %v3230
    %v3532 = vpop.f32.mrf.mxu0
    %v3533 = vadd.f32 %v3240, %v3532
    %v3534 = vpop.f32.mrf.mxu0
    %v3535 = vpop.f32.mrf.mxu0
    %v3536 = vadd.f32 %v3240, %v3535
    %v3537 = vpop.f32.mrf.mxu0
    %3538 = vmatprep.mubr.bf16.mxu0 0
    %3539 = vmatmul.mubr.bf16.gmra.mxu0 %v3231
    %v3540 = vpop.f32.mrf.mxu0
    %v3541 = vadd.f32 %v3240, %v3540
    %v3542 = vpop.f32.mrf.mxu0
    %v3543 = vpop.f32.mrf.mxu0
    %v3544 = vadd.f32 %v3240, %v3543
    %v3545 = vpop.f32.mrf.mxu0
    %3546 = vmatprep.mubr.bf16.mxu0 0
    %3547 = vmatmul.mubr.bf16.gmra.mxu0 %v3232
    %v3548 = vpop.f32.mrf.mxu0
    %v3549 = vadd.f32 %v3240, %v3548
    %v3550 = vpop.f32.mrf.mxu0
    %v3551 = vpop.f32.mrf.mxu0
    %v3552 = vadd.f32 %v3240, %v3551
    %v3553 = vpop.f32.mrf.mxu0
    %3554 = vmatprep.mubr.bf16.mxu0 0
    %3555 = vmatmul.mubr.bf16.gmra.mxu0 %v3233
    %v3556 = vpop.f32.mrf.mxu0
    %v3557 = vadd.f32 %v3240, %v3556
    %v3558 = vpop.f32.mrf.mxu0
    %v3559 = vpop.f32.mrf.mxu0
    %v3560 = vadd.f32 %v3240, %v3559
    %v3561 = vpop.f32.mrf.mxu0
    %3562 = vmatprep.mubr.bf16.mxu0 0
    %3563 = vmatmul.mubr.bf16.gmra.mxu0 %v3234
    %v3564 = vpop.f32.mrf.mxu0
    %v3565 = vadd.f32 %v3240, %v3564
    %v3566 = vpop.f32.mrf.mxu0
    %v3567 = vpop.f32.mrf.mxu0
    %v3568 = vadd.f32 %v3240, %v3567
    %v3569 = vpop.f32.mrf.mxu0
    %3570 = vmatprep.mubr.bf16.mxu0 0
    %3571 = vmatmul.mubr.bf16.gmra.mxu0 %v3235
    %v3572 = vpop.f32.mrf.mxu0
    %v3573 = vadd.f32 %v3240, %v3572
    %v3574 = vpop.f32.mrf.mxu0
    %v3575 = vpop.f32.mrf.mxu0
    %v3576 = vadd.f32 %v3240, %v3575
    %v3577 = vpop.f32.mrf.mxu0
    %3578 = vdwg.mxu0
    %v3579 = vmax.f32 %v3325, 0.0
    %v3580 = vmax.f32 %v3328, 0.0
    %v3581 = vmax.f32 %v3333, 0.0
    %v3582 = vmax.f32 %v3336, 0.0
    %v3583 = vmax.f32 %v3341, 0.0
    %v3584 = vmax.f32 %v3344, 0.0
    %v3585 = vmax.f32 %v3349, 0.0
    %v3586 = vmax.f32 %v3352, 0.0
    %v3587 = vmax.f32 %v3357, 0.0
    %v3588 = vmax.f32 %v3360, 0.0
    %v3589 = vmax.f32 %v3365, 0.0
    %v3590 = vmax.f32 %v3368, 0.0
    %v3591 = vmax.f32 %v3373, 0.0
    %v3592 = vmax.f32 %v3376, 0.0
    %v3593 = vmax.f32 %v3381, 0.0
    %v3594 = vmax.f32 %v3384, 0.0
    %v3595 = vmax.f32 %v3389, 0.0
    %v3596 = vmax.f32 %v3392, 0.0
    %v3597 = vmax.f32 %v3397, 0.0
    %v3598 = vmax.f32 %v3400, 0.0
    %v3599 = vmax.f32 %v3405, 0.0
    %v3600 = vmax.f32 %v3408, 0.0
    %v3601 = vmax.f32 %v3413, 0.0
    %v3602 = vmax.f32 %v3416, 0.0
    %v3603 = vmax.f32 %v3421, 0.0
    %v3604 = vmax.f32 %v3424, 0.0
    %v3605 = vmax.f32 %v3429, 0.0
    %v3606 = vmax.f32 %v3432, 0.0
    %v3607 = vmax.f32 %v3437, 0.0
    %v3608 = vmax.f32 %v3440, 0.0
    %v3609 = vmax.f32 %v3445, 0.0
    %v3610 = vmax.f32 %v3448, 0.0
    %v3611 = vmax.f32 %v3453, 0.0
    %v3612 = vmax.f32 %v3456, 0.0
    %v3613 = vmax.f32 %v3461, 0.0
    %v3614 = vmax.f32 %v3464, 0.0
    %v3615 = vmax.f32 %v3469, 0.0
    %v3616 = vmax.f32 %v3472, 0.0
    %v3617 = vmax.f32 %v3477, 0.0
    %v3618 = vmax.f32 %v3480, 0.0
    %v3619 = vmax.f32 %v3485, 0.0
    %v3620 = vmax.f32 %v3488, 0.0
    %v3621 = vmax.f32 %v3493, 0.0
    %v3622 = vmax.f32 %v3496, 0.0
    %v3623 = vmax.f32 %v3501, 0.0
    %v3624 = vmax.f32 %v3504, 0.0
    %v3625 = vmax.f32 %v3509, 0.0
    %v3626 = vmax.f32 %v3512, 0.0
    %v3627 = vmax.f32 %v3517, 0.0
    %v3628 = vmax.f32 %v3520, 0.0
    %v3629 = vmax.f32 %v3525, 0.0
    %v3630 = vmax.f32 %v3528, 0.0
    %v3631 = vmax.f32 %v3533, 0.0
    %v3632 = vmax.f32 %v3536, 0.0
    %v3633 = vmax.f32 %v3541, 0.0
    %v3634 = vmax.f32 %v3544, 0.0
    %v3635 = vmax.f32 %v3549, 0.0
    %v3636 = vmax.f32 %v3552, 0.0
    %v3637 = vmax.f32 %v3557, 0.0
    %v3638 = vmax.f32 %v3560, 0.0
    %v3639 = vmax.f32 %v3565, 0.0
    %v3640 = vmax.f32 %v3568, 0.0
    %v3641 = vmax.f32 %v3573, 0.0
    %v3642 = vmax.f32 %v3576, 0.0
    %v3643 = vld [vmem:[%s9] sm:$0xf]
    %v3644 = vld [vmem:[%s9 + $0x4] sm:$0xf]
    %v3645 = vld [vmem:[%s9 + $0x8] sm:$0xf]
    %v3646 = vld [vmem:[%s9 + $0xc] sm:$0xf]
    %v3647 = vld [vmem:[%s9 + $0x10] sm:$0xf]
    %v3648 = vld [vmem:[%s9 + $0x14] sm:$0xf]
    %v3649 = vld [vmem:[%s9 + $0x18] sm:$0xf]
    %v3650 = vld [vmem:[%s9 + $0x1c] sm:$0xf]
    %v3651 = vld [vmem:[%s10] sm:$0x1]
    %v3652 = vpack.c.bf16 %v3580, %v3579
    %v3653 = vpack.c.bf16 %v3582, %v3581
    %v3654 = vpack.c.bf16 %v3584, %v3583
    %v3655 = vpack.c.bf16 %v3586, %v3585
    %v3656 = vpack.c.bf16 %v3588, %v3587
    %v3657 = vpack.c.bf16 %v3590, %v3589
    %v3658 = vpack.c.bf16 %v3592, %v3591
    %v3659 = vpack.c.bf16 %v3594, %v3593
    %v3660 = vpack.c.bf16 %v3596, %v3595
    %v3661 = vpack.c.bf16 %v3598, %v3597
    %v3662 = vpack.c.bf16 %v3600, %v3599
    %v3663 = vpack.c.bf16 %v3602, %v3601
    %v3664 = vpack.c.bf16 %v3604, %v3603
    %v3665 = vpack.c.bf16 %v3606, %v3605
    %v3666 = vpack.c.bf16 %v3608, %v3607
    %v3667 = vpack.c.bf16 %v3610, %v3609
    %v3668 = vpack.c.bf16 %v3612, %v3611
    %v3669 = vpack.c.bf16 %v3614, %v3613
    %v3670 = vpack.c.bf16 %v3616, %v3615
    %v3671 = vpack.c.bf16 %v3618, %v3617
    %v3672 = vpack.c.bf16 %v3620, %v3619
    %v3673 = vpack.c.bf16 %v3622, %v3621
    %v3674 = vpack.c.bf16 %v3624, %v3623
    %v3675 = vpack.c.bf16 %v3626, %v3625
    %v3676 = vpack.c.bf16 %v3628, %v3627
    %v3677 = vpack.c.bf16 %v3630, %v3629
    %v3678 = vpack.c.bf16 %v3632, %v3631
    %v3679 = vpack.c.bf16 %v3634, %v3633
    %v3680 = vpack.c.bf16 %v3636, %v3635
    %v3681 = vpack.c.bf16 %v3638, %v3637
    %v3682 = vpack.c.bf16 %v3640, %v3639
    %v3683 = vpack.c.bf16 %v3642, %v3641
    %v3685 = vlaneseq
    %v3686 = vshrl.u32 %v3685, 7
    %v3687 = vsub.s32 0, %v3686
    %v3688 = vrot.slane %v3651, %v3687
    %v3698 = vunpack.c.l.b16 %v3643
    %v3699 = vunpack.c.l.b16 %v3644
    %v3700 = vunpack.c.l.b16 %v3645
    %v3701 = vunpack.c.l.b16 %v3646
    %v3702 = vunpack.c.l.b16 %v3647
    %v3703 = vunpack.c.l.b16 %v3648
    %v3704 = vunpack.c.l.b16 %v3649
    %v3705 = vunpack.c.l.b16 %v3650
    %v3706 = vpack.c.b16 %v3699, %v3698
    %v3707 = vpack.c.b16 %v3701, %v3700
    %v3708 = vpack.c.b16 %v3703, %v3702
    %v3709 = vpack.c.b16 %v3705, %v3704
    %vm3714 = vcmask 523264
    %v3716 = vsel %vm3714, %v3652, 0
    %v3719 = vsel %vm3714, %v3653, 0
    %v3722 = vsel %vm3714, %v3654, 0
    %v3725 = vsel %vm3714, %v3655, 0
    %v3728 = vsel %vm3714, %v3656, 0
    %v3731 = vsel %vm3714, %v3657, 0
    %v3734 = vsel %vm3714, %v3658, 0
    %v3737 = vsel %vm3714, %v3659, 0
    %v3740 = vsel %vm3714, %v3660, 0
    %v3743 = vsel %vm3714, %v3661, 0
    %v3746 = vsel %vm3714, %v3662, 0
    %v3749 = vsel %vm3714, %v3663, 0
    %v3752 = vsel %vm3714, %v3664, 0
    %v3755 = vsel %vm3714, %v3665, 0
    %v3758 = vsel %vm3714, %v3666, 0
    %v3761 = vsel %vm3714, %v3667, 0
    %v3764 = vsel %vm3714, %v3668, 0
    %v3767 = vsel %vm3714, %v3669, 0
    %v3770 = vsel %vm3714, %v3670, 0
    %v3773 = vsel %vm3714, %v3671, 0
    %v3776 = vsel %vm3714, %v3672, 0
    %v3779 = vsel %vm3714, %v3673, 0
    %v3782 = vsel %vm3714, %v3674, 0
    %v3785 = vsel %vm3714, %v3675, 0
    %v3788 = vsel %vm3714, %v3676, 0
    %v3791 = vsel %vm3714, %v3677, 0
    %v3794 = vsel %vm3714, %v3678, 0
    %v3797 = vsel %vm3714, %v3679, 0
    %v3800 = vsel %vm3714, %v3680, 0
    %v3803 = vsel %vm3714, %v3681, 0
    %v3806 = vsel %vm3714, %v3682, 0
    %v3809 = vsel %vm3714, %v3683, 0
    %3811 = vmatprep.subr.bf16.mxu0 0
    %3812 = vmatpush1.bf16.msra.mxu0 0
    %3813 = vmatprep.subr.bf16.mxu0 0
    %3814 = vmatpush1.bf16.msra.mxu0 0
    %3815 = vmatprep.subr.bf16.mxu0 0
    %3816 = vmatpush1.bf16.msra.mxu0 0
    %3817 = vmatprep.subr.bf16.mxu0 0
    %3818 = vmatpush1.bf16.msra.mxu0 0
    %3819 = vmatprep.subr.bf16.mxu0 0
    %3820 = vmatpush1.bf16.msra.mxu0 %v3709
    %3821 = vmatprep.subr.bf16.mxu0 0
    %3822 = vmatpush1.bf16.msra.mxu0 %v3708
    %3823 = vmatprep.subr.bf16.mxu0 0
    %3824 = vmatpush1.bf16.msra.mxu0 %v3707
    %3825 = vmatprep.subr.bf16.mxu0 0
    %3826 = vmatpush1.bf16.msra.mxu0 %v3706
    %3827 = vmatprep.subr.bf16.mxu0 0
    %3828 = vmatpush2.bf16.msra.mxu0 0
    %3829 = vmatprep.subr.bf16.mxu0 0
    %3830 = vmatpush2.bf16.msra.mxu0 0
    %3831 = vmatprep.subr.bf16.mxu0 0
    %3832 = vmatpush2.bf16.msra.mxu0 0
    %3833 = vmatprep.subr.bf16.mxu0 0
    %3834 = vmatpush2.bf16.msra.mxu0 0
    %3835 = vmatprep.subr.bf16.mxu0 0
    %3836 = vmatpush2.bf16.msra.mxu0 0
    %3837 = vmatprep.subr.bf16.mxu0 0
    %3838 = vmatpush2.bf16.msra.mxu0 0
    %3839 = vmatprep.subr.bf16.mxu0 0
    %3840 = vmatpush2.bf16.msra.mxu0 0
    %3841 = vmatprep.subr.bf16.mxu0 0
    %3842 = vmatpush2.bf16.msra.mxu0 0
    %3843 = vmatprep.mubr.bf16.mxu0 0
    %3844 = vmatmul.mubr.bf16.gmra.mxu0 %v3716
    %v3845 = vpop.f32.mrf.mxu0
    %v3846 = vadd.f32 %v3688, %v3845
    %v3847 = vpop.f32.mrf.mxu0
    %v3848 = vpop.f32.mrf.mxu0
    %v3849 = vadd.f32 %v3688, %v3848
    %v3850 = vpop.f32.mrf.mxu0
    %3851 = vmatprep.mubr.bf16.mxu0 0
    %3852 = vmatmul.mubr.bf16.gmra.mxu0 %v3719
    %v3853 = vpop.f32.mrf.mxu0
    %v3854 = vadd.f32 %v3688, %v3853
    %v3855 = vpop.f32.mrf.mxu0
    %v3856 = vpop.f32.mrf.mxu0
    %v3857 = vadd.f32 %v3688, %v3856
    %v3858 = vpop.f32.mrf.mxu0
    %3859 = vmatprep.mubr.bf16.mxu0 0
    %3860 = vmatmul.mubr.bf16.gmra.mxu0 %v3722
    %v3861 = vpop.f32.mrf.mxu0
    %v3862 = vadd.f32 %v3688, %v3861
    %v3863 = vpop.f32.mrf.mxu0
    %v3864 = vpop.f32.mrf.mxu0
    %v3865 = vadd.f32 %v3688, %v3864
    %v3866 = vpop.f32.mrf.mxu0
    %3867 = vmatprep.mubr.bf16.mxu0 0
    %3868 = vmatmul.mubr.bf16.gmra.mxu0 %v3725
    %v3869 = vpop.f32.mrf.mxu0
    %v3870 = vadd.f32 %v3688, %v3869
    %v3871 = vpop.f32.mrf.mxu0
    %v3872 = vpop.f32.mrf.mxu0
    %v3873 = vadd.f32 %v3688, %v3872
    %v3874 = vpop.f32.mrf.mxu0
    %3875 = vmatprep.mubr.bf16.mxu0 0
    %3876 = vmatmul.mubr.bf16.gmra.mxu0 %v3728
    %v3877 = vpop.f32.mrf.mxu0
    %v3878 = vadd.f32 %v3688, %v3877
    %v3879 = vpop.f32.mrf.mxu0
    %v3880 = vpop.f32.mrf.mxu0
    %v3881 = vadd.f32 %v3688, %v3880
    %v3882 = vpop.f32.mrf.mxu0
    %3883 = vmatprep.mubr.bf16.mxu0 0
    %3884 = vmatmul.mubr.bf16.gmra.mxu0 %v3731
    %v3885 = vpop.f32.mrf.mxu0
    %v3886 = vadd.f32 %v3688, %v3885
    %v3887 = vpop.f32.mrf.mxu0
    %v3888 = vpop.f32.mrf.mxu0
    %v3889 = vadd.f32 %v3688, %v3888
    %v3890 = vpop.f32.mrf.mxu0
    %3891 = vmatprep.mubr.bf16.mxu0 0
    %3892 = vmatmul.mubr.bf16.gmra.mxu0 %v3734
    %v3893 = vpop.f32.mrf.mxu0
    %v3894 = vadd.f32 %v3688, %v3893
    %v3895 = vpop.f32.mrf.mxu0
    %v3896 = vpop.f32.mrf.mxu0
    %v3897 = vadd.f32 %v3688, %v3896
    %v3898 = vpop.f32.mrf.mxu0
    %3899 = vmatprep.mubr.bf16.mxu0 0
    %3900 = vmatmul.mubr.bf16.gmra.mxu0 %v3737
    %v3901 = vpop.f32.mrf.mxu0
    %v3902 = vadd.f32 %v3688, %v3901
    %v3903 = vpop.f32.mrf.mxu0
    %v3904 = vpop.f32.mrf.mxu0
    %v3905 = vadd.f32 %v3688, %v3904
    %v3906 = vpop.f32.mrf.mxu0
    %3907 = vmatprep.mubr.bf16.mxu0 0
    %3908 = vmatmul.mubr.bf16.gmra.mxu0 %v3740
    %v3909 = vpop.f32.mrf.mxu0
    %v3910 = vadd.f32 %v3688, %v3909
    %v3911 = vpop.f32.mrf.mxu0
    %v3912 = vpop.f32.mrf.mxu0
    %v3913 = vadd.f32 %v3688, %v3912
    %v3914 = vpop.f32.mrf.mxu0
    %3915 = vmatprep.mubr.bf16.mxu0 0
    %3916 = vmatmul.mubr.bf16.gmra.mxu0 %v3743
    %v3917 = vpop.f32.mrf.mxu0
    %v3918 = vadd.f32 %v3688, %v3917
    %v3919 = vpop.f32.mrf.mxu0
    %v3920 = vpop.f32.mrf.mxu0
    %v3921 = vadd.f32 %v3688, %v3920
    %v3922 = vpop.f32.mrf.mxu0
    %3923 = vmatprep.mubr.bf16.mxu0 0
    %3924 = vmatmul.mubr.bf16.gmra.mxu0 %v3746
    %v3925 = vpop.f32.mrf.mxu0
    %v3926 = vadd.f32 %v3688, %v3925
    %v3927 = vpop.f32.mrf.mxu0
    %v3928 = vpop.f32.mrf.mxu0
    %v3929 = vadd.f32 %v3688, %v3928
    %v3930 = vpop.f32.mrf.mxu0
    %3931 = vmatprep.mubr.bf16.mxu0 0
    %3932 = vmatmul.mubr.bf16.gmra.mxu0 %v3749
    %v3933 = vpop.f32.mrf.mxu0
    %v3934 = vadd.f32 %v3688, %v3933
    %v3935 = vpop.f32.mrf.mxu0
    %v3936 = vpop.f32.mrf.mxu0
    %v3937 = vadd.f32 %v3688, %v3936
    %v3938 = vpop.f32.mrf.mxu0
    %3939 = vmatprep.mubr.bf16.mxu0 0
    %3940 = vmatmul.mubr.bf16.gmra.mxu0 %v3752
    %v3941 = vpop.f32.mrf.mxu0
    %v3942 = vadd.f32 %v3688, %v3941
    %v3943 = vpop.f32.mrf.mxu0
    %v3944 = vpop.f32.mrf.mxu0
    %v3945 = vadd.f32 %v3688, %v3944
    %v3946 = vpop.f32.mrf.mxu0
    %3947 = vmatprep.mubr.bf16.mxu0 0
    %3948 = vmatmul.mubr.bf16.gmra.mxu0 %v3755
    %v3949 = vpop.f32.mrf.mxu0
    %v3950 = vadd.f32 %v3688, %v3949
    %v3951 = vpop.f32.mrf.mxu0
    %v3952 = vpop.f32.mrf.mxu0
    %v3953 = vadd.f32 %v3688, %v3952
    %v3954 = vpop.f32.mrf.mxu0
    %3955 = vmatprep.mubr.bf16.mxu0 0
    %3956 = vmatmul.mubr.bf16.gmra.mxu0 %v3758
    %v3957 = vpop.f32.mrf.mxu0
    %v3958 = vadd.f32 %v3688, %v3957
    %v3959 = vpop.f32.mrf.mxu0
    %v3960 = vpop.f32.mrf.mxu0
    %v3961 = vadd.f32 %v3688, %v3960
    %v3962 = vpop.f32.mrf.mxu0
    %3963 = vmatprep.mubr.bf16.mxu0 0
    %3964 = vmatmul.mubr.bf16.gmra.mxu0 %v3761
    %v3965 = vpop.f32.mrf.mxu0
    %v3966 = vadd.f32 %v3688, %v3965
    %v3967 = vpop.f32.mrf.mxu0
    %v3968 = vpop.f32.mrf.mxu0
    %v3969 = vadd.f32 %v3688, %v3968
    %v3970 = vpop.f32.mrf.mxu0
    %3971 = vmatprep.mubr.bf16.mxu0 0
    %3972 = vmatmul.mubr.bf16.gmra.mxu0 %v3764
    %v3973 = vpop.f32.mrf.mxu0
    %v3974 = vadd.f32 %v3688, %v3973
    %v3975 = vpop.f32.mrf.mxu0
    %v3976 = vpop.f32.mrf.mxu0
    %v3977 = vadd.f32 %v3688, %v3976
    %v3978 = vpop.f32.mrf.mxu0
    %3979 = vmatprep.mubr.bf16.mxu0 0
    %3980 = vmatmul.mubr.bf16.gmra.mxu0 %v3767
    %v3981 = vpop.f32.mrf.mxu0
    %v3982 = vadd.f32 %v3688, %v3981
    %v3983 = vpop.f32.mrf.mxu0
    %v3984 = vpop.f32.mrf.mxu0
    %v3985 = vadd.f32 %v3688, %v3984
    %v3986 = vpop.f32.mrf.mxu0
    %3987 = vmatprep.mubr.bf16.mxu0 0
    %3988 = vmatmul.mubr.bf16.gmra.mxu0 %v3770
    %v3989 = vpop.f32.mrf.mxu0
    %v3990 = vadd.f32 %v3688, %v3989
    %v3991 = vpop.f32.mrf.mxu0
    %v3992 = vpop.f32.mrf.mxu0
    %v3993 = vadd.f32 %v3688, %v3992
    %v3994 = vpop.f32.mrf.mxu0
    %3995 = vmatprep.mubr.bf16.mxu0 0
    %3996 = vmatmul.mubr.bf16.gmra.mxu0 %v3773
    %v3997 = vpop.f32.mrf.mxu0
    %v3998 = vadd.f32 %v3688, %v3997
    %v3999 = vpop.f32.mrf.mxu0
    %v4000 = vpop.f32.mrf.mxu0
    %v4001 = vadd.f32 %v3688, %v4000
    %v4002 = vpop.f32.mrf.mxu0
    %4003 = vmatprep.mubr.bf16.mxu0 0
    %4004 = vmatmul.mubr.bf16.gmra.mxu0 %v3776
    %v4005 = vpop.f32.mrf.mxu0
    %v4006 = vadd.f32 %v3688, %v4005
    %v4007 = vpop.f32.mrf.mxu0
    %v4008 = vpop.f32.mrf.mxu0
    %v4009 = vadd.f32 %v3688, %v4008
    %v4010 = vpop.f32.mrf.mxu0
    %4011 = vmatprep.mubr.bf16.mxu0 0
    %4012 = vmatmul.mubr.bf16.gmra.mxu0 %v3779
    %v4013 = vpop.f32.mrf.mxu0
    %v4014 = vadd.f32 %v3688, %v4013
    %v4015 = vpop.f32.mrf.mxu0
    %v4016 = vpop.f32.mrf.mxu0
    %v4017 = vadd.f32 %v3688, %v4016
    %v4018 = vpop.f32.mrf.mxu0
    %4019 = vmatprep.mubr.bf16.mxu0 0
    %4020 = vmatmul.mubr.bf16.gmra.mxu0 %v3782
    %v4021 = vpop.f32.mrf.mxu0
    %v4022 = vadd.f32 %v3688, %v4021
    %v4023 = vpop.f32.mrf.mxu0
    %v4024 = vpop.f32.mrf.mxu0
    %v4025 = vadd.f32 %v3688, %v4024
    %v4026 = vpop.f32.mrf.mxu0
    %4027 = vmatprep.mubr.bf16.mxu0 0
    %4028 = vmatmul.mubr.bf16.gmra.mxu0 %v3785
    %v4029 = vpop.f32.mrf.mxu0
    %v4030 = vadd.f32 %v3688, %v4029
    %v4031 = vpop.f32.mrf.mxu0
    %v4032 = vpop.f32.mrf.mxu0
    %v4033 = vadd.f32 %v3688, %v4032
    %v4034 = vpop.f32.mrf.mxu0
    %4035 = vmatprep.mubr.bf16.mxu0 0
    %4036 = vmatmul.mubr.bf16.gmra.mxu0 %v3788
    %v4037 = vpop.f32.mrf.mxu0
    %v4038 = vadd.f32 %v3688, %v4037
    %v4039 = vpop.f32.mrf.mxu0
    %v4040 = vpop.f32.mrf.mxu0
    %v4041 = vadd.f32 %v3688, %v4040
    %v4042 = vpop.f32.mrf.mxu0
    %4043 = vmatprep.mubr.bf16.mxu0 0
    %4044 = vmatmul.mubr.bf16.gmra.mxu0 %v3791
    %v4045 = vpop.f32.mrf.mxu0
    %v4046 = vadd.f32 %v3688, %v4045
    %v4047 = vpop.f32.mrf.mxu0
    %v4048 = vpop.f32.mrf.mxu0
    %v4049 = vadd.f32 %v3688, %v4048
    %v4050 = vpop.f32.mrf.mxu0
    %4051 = vmatprep.mubr.bf16.mxu0 0
    %4052 = vmatmul.mubr.bf16.gmra.mxu0 %v3794
    %v4053 = vpop.f32.mrf.mxu0
    %v4054 = vadd.f32 %v3688, %v4053
    %v4055 = vpop.f32.mrf.mxu0
    %v4056 = vpop.f32.mrf.mxu0
    %v4057 = vadd.f32 %v3688, %v4056
    %v4058 = vpop.f32.mrf.mxu0
    %4059 = vmatprep.mubr.bf16.mxu0 0
    %4060 = vmatmul.mubr.bf16.gmra.mxu0 %v3797
    %v4061 = vpop.f32.mrf.mxu0
    %v4062 = vadd.f32 %v3688, %v4061
    %v4063 = vpop.f32.mrf.mxu0
    %v4064 = vpop.f32.mrf.mxu0
    %v4065 = vadd.f32 %v3688, %v4064
    %v4066 = vpop.f32.mrf.mxu0
    %4067 = vmatprep.mubr.bf16.mxu0 0
    %4068 = vmatmul.mubr.bf16.gmra.mxu0 %v3800
    %v4069 = vpop.f32.mrf.mxu0
    %v4070 = vadd.f32 %v3688, %v4069
    %v4071 = vpop.f32.mrf.mxu0
    %v4072 = vpop.f32.mrf.mxu0
    %v4073 = vadd.f32 %v3688, %v4072
    %v4074 = vpop.f32.mrf.mxu0
    %4075 = vmatprep.mubr.bf16.mxu0 0
    %4076 = vmatmul.mubr.bf16.gmra.mxu0 %v3803
    %v4077 = vpop.f32.mrf.mxu0
    %v4078 = vadd.f32 %v3688, %v4077
    %v4079 = vpop.f32.mrf.mxu0
    %v4080 = vpop.f32.mrf.mxu0
    %v4081 = vadd.f32 %v3688, %v4080
    %v4082 = vpop.f32.mrf.mxu0
    %4083 = vmatprep.mubr.bf16.mxu0 0
    %4084 = vmatmul.mubr.bf16.gmra.mxu0 %v3806
    %v4085 = vpop.f32.mrf.mxu0
    %v4086 = vadd.f32 %v3688, %v4085
    %v4087 = vpop.f32.mrf.mxu0
    %v4088 = vpop.f32.mrf.mxu0
    %v4089 = vadd.f32 %v3688, %v4088
    %v4090 = vpop.f32.mrf.mxu0
    %4091 = vmatprep.mubr.bf16.mxu0 0
    %4092 = vmatmul.mubr.bf16.gmra.mxu0 %v3809
    %v4093 = vpop.f32.mrf.mxu0
    %v4094 = vadd.f32 %v3688, %v4093
    %v4095 = vpop.f32.mrf.mxu0
    %v4096 = vpop.f32.mrf.mxu0
    %v4097 = vadd.f32 %v3688, %v4096
    %v4098 = vpop.f32.mrf.mxu0
    %4099 = vdwg.mxu0
    %4100 = vst [vmem:[#allocation5] sm:$0xff] %v3846
    %4101 = vst [vmem:[#allocation5 + $0x8] sm:$0xff] %v3849
    %4102 = vst [vmem:[#allocation5 + $0x10] sm:$0xff] %v3854
    %4103 = vst [vmem:[#allocation5 + $0x18] sm:$0xff] %v3857
    %4104 = vst [vmem:[#allocation5 + $0x20] sm:$0xff] %v3862
    %4105 = vst [vmem:[#allocation5 + $0x28] sm:$0xff] %v3865
    %4106 = vst [vmem:[#allocation5 + $0x30] sm:$0xff] %v3870
    %4107 = vst [vmem:[#allocation5 + $0x38] sm:$0xff] %v3873
    %4108 = vst [vmem:[#allocation5 + $0x40] sm:$0xff] %v3878
    %4109 = vst [vmem:[#allocation5 + $0x48] sm:$0xff] %v3881
    %4110 = vst [vmem:[#allocation5 + $0x50] sm:$0xff] %v3886
    %4111 = vst [vmem:[#allocation5 + $0x58] sm:$0xff] %v3889
    %4112 = vst [vmem:[#allocation5 + $0x60] sm:$0xff] %v3894
    %4113 = vst [vmem:[#allocation5 + $0x68] sm:$0xff] %v3897
    %4114 = vst [vmem:[#allocation5 + $0x70] sm:$0xff] %v3902
    %4115 = vst [vmem:[#allocation5 + $0x78] sm:$0xff] %v3905
    %4116 = vst [vmem:[#allocation5 + $0x80] sm:$0xff] %v3910
    %4117 = vst [vmem:[#allocation5 + $0x88] sm:$0xff] %v3913
    %4118 = vst [vmem:[#allocation5 + $0x90] sm:$0xff] %v3918
    %4119 = vst [vmem:[#allocation5 + $0x98] sm:$0xff] %v3921
    %4120 = vst [vmem:[#allocation5 + $0xa0] sm:$0xff] %v3926
    %4121 = vst [vmem:[#allocation5 + $0xa8] sm:$0xff] %v3929
    %4122 = vst [vmem:[#allocation5 + $0xb0] sm:$0xff] %v3934
    %4123 = vst [vmem:[#allocation5 + $0xb8] sm:$0xff] %v3937
    %4124 = vst [vmem:[#allocation5 + $0xc0] sm:$0xff] %v3942
    %4125 = vst [vmem:[#allocation5 + $0xc8] sm:$0xff] %v3945
    %4126 = vst [vmem:[#allocation5 + $0xd0] sm:$0xff] %v3950
    %4127 = vst [vmem:[#allocation5 + $0xd8] sm:$0xff] %v3953
    %4128 = vst [vmem:[#allocation5 + $0xe0] sm:$0xff] %v3958
    %4129 = vst [vmem:[#allocation5 + $0xe8] sm:$0xff] %v3961
    %4130 = vst [vmem:[#allocation5 + $0xf0] sm:$0xff] %v3966
    %4131 = vst [vmem:[#allocation5 + $0xf8] sm:$0xff] %v3969
    %4132 = vst [vmem:[#allocation5 + $0x100] sm:$0xff] %v3974
    %4133 = vst [vmem:[#allocation5 + $0x108] sm:$0xff] %v3977
    %4134 = vst [vmem:[#allocation5 + $0x110] sm:$0xff] %v3982
    %4135 = vst [vmem:[#allocation5 + $0x118] sm:$0xff] %v3985
    %4136 = vst [vmem:[#allocation5 + $0x120] sm:$0xff] %v3990
    %4137 = vst [vmem:[#allocation5 + $0x128] sm:$0xff] %v3993
    %4138 = vst [vmem:[#allocation5 + $0x130] sm:$0xff] %v3998
    %4139 = vst [vmem:[#allocation5 + $0x138] sm:$0xff] %v4001
    %4140 = vst [vmem:[#allocation5 + $0x140] sm:$0xff] %v4006
    %4141 = vst [vmem:[#allocation5 + $0x148] sm:$0xff] %v4009
    %4142 = vst [vmem:[#allocation5 + $0x150] sm:$0xff] %v4014
    %4143 = vst [vmem:[#allocation5 + $0x158] sm:$0xff] %v4017
    %4144 = vst [vmem:[#allocation5 + $0x160] sm:$0xff] %v4022
    %4145 = vst [vmem:[#allocation5 + $0x168] sm:$0xff] %v4025
    %4146 = vst [vmem:[#allocation5 + $0x170] sm:$0xff] %v4030
    %4147 = vst [vmem:[#allocation5 + $0x178] sm:$0xff] %v4033
    %4148 = vst [vmem:[#allocation5 + $0x180] sm:$0xff] %v4038
    %4149 = vst [vmem:[#allocation5 + $0x188] sm:$0xff] %v4041
    %4150 = vst [vmem:[#allocation5 + $0x190] sm:$0xff] %v4046
    %4151 = vst [vmem:[#allocation5 + $0x198] sm:$0xff] %v4049
    %4152 = vst [vmem:[#allocation5 + $0x1a0] sm:$0xff] %v4054
    %4153 = vst [vmem:[#allocation5 + $0x1a8] sm:$0xff] %v4057
    %4154 = vst [vmem:[#allocation5 + $0x1b0] sm:$0xff] %v4062
    %4155 = vst [vmem:[#allocation5 + $0x1b8] sm:$0xff] %v4065
    %4156 = vst [vmem:[#allocation5 + $0x1c0] sm:$0xff] %v4070
    %4157 = vst [vmem:[#allocation5 + $0x1c8] sm:$0xff] %v4073
    %4158 = vst [vmem:[#allocation5 + $0x1d0] sm:$0xff] %v4078
    %4159 = vst [vmem:[#allocation5 + $0x1d8] sm:$0xff] %v4081
    %4160 = vst [vmem:[#allocation5 + $0x1e0] sm:$0xff] %v4086
    %4161 = vst [vmem:[#allocation5 + $0x1e8] sm:$0xff] %v4089
    %4162 = vst [vmem:[#allocation5 + $0x1f0] sm:$0xff] %v4094
    %4163 = vst [vmem:[#allocation5 + $0x1f8] sm:$0xff] %v4097
    // Predicated region
    $region50: #{tpu_custom_call.1} parent=1 // pred_check
      _
    $region51: #{tpu_custom_call.1} parent=1 // pred_check_branch
      %4165 = sbr.rel (0) target = $region53
    $region52: #{tpu_custom_call.1} parent=1 // pred_region
      %s4167 = ssub.s32 8192, 8192
      %4168 = vsyncadd [#allocation4], %s4167
      %s4169 = sshll.u32 [#allocation5], 4
      %s4170 = int_to_ptr.vmem [resolvable:$true] %s4169
      %4175 = dma.vmem_to_hbm [thread:$0]  %s4170, 8192, %s11, [#allocation4], 128, 128, 8
    $region53: #{tpu_custom_call.1} parent=1 // pred_fallthru
      _
    // Predicated region
    $region54: #{tpu_custom_call.1} parent=1 // pred_check
      _
    $region55: #{tpu_custom_call.1} parent=1 // pred_check_branch
      %4177 = sbr.rel (0) target = $region57
    $region56: #{tpu_custom_call.1} parent=1 // pred_region
      %4178 = dma.done [#allocation4], 8192
    $region57: #{tpu_custom_call.1} parent=1 // pred_fallthru
      _
    %4179 = vsyncpa [#allocation3], 1
    %4180 = vsyncpa [#allocation4], 1

</llo_original>
